<compile_context>
chip_gen: v7x
topology: tpu7x:2x2x1
jax: 0.10.0
libtpu: 0.0.40
codegen_flags: <defaults>
</compile_context>

<pallas_src>
import functools

import jax
import jax.numpy as jnp
from jax.experimental import pallas as pl
from jax.experimental.pallas import tpu as pltpu

EPS = 1e-5  # torch.nn.BatchNorm3d default eps


def _vmem_budget_bytes():
    """Per-generation VMEM budget (half of physical capacity -> compiler headroom)."""
    try:
        cap = int(pltpu.get_tpu_info().vmem_capacity_bytes)
    except Exception:  # query unavailable -> assume smallest (v7x per-TC) capacity
        cap = 64 * 1024 * 1024
    return max(cap // 2, 32 * 1024 * 1024)


def _fused_small_kernel(a_ref, w_ref, gb_ref, o_ref, *, count):
    """Fully fused conv matmul + BN (batch stats) + ReLU + AvgPool3d((1,2,2)); one step."""
    P, G, Kp = a_ref.shape
    Cp = o_ref.shape[1]
    a = a_ref[...].reshape(P * G, Kp)                                   # bf16
    y = jnp.dot(a, w_ref[...], preferred_element_type=jnp.float32)     # (4G, Cp) f32

    inv_n = 1.0 / count
    mean = jnp.sum(y, axis=0, keepdims=True) * inv_n                   # (1, Cp)
    # NOTE: E[y^2]-E[y]^2 in f32; fine at these counts. Very large batch*spatial counts
    # would want a shifted / two-pass variance.
    var = jnp.sum(y * y, axis=0, keepdims=True) * inv_n - mean * mean
    gamma = gb_ref[0:1, :]
    beta = gb_ref[1:2, :]
    scale = gamma * jax.lax.rsqrt(var + EPS)
    shift = beta - mean * scale
    scale = 0.25 * scale        # fold the 1/4 average-pool factor into scale/shift
    shift = 0.25 * shift        # (max is positively homogeneous, so ReLU commutes)

    z = jnp.maximum(y.reshape(P, G, Cp) * scale + shift, 0.0)
    o_ref[...] = (z[0] + z[1] + z[2] + z[3]).astype(o_ref.dtype)


def _conv_stats_kernel(a_ref, w_ref, y_ref, stats_ref):
    """Phase 1: conv matmul for one row tile + per-channel sum / sumsq accumulation."""
    i = pl.program_id(1)                 # row-tile index within this core's share
    P, R, Kp = a_ref.shape
    Cp = y_ref.shape[2]

    a = a_ref[...].reshape(P * R, Kp)                                   # bf16
    y = jnp.dot(a, w_ref[...], preferred_element_type=jnp.float32)     # (4R, Cp) f32
    y_ref[...] = y.reshape(P, R, Cp).astype(y_ref.dtype)               # bf16 HBM intermediate

    @pl.when(i == 0)
    def _():
        stats_ref[...] = jnp.zeros_like(stats_ref)

    # Slice accumulates (no sublane concat/relayout); stats computed from the f32 value.
    stats_ref[0:1, :] += jnp.sum(y, axis=0, keepdims=True)
    stats_ref[1:2, :] += jnp.sum(y * y, axis=0, keepdims=True)


def _bn_relu_pool_kernel(stats_ref, gb_ref, y_ref, o_ref, *, count):
    """Phase 2: fused BN scale/shift + ReLU + AvgPool3d((1,2,2)) for one row tile."""
    inv_n = 1.0 / count
    mean = stats_ref[0:1, :] * inv_n
    var = stats_ref[1:2, :] * inv_n - mean * mean                      # biased batch variance
    gamma = gb_ref[0:1, :]
    beta = gb_ref[1:2, :]
    scale = gamma * jax.lax.rsqrt(var + EPS)
    shift = beta - mean * scale
    scale = 0.25 * scale
    shift = 0.25 * shift

    y = y_ref[...].astype(jnp.float32)                                 # upcast bf16 -> f32
    z = jnp.maximum(y * scale + shift, 0.0)                            # (4, R, Cp)
    o_ref[...] = (z[0] + z[1] + z[2] + z[3]).astype(o_ref.dtype)


def _pick_row_tile(G, Kp, Cp, budget):
    """Largest 128-multiple row tile whose double-buffered streams fit the VMEM budget."""
    per_row = 2 * (4 * Kp * 2) + 2 * (4 * Cp * 2)       # A (bf16) + y (bf16), 2 buffers each
    fixed = 2 * (Kp * Cp * 2) + 4 * (2 * Cp * 4)        # resident weight (2 bufs) + stats
    r = (budget - fixed) // max(per_row, 1)
    r = max(128, min(1024, r))
    r = (r // 128) * 128
    return min(r, ((G + 127) // 128) * 128)             # never wider than the problem


def downblock_forward(x, conv_w, conv_b, bn_gamma, bn_beta, *, kernel_size, padding,
                      force_two_phase=False, row_tile=None):
    # Conv bias is exactly cancelled by training-mode BatchNorm mean subtraction -> drop
    # it (would NOT hold for eval-mode running stats).
    del conv_b
    N, Cin, D, H, W = x.shape
    Cout = conv_w.shape[0]
    k, p = kernel_size, padding

    # NCDHW -> NDHWC, zero-pad spatial dims; cast to bf16 early so the im2col relayout
    # moves half the bytes (the MXU operands are bf16 anyway).
    xt = jnp.transpose(x, (0, 2, 3, 4, 1))
    xp = jnp.pad(xt, ((0, 0), (p, p), (p, p), (p, p), (0, 0))).astype(jnp.bfloat16)
    Do, Ho, Wo = D + 2 * p - k + 1, H + 2 * p - k + 1, W + 2 * p - k + 1
    assert Ho % 2 == 0 and Wo % 2 == 0, "AvgPool3d((1,2,2)) needs even H/W conv output"

    # im2col (layout glue): columns ordered (kd, kh, kw, cin).
    # TODO(synk): patches are still materialized in HBM (~k^3 input-read amplification);
    # an in-kernel tap-accumulation conv (x kept in NDHWC HBM, per-tap weight slices,
    # VMEM accumulator) would cut input reads to ~1x and remove this relayout.
    taps = []
    for kd in range(k):
        for kh in range(k):
            for kw in range(k):
                taps.append(xp[:, kd:kd + Do, kh:kh + Ho, kw:kw + Wo, :])
    pat = jnp.stack(taps, axis=4)                            # (N, Do, Ho, Wo, k^3, Cin) bf16
    K = k * k * k * Cin
    pat = pat.reshape(N, Do, Ho, Wo, K)
    # move the 2x2 pool-window offsets to the slowest row axis
    pat = pat.reshape(N, Do, Ho // 2, 2, Wo // 2, 2, K)
    pat = jnp.transpose(pat, (3, 5, 0, 1, 2, 4, 6))          # (2, 2, N, Do, Ho/2, Wo/2, K)
    G = N * Do * (Ho // 2) * (Wo // 2)

    # Lane-align: pad contraction dim / output channels to 128 (lane-dense, unmasked MXU IO).
    Kp = ((K + 127) // 128) * 128
    Cp = ((Cout + 127) // 128) * 128
    A = jnp.pad(pat.reshape(4, G, K), ((0, 0), (0, 0), (0, Kp - K)))   # bf16

    B = jnp.transpose(conv_w, (2, 3, 4, 1, 0)).reshape(K, Cout)
    B = jnp.pad(B, ((0, Kp - K), (0, Cp - Cout))).astype(jnp.bfloat16)

    # gamma/beta packed into a single lane-dense operand: rows [gamma, beta]
    gb = jnp.zeros((2, Cp), jnp.float32)
    gb = gb.at[0, :Cout].set(bn_gamma.astype(jnp.float32))
    gb = gb.at[1, :Cout].set(bn_beta.astype(jnp.float32))

    budget = _vmem_budget_bytes()

    # --- small-problem fast path: everything fits in VMEM -> single fused kernel,
    #     skipping the HBM conv intermediate and the second launch entirely. ---
    fused_bytes = 4 * G * Kp * 2 + 3 * (4 * G * Cp * 4) + G * Cp * 4 + Kp * Cp * 2
    if not force_two_phase and fused_bytes <= budget // 2:
        out = pl.pallas_call(
            functools.partial(_fused_small_kernel, count=4 * G),
            out_shape=jax.ShapeDtypeStruct((G, Cp), jnp.float32),
            compiler_params=pltpu.CompilerParams(vmem_limit_bytes=budget),
        )(A, B, gb)
    else:
        # --- general tiled two-phase path ---
        R = row_tile if row_tile is not None else _pick_row_tile(G, Kp, Cp, budget)
        assert R % 8 == 0
        C = 2 if (G + R - 1) // R >= 2 else 1     # leading "parallel" core-split axis (v7x)
        Gp = ((G + C * R - 1) // (C * R)) * (C * R)
        T = Gp // R
        T2 = T // C
        # Zero-padded rows contribute 0 to sum/sumsq and are sliced off below.
        A = jnp.pad(A, ((0, 0), (0, Gp - G), (0, 0)))

        # Phase 1: conv matmul + per-core batch-stats partials (bf16 HBM intermediate).
        y_conv, stats_p = pl.pallas_call(
            _conv_stats_kernel,
            out_shape=(
                jax.ShapeDtypeStruct((4, Gp, Cp), jnp.bfloat16),
                jax.ShapeDtypeStruct((C, 2, Cp), jnp.float32),
            ),
            grid=(C, T2),
            in_specs=[
                pl.BlockSpec((4, R, Kp), lambda c, i: (0, c * T2 + i, 0)),
                # TODO(synk): the resident weight is still double-buffered; for large
                # Kp*Cp pass it via memory_space=pl.ANY + a one-shot DMA into scratch.
                pl.BlockSpec((Kp, Cp), lambda c, i: (0, 0)),
            ],
            out_specs=(
                pl.BlockSpec((4, R, Cp), lambda c, i: (0, c * T2 + i, 0)),
                pl.BlockSpec((None, 2, Cp), lambda c, i: (c, 0, 0)),
            ),
            compiler_params=pltpu.CompilerParams(
                dimension_semantics=("parallel", "arbitrary"),
                vmem_limit_bytes=budget),
        )(A, B)

        stats = jnp.sum(stats_p, axis=0)          # combine per-core partials -> (2, Cp)

        # Phase 2: fused BN + ReLU + avg-pool over independent row tiles.
        out = pl.pallas_call(
            functools.partial(_bn_relu_pool_kernel, count=4 * G),
            out_shape=jax.ShapeDtypeStruct((Gp, Cp), jnp.float32),
            grid=(T,),
            in_specs=[
                pl.BlockSpec((2, Cp), lambda i: (0, 0)),
                pl.BlockSpec((2, Cp), lambda i: (0, 0)),
                pl.BlockSpec((4, R, Cp), lambda i: (0, i, 0)),
            ],
            out_specs=pl.BlockSpec((R, Cp), lambda i: (i, 0)),
            compiler_params=pltpu.CompilerParams(
                dimension_semantics=("parallel",),
                vmem_limit_bytes=budget),
        )(stats, gb, y_conv)

    # Rows ordered (n, d, h2, w2) -> drop row/channel padding -> NCDHW.
    out = out[:G, :Cout].reshape(N, Do, Ho // 2, Wo // 2, Cout)
    return jnp.transpose(out, (0, 4, 1, 2, 3))


def reference_forward(x, conv_w, conv_b, bn_gamma, bn_beta, *, padding):
    p = padding
    y = jax.lax.conv_general_dilated(
        x, conv_w, window_strides=(1, 1, 1), padding=[(p, p)] * 3,
        dimension_numbers=("NCDHW", "OIDHW", "NCDHW"),
        precision=jax.lax.Precision.HIGHEST)
    y = y + conv_b[None, :, None, None, None]
    mean = jnp.mean(y, axis=(0, 2, 3, 4), keepdims=True)
    var = jnp.mean(jnp.square(y - mean), axis=(0, 2, 3, 4), keepdims=True)
    y = (y - mean) / jnp.sqrt(var + EPS)
    y = y * bn_gamma[None, :, None, None, None] + bn_beta[None, :, None, None, None]
    y = jnp.maximum(y, 0.0)
    Nn, Cc, Dd, Hh, Ww = y.shape
    return y.reshape(Nn, Cc, Dd, Hh // 2, 2, Ww // 2, 2).mean(axis=(4, 6))


if __name__ == "__main__":
    key = jax.random.PRNGKey(0)
    k_x, k_w, k_b, k_g, k_bt = jax.random.split(key, 5)

    N, Cin, Cout, D, H, W = 2, 4, 8, 4, 16, 16
    kernel_size, padding = 3, 1

    x = jax.random.normal(k_x, (N, Cin, D, H, W), jnp.float32)
    conv_w = 0.1 * jax.random.normal(
        k_w, (Cout, Cin, kernel_size, kernel_size, kernel_size), jnp.float32)
    conv_b = 0.1 * jax.random.normal(k_b, (Cout,), jnp.float32)
    bn_gamma = 1.0 + 0.1 * jax.random.normal(k_g, (Cout,), jnp.float32)
    bn_beta = 0.1 * jax.random.normal(k_bt, (Cout,), jnp.float32)

    ref = reference_forward(x, conv_w, conv_b, bn_gamma, bn_beta, padding=padding)

    # Small shapes -> fused single-kernel fast path.
    out = downblock_forward(x, conv_w, conv_b, bn_gamma, bn_beta,
                            kernel_size=kernel_size, padding=padding)
    out = jax.block_until_ready(out)
    assert out.shape == ref.shape == (N, Cout, D, H // 2, W // 2), (out.shape, ref.shape)
    err = float(jnp.max(jnp.abs(out - ref)))
    # bf16 MXU operands with f32 accumulation -> relaxed (but still tight) tolerance
    assert jnp.allclose(out, ref, atol=2e-2, rtol=2e-2), ("fused path max err", err)

    # Also exercise the general tiled two-phase path (bf16 intermediate, per-core stats
    # split, zero-row padding) on the same inputs with a small forced row tile.
    out2 = downblock_forward(x, conv_w, conv_b, bn_gamma, bn_beta,
                             kernel_size=kernel_size, padding=padding,
                             force_two_phase=True, row_tile=128)
    out2 = jax.block_until_ready(out2)
    err2 = float(jnp.max(jnp.abs(out2 - ref)))
    assert jnp.allclose(out2, ref, atol=2e-2, rtol=2e-2), ("two-phase path max err", err2)

    print("KERNEL_OK")
</pallas_src>

<mosaic_0001>
module attributes {stable_mosaic.version = 11 : i64} {
  func.func @_fused_small_kernel(%arg0: memref<4x512x128xbf16, #tpu.memory_space<vmem>>, %arg1: memref<128x128xbf16, #tpu.memory_space<vmem>>, %arg2: memref<2x128xf32, #tpu.memory_space<vmem>>, %arg3: memref<512x128xf32, #tpu.memory_space<vmem>>) attributes {dimension_semantics = [], scalar_prefetch = 0 : i64, scratch_operands = 0 : i64, tpu.core_type = #tpu.core_type<tc>} {
    %c0 = arith.constant 0 : index
    %c0_0 = arith.constant 0 : index
    %c0_1 = arith.constant 0 : index
    %0 = vector.load %arg0[%c0, %c0_0, %c0_1] : memref<4x512x128xbf16, #tpu.memory_space<vmem>>, vector<4x512x128xbf16>
    %1 = vector.shape_cast %0 : vector<4x512x128xbf16> to vector<2048x128xbf16>
    %c0_2 = arith.constant 0 : index
    %c0_3 = arith.constant 0 : index
    %2 = vector.load %arg1[%c0_2, %c0_3] : memref<128x128xbf16, #tpu.memory_space<vmem>>, vector<128x128xbf16>
    %cst = arith.constant dense<0.000000e+00> : vector<2048x128xf32>
    %3 = tpu.matmul %1, %2, %cst {dimension_numbers = #tpu.dot_dimension_numbers<[1], [0], [0], [1], [0, 0, 1, 1], [], []>} : vector<2048x128xbf16>, vector<128x128xbf16>, vector<2048x128xf32> -> vector<2048x128xf32>
    %cst_4 = arith.constant dense<0.000000e+00> : vector<128xf32>
    %4 = vector.multi_reduction <add>, %3, %cst_4 [0] : vector<2048x128xf32> to vector<128xf32>
    %5 = vector.shape_cast %4 : vector<128xf32> to vector<1x128xf32>
    %cst_5 = arith.constant 4.8828125E-4 : f32
    %6 = vector.broadcast %cst_5 : f32 to vector<1x128xf32>
    %7 = arith.mulf %5, %6 : vector<1x128xf32>
    %8 = arith.mulf %3, %3 : vector<2048x128xf32>
    %cst_6 = arith.constant dense<0.000000e+00> : vector<128xf32>
    %9 = vector.multi_reduction <add>, %8, %cst_6 [0] : vector<2048x128xf32> to vector<128xf32>
    %10 = vector.shape_cast %9 : vector<128xf32> to vector<1x128xf32>
    %cst_7 = arith.constant 4.8828125E-4 : f32
    %11 = vector.broadcast %cst_7 : f32 to vector<1x128xf32>
    %12 = arith.mulf %10, %11 : vector<1x128xf32>
    %13 = arith.mulf %7, %7 : vector<1x128xf32>
    %14 = arith.subf %12, %13 : vector<1x128xf32>
    %c0_8 = arith.constant 0 : index
    %c0_9 = arith.constant 0 : index
    %15 = vector.load %arg2[%c0_8, %c0_9] : memref<2x128xf32, #tpu.memory_space<vmem>>, vector<1x128xf32>
    %c1 = arith.constant 1 : index
    %c0_10 = arith.constant 0 : index
    %16 = vector.load %arg2[%c1, %c0_10] : memref<2x128xf32, #tpu.memory_space<vmem>>, vector<1x128xf32>
    %cst_11 = arith.constant 9.99999974E-6 : f32
    %17 = vector.broadcast %cst_11 : f32 to vector<1x128xf32>
    %18 = arith.addf %14, %17 : vector<1x128xf32>
    %19 = math.rsqrt %18 : vector<1x128xf32>
    %20 = arith.mulf %15, %19 : vector<1x128xf32>
    %21 = arith.mulf %7, %20 : vector<1x128xf32>
    %22 = arith.subf %16, %21 : vector<1x128xf32>
    %cst_12 = arith.constant 2.500000e-01 : f32
    %23 = vector.broadcast %cst_12 : f32 to vector<1x128xf32>
    %24 = arith.mulf %23, %20 : vector<1x128xf32>
    %cst_13 = arith.constant 2.500000e-01 : f32
    %25 = vector.broadcast %cst_13 : f32 to vector<1x128xf32>
    %26 = arith.mulf %25, %22 : vector<1x128xf32>
    %27 = vector.shape_cast %3 : vector<2048x128xf32> to vector<4x512x128xf32>
    %28 = vector.shape_cast %24 : vector<1x128xf32> to vector<1x1x128xf32>
    %29 = vector.broadcast %28 : vector<1x1x128xf32> to vector<4x512x128xf32>
    %30 = arith.mulf %27, %29 : vector<4x512x128xf32>
    %31 = vector.shape_cast %26 : vector<1x128xf32> to vector<1x1x128xf32>
    %32 = vector.broadcast %31 : vector<1x1x128xf32> to vector<4x512x128xf32>
    %33 = arith.addf %30, %32 : vector<4x512x128xf32>
    %cst_14 = arith.constant 0.000000e+00 : f32
    %34 = vector.broadcast %cst_14 : f32 to vector<4x512x128xf32>
    %35 = arith.maximumf %33, %34 : vector<4x512x128xf32>
    %36 = vector.extract_strided_slice %35 {offsets = [0, 0, 0], sizes = [1, 512, 128], strides = [1, 1, 1]} : vector<4x512x128xf32> to vector<1x512x128xf32>
    %37 = vector.shape_cast %36 : vector<1x512x128xf32> to vector<512x128xf32>
    %38 = vector.extract_strided_slice %35 {offsets = [1, 0, 0], sizes = [1, 512, 128], strides = [1, 1, 1]} : vector<4x512x128xf32> to vector<1x512x128xf32>
    %39 = vector.shape_cast %38 : vector<1x512x128xf32> to vector<512x128xf32>
    %40 = arith.addf %37, %39 : vector<512x128xf32>
    %41 = vector.extract_strided_slice %35 {offsets = [2, 0, 0], sizes = [1, 512, 128], strides = [1, 1, 1]} : vector<4x512x128xf32> to vector<1x512x128xf32>
    %42 = vector.shape_cast %41 : vector<1x512x128xf32> to vector<512x128xf32>
    %43 = arith.addf %40, %42 : vector<512x128xf32>
    %44 = vector.extract_strided_slice %35 {offsets = [3, 0, 0], sizes = [1, 512, 128], strides = [1, 1, 1]} : vector<4x512x128xf32> to vector<1x512x128xf32>
    %45 = vector.shape_cast %44 : vector<1x512x128xf32> to vector<512x128xf32>
    %46 = arith.addf %43, %45 : vector<512x128xf32>
    %c0_15 = arith.constant 0 : index
    %c0_16 = arith.constant 0 : index
    %47 = vector.load %arg3[%c0_15, %c0_16] : memref<512x128xf32, #tpu.memory_space<vmem>>, vector<512x128xf32>
    tpu.vector_store %arg3[%c0_15, %c0_16], %46 {strides = array<i32>} : memref<512x128xf32, #tpu.memory_space<vmem>>, vector<512x128xf32>,
    return
  }
}

</mosaic_0001>

<llo_original>
// kernel: tpu_custom_call.1
$region0: #{tpu_custom_call.1}
  #allocation0 [shape = 'u32[]', space=smem, size = 0x4, offset = 0x4, fixed_abs, tag = 'smem constant byte address 0x4 - core index']
  #allocation1 [shape = 'u32[144,128]{1,0:T(1,128)}', space=vmem, size = 0x12000, scoped, tag = 'internal scratch']
  %s0 = inlined_call_operand.hbm [shape: bf16[4,512,128], index: 0, kind: input, shape index: {}]
  %s1 = inlined_call_operand.hbm [shape: bf16[128,128], index: 1, kind: input, shape index: {}]
  %s2 = inlined_call_operand.vmem [shape: f32[2,128], index: 2, kind: input, shape index: {}]
  %s3 = inlined_call_operand.hbm [shape: f32[512,128], index: 3, kind: output, shape index: {}]
  %s4 = sld [smem:[#allocation0]]
  $region30: #{tpu_custom_call.1} parent=0
    _
  %s6 = ssub.s32 1, %s4
  %s7 = scalar_select 0, %s6, %s4
  $region1: #{tpu_custom_call.1} parent=0
    #allocation2 [shape = 'u8[524288]{0}', space=vmem, size = 0x80000, scoped, tag = 'input window, operand 0, single buffered']
    #allocation3 [shape = 's32[1]{0}', space=sflag, size = 0x4, scoped, tag = 'scoped memory for tpu_custom_call.1']
    #allocation4 [shape = 's32[1]{0}', space=sflag, size = 0x4, scoped, tag = 'scoped memory for tpu_custom_call.1']
    #allocation5 [shape = 'u8[32768]{0}', space=vmem, size = 0x8000, scoped, tag = 'input window, operand 1, single buffered']
    #allocation6 [shape = 's32[1]{0}', space=sflag, size = 0x4, scoped, tag = 'scoped memory for tpu_custom_call.1']
    #allocation7 [shape = 'u8[262144]{0}', space=vmem, size = 0x40000, scoped, tag = 'output window, operand 0, single buffered']
    %8 = vsyncpa [#allocation3], 0
    %9 = vsyncpa [#allocation6], 0
    %10 = vsyncpa [#allocation4], 0
    // Predicated region
    $region2: #{tpu_custom_call.1} parent=1 // pred_check
      _
    $region3: #{tpu_custom_call.1} parent=1 // pred_check_branch
      %12 = sbr.rel (0) target = $region5
    $region4: #{tpu_custom_call.1} parent=1 // pred_region
      %s14 = ssub.s32 16384, 16384
      %15 = vsyncadd [#allocation3], %s14
      %s16 = sshll.u32 [#allocation2], 4
      %s17 = int_to_ptr.vmem [resolvable:$true] %s16
      %22 = dma.hbm_to_vmem [thread:$0]  %s0, 16384, %s17, [#allocation3], 64, 64, 4
    $region5: #{tpu_custom_call.1} parent=1 // pred_fallthru
      _
    // Predicated region
    $region6: #{tpu_custom_call.1} parent=1 // pred_check
      _
    $region7: #{tpu_custom_call.1} parent=1 // pred_check_branch
      %24 = sbr.rel (0) target = $region9
    $region8: #{tpu_custom_call.1} parent=1 // pred_region
      %s26 = ssub.s32 1024, 1024
      %27 = vsyncadd [#allocation6], %s26
      %s28 = sshll.u32 [#allocation5], 4
      %s29 = int_to_ptr.vmem [resolvable:$true] %s28
      %34 = dma.hbm_to_vmem [thread:$0]  %s1, 1024, %s29, [#allocation6], 64, 64, 4
    $region9: #{tpu_custom_call.1} parent=1 // pred_fallthru
      _
    // Predicated region
    $region10: #{tpu_custom_call.1} parent=1 // pred_check
      _
    $region11: #{tpu_custom_call.1} parent=1 // pred_check_branch
      %36 = sbr.rel (0) target = $region13
    $region12: #{tpu_custom_call.1} parent=1 // pred_region
      _
    $region13: #{tpu_custom_call.1} parent=1 // pred_fallthru
      _
    // Predicated region
    $region14: #{tpu_custom_call.1} parent=1 // pred_check
      _
    $region15: #{tpu_custom_call.1} parent=1 // pred_check_branch
      %38 = sbr.rel (0) target = $region17
    $region16: #{tpu_custom_call.1} parent=1 // pred_region
      %39 = dma.done [#allocation3], 16384
    $region17: #{tpu_custom_call.1} parent=1 // pred_fallthru
      _
    // Predicated region
    $region18: #{tpu_custom_call.1} parent=1 // pred_check
      _
    $region19: #{tpu_custom_call.1} parent=1 // pred_check_branch
      %41 = sbr.rel (0) target = $region21
    $region20: #{tpu_custom_call.1} parent=1 // pred_region
      %42 = dma.done [#allocation6], 1024
    $region21: #{tpu_custom_call.1} parent=1 // pred_fallthru
      _
    %v44 = vld [vmem:[#allocation2] sm:$0xf]
    %v45 = vld [vmem:[#allocation2 + $0x4] sm:$0xf]
    %v46 = vld [vmem:[#allocation2 + $0x8] sm:$0xf]
    %v47 = vld [vmem:[#allocation2 + $0xc] sm:$0xf]
    %v48 = vld [vmem:[#allocation2 + $0x10] sm:$0xf]
    %v49 = vld [vmem:[#allocation2 + $0x14] sm:$0xf]
    %v50 = vld [vmem:[#allocation2 + $0x18] sm:$0xf]
    %v51 = vld [vmem:[#allocation2 + $0x1c] sm:$0xf]
    %v52 = vld [vmem:[#allocation2 + $0x20] sm:$0xf]
    %v53 = vld [vmem:[#allocation2 + $0x24] sm:$0xf]
    %v54 = vld [vmem:[#allocation2 + $0x28] sm:$0xf]
    %v55 = vld [vmem:[#allocation2 + $0x2c] sm:$0xf]
    %v56 = vld [vmem:[#allocation2 + $0x30] sm:$0xf]
    %v57 = vld [vmem:[#allocation2 + $0x34] sm:$0xf]
    %v58 = vld [vmem:[#allocation2 + $0x38] sm:$0xf]
    %v59 = vld [vmem:[#allocation2 + $0x3c] sm:$0xf]
    %v60 = vld [vmem:[#allocation2 + $0x40] sm:$0xf]
    %v61 = vld [vmem:[#allocation2 + $0x44] sm:$0xf]
    %v62 = vld [vmem:[#allocation2 + $0x48] sm:$0xf]
    %v63 = vld [vmem:[#allocation2 + $0x4c] sm:$0xf]
    %v64 = vld [vmem:[#allocation2 + $0x50] sm:$0xf]
    %v65 = vld [vmem:[#allocation2 + $0x54] sm:$0xf]
    %v66 = vld [vmem:[#allocation2 + $0x58] sm:$0xf]
    %v67 = vld [vmem:[#allocation2 + $0x5c] sm:$0xf]
    %v68 = vld [vmem:[#allocation2 + $0x60] sm:$0xf]
    %v69 = vld [vmem:[#allocation2 + $0x64] sm:$0xf]
    %v70 = vld [vmem:[#allocation2 + $0x68] sm:$0xf]
    %v71 = vld [vmem:[#allocation2 + $0x6c] sm:$0xf]
    %v72 = vld [vmem:[#allocation2 + $0x70] sm:$0xf]
    %v73 = vld [vmem:[#allocation2 + $0x74] sm:$0xf]
    %v74 = vld [vmem:[#allocation2 + $0x78] sm:$0xf]
    %v75 = vld [vmem:[#allocation2 + $0x7c] sm:$0xf]
    %v76 = vld [vmem:[#allocation2 + $0x80] sm:$0xf]
    %v77 = vld [vmem:[#allocation2 + $0x84] sm:$0xf]
    %v78 = vld [vmem:[#allocation2 + $0x88] sm:$0xf]
    %v79 = vld [vmem:[#allocation2 + $0x8c] sm:$0xf]
    %v80 = vld [vmem:[#allocation2 + $0x90] sm:$0xf]
    %v81 = vld [vmem:[#allocation2 + $0x94] sm:$0xf]
    %v82 = vld [vmem:[#allocation2 + $0x98] sm:$0xf]
    %v83 = vld [vmem:[#allocation2 + $0x9c] sm:$0xf]
    %v84 = vld [vmem:[#allocation2 + $0xa0] sm:$0xf]
    %v85 = vld [vmem:[#allocation2 + $0xa4] sm:$0xf]
    %v86 = vld [vmem:[#allocation2 + $0xa8] sm:$0xf]
    %v87 = vld [vmem:[#allocation2 + $0xac] sm:$0xf]
    %v88 = vld [vmem:[#allocation2 + $0xb0] sm:$0xf]
    %v89 = vld [vmem:[#allocation2 + $0xb4] sm:$0xf]
    %v90 = vld [vmem:[#allocation2 + $0xb8] sm:$0xf]
    %v91 = vld [vmem:[#allocation2 + $0xbc] sm:$0xf]
    %v92 = vld [vmem:[#allocation2 + $0xc0] sm:$0xf]
    %v93 = vld [vmem:[#allocation2 + $0xc4] sm:$0xf]
    %v94 = vld [vmem:[#allocation2 + $0xc8] sm:$0xf]
    %v95 = vld [vmem:[#allocation2 + $0xcc] sm:$0xf]
    %v96 = vld [vmem:[#allocation2 + $0xd0] sm:$0xf]
    %v97 = vld [vmem:[#allocation2 + $0xd4] sm:$0xf]
    %v98 = vld [vmem:[#allocation2 + $0xd8] sm:$0xf]
    %v99 = vld [vmem:[#allocation2 + $0xdc] sm:$0xf]
    %v100 = vld [vmem:[#allocation2 + $0xe0] sm:$0xf]
    %v101 = vld [vmem:[#allocation2 + $0xe4] sm:$0xf]
    %v102 = vld [vmem:[#allocation2 + $0xe8] sm:$0xf]
    %v103 = vld [vmem:[#allocation2 + $0xec] sm:$0xf]
    %v104 = vld [vmem:[#allocation2 + $0xf0] sm:$0xf]
    %v105 = vld [vmem:[#allocation2 + $0xf4] sm:$0xf]
    %v106 = vld [vmem:[#allocation2 + $0xf8] sm:$0xf]
    %v107 = vld [vmem:[#allocation2 + $0xfc] sm:$0xf]
    %v108 = vld [vmem:[#allocation2 + $0x100] sm:$0xf]
    %v109 = vld [vmem:[#allocation2 + $0x104] sm:$0xf]
    %v110 = vld [vmem:[#allocation2 + $0x108] sm:$0xf]
    %v111 = vld [vmem:[#allocation2 + $0x10c] sm:$0xf]
    %v112 = vld [vmem:[#allocation2 + $0x110] sm:$0xf]
    %v113 = vld [vmem:[#allocation2 + $0x114] sm:$0xf]
    %v114 = vld [vmem:[#allocation2 + $0x118] sm:$0xf]
    %v115 = vld [vmem:[#allocation2 + $0x11c] sm:$0xf]
    %v116 = vld [vmem:[#allocation2 + $0x120] sm:$0xf]
    %v117 = vld [vmem:[#allocation2 + $0x124] sm:$0xf]
    %v118 = vld [vmem:[#allocation2 + $0x128] sm:$0xf]
    %v119 = vld [vmem:[#allocation2 + $0x12c] sm:$0xf]
    %v120 = vld [vmem:[#allocation2 + $0x130] sm:$0xf]
    %v121 = vld [vmem:[#allocation2 + $0x134] sm:$0xf]
    %v122 = vld [vmem:[#allocation2 + $0x138] sm:$0xf]
    %v123 = vld [vmem:[#allocation2 + $0x13c] sm:$0xf]
    %v124 = vld [vmem:[#allocation2 + $0x140] sm:$0xf]
    %v125 = vld [vmem:[#allocation2 + $0x144] sm:$0xf]
    %v126 = vld [vmem:[#allocation2 + $0x148] sm:$0xf]
    %v127 = vld [vmem:[#allocation2 + $0x14c] sm:$0xf]
    %v128 = vld [vmem:[#allocation2 + $0x150] sm:$0xf]
    %v129 = vld [vmem:[#allocation2 + $0x154] sm:$0xf]
    %v130 = vld [vmem:[#allocation2 + $0x158] sm:$0xf]
    %v131 = vld [vmem:[#allocation2 + $0x15c] sm:$0xf]
    %v132 = vld [vmem:[#allocation2 + $0x160] sm:$0xf]
    %v133 = vld [vmem:[#allocation2 + $0x164] sm:$0xf]
    %v134 = vld [vmem:[#allocation2 + $0x168] sm:$0xf]
    %v135 = vld [vmem:[#allocation2 + $0x16c] sm:$0xf]
    %v136 = vld [vmem:[#allocation2 + $0x170] sm:$0xf]
    %v137 = vld [vmem:[#allocation2 + $0x174] sm:$0xf]
    %v138 = vld [vmem:[#allocation2 + $0x178] sm:$0xf]
    %v139 = vld [vmem:[#allocation2 + $0x17c] sm:$0xf]
    %v140 = vld [vmem:[#allocation2 + $0x180] sm:$0xf]
    %v141 = vld [vmem:[#allocation2 + $0x184] sm:$0xf]
    %v142 = vld [vmem:[#allocation2 + $0x188] sm:$0xf]
    %v143 = vld [vmem:[#allocation2 + $0x18c] sm:$0xf]
    %v144 = vld [vmem:[#allocation2 + $0x190] sm:$0xf]
    %v145 = vld [vmem:[#allocation2 + $0x194] sm:$0xf]
    %v146 = vld [vmem:[#allocation2 + $0x198] sm:$0xf]
    %v147 = vld [vmem:[#allocation2 + $0x19c] sm:$0xf]
    %v148 = vld [vmem:[#allocation2 + $0x1a0] sm:$0xf]
    %v149 = vld [vmem:[#allocation2 + $0x1a4] sm:$0xf]
    %v150 = vld [vmem:[#allocation2 + $0x1a8] sm:$0xf]
    %v151 = vld [vmem:[#allocation2 + $0x1ac] sm:$0xf]
    %v152 = vld [vmem:[#allocation2 + $0x1b0] sm:$0xf]
    %v153 = vld [vmem:[#allocation2 + $0x1b4] sm:$0xf]
    %v154 = vld [vmem:[#allocation2 + $0x1b8] sm:$0xf]
    %v155 = vld [vmem:[#allocation2 + $0x1bc] sm:$0xf]
    %v156 = vld [vmem:[#allocation2 + $0x1c0] sm:$0xf]
    %v157 = vld [vmem:[#allocation2 + $0x1c4] sm:$0xf]
    %v158 = vld [vmem:[#allocation2 + $0x1c8] sm:$0xf]
    %v159 = vld [vmem:[#allocation2 + $0x1cc] sm:$0xf]
    %v160 = vld [vmem:[#allocation2 + $0x1d0] sm:$0xf]
    %v161 = vld [vmem:[#allocation2 + $0x1d4] sm:$0xf]
    %v162 = vld [vmem:[#allocation2 + $0x1d8] sm:$0xf]
    %v163 = vld [vmem:[#allocation2 + $0x1dc] sm:$0xf]
    %v164 = vld [vmem:[#allocation2 + $0x1e0] sm:$0xf]
    %v165 = vld [vmem:[#allocation2 + $0x1e4] sm:$0xf]
    %v166 = vld [vmem:[#allocation2 + $0x1e8] sm:$0xf]
    %v167 = vld [vmem:[#allocation2 + $0x1ec] sm:$0xf]
    %v168 = vld [vmem:[#allocation2 + $0x1f0] sm:$0xf]
    %v169 = vld [vmem:[#allocation2 + $0x1f4] sm:$0xf]
    %v170 = vld [vmem:[#allocation2 + $0x1f8] sm:$0xf]
    %v171 = vld [vmem:[#allocation2 + $0x1fc] sm:$0xf]
    %v172 = vld [vmem:[#allocation2 + $0x200] sm:$0xf]
    %v173 = vld [vmem:[#allocation2 + $0x204] sm:$0xf]
    %v174 = vld [vmem:[#allocation2 + $0x208] sm:$0xf]
    %v175 = vld [vmem:[#allocation2 + $0x20c] sm:$0xf]
    %v176 = vld [vmem:[#allocation2 + $0x210] sm:$0xf]
    %v177 = vld [vmem:[#allocation2 + $0x214] sm:$0xf]
    %v178 = vld [vmem:[#allocation2 + $0x218] sm:$0xf]
    %v179 = vld [vmem:[#allocation2 + $0x21c] sm:$0xf]
    %v180 = vld [vmem:[#allocation2 + $0x220] sm:$0xf]
    %v181 = vld [vmem:[#allocation2 + $0x224] sm:$0xf]
    %v182 = vld [vmem:[#allocation2 + $0x228] sm:$0xf]
    %v183 = vld [vmem:[#allocation2 + $0x22c] sm:$0xf]
    %v184 = vld [vmem:[#allocation2 + $0x230] sm:$0xf]
    %v185 = vld [vmem:[#allocation2 + $0x234] sm:$0xf]
    %v186 = vld [vmem:[#allocation2 + $0x238] sm:$0xf]
    %v187 = vld [vmem:[#allocation2 + $0x23c] sm:$0xf]
    %v188 = vld [vmem:[#allocation2 + $0x240] sm:$0xf]
    %v189 = vld [vmem:[#allocation2 + $0x244] sm:$0xf]
    %v190 = vld [vmem:[#allocation2 + $0x248] sm:$0xf]
    %v191 = vld [vmem:[#allocation2 + $0x24c] sm:$0xf]
    %v192 = vld [vmem:[#allocation2 + $0x250] sm:$0xf]
    %v193 = vld [vmem:[#allocation2 + $0x254] sm:$0xf]
    %v194 = vld [vmem:[#allocation2 + $0x258] sm:$0xf]
    %v195 = vld [vmem:[#allocation2 + $0x25c] sm:$0xf]
    %v196 = vld [vmem:[#allocation2 + $0x260] sm:$0xf]
    %v197 = vld [vmem:[#allocation2 + $0x264] sm:$0xf]
    %v198 = vld [vmem:[#allocation2 + $0x268] sm:$0xf]
    %v199 = vld [vmem:[#allocation2 + $0x26c] sm:$0xf]
    %v200 = vld [vmem:[#allocation2 + $0x270] sm:$0xf]
    %v201 = vld [vmem:[#allocation2 + $0x274] sm:$0xf]
    %v202 = vld [vmem:[#allocation2 + $0x278] sm:$0xf]
    %v203 = vld [vmem:[#allocation2 + $0x27c] sm:$0xf]
    %v204 = vld [vmem:[#allocation2 + $0x280] sm:$0xf]
    %v205 = vld [vmem:[#allocation2 + $0x284] sm:$0xf]
    %v206 = vld [vmem:[#allocation2 + $0x288] sm:$0xf]
    %v207 = vld [vmem:[#allocation2 + $0x28c] sm:$0xf]
    %v208 = vld [vmem:[#allocation2 + $0x290] sm:$0xf]
    %v209 = vld [vmem:[#allocation2 + $0x294] sm:$0xf]
    %v210 = vld [vmem:[#allocation2 + $0x298] sm:$0xf]
    %v211 = vld [vmem:[#allocation2 + $0x29c] sm:$0xf]
    %v212 = vld [vmem:[#allocation2 + $0x2a0] sm:$0xf]
    %v213 = vld [vmem:[#allocation2 + $0x2a4] sm:$0xf]
    %v214 = vld [vmem:[#allocation2 + $0x2a8] sm:$0xf]
    %v215 = vld [vmem:[#allocation2 + $0x2ac] sm:$0xf]
    %v216 = vld [vmem:[#allocation2 + $0x2b0] sm:$0xf]
    %v217 = vld [vmem:[#allocation2 + $0x2b4] sm:$0xf]
    %v218 = vld [vmem:[#allocation2 + $0x2b8] sm:$0xf]
    %v219 = vld [vmem:[#allocation2 + $0x2bc] sm:$0xf]
    %v220 = vld [vmem:[#allocation2 + $0x2c0] sm:$0xf]
    %v221 = vld [vmem:[#allocation2 + $0x2c4] sm:$0xf]
    %v222 = vld [vmem:[#allocation2 + $0x2c8] sm:$0xf]
    %v223 = vld [vmem:[#allocation2 + $0x2cc] sm:$0xf]
    %v224 = vld [vmem:[#allocation2 + $0x2d0] sm:$0xf]
    %v225 = vld [vmem:[#allocation2 + $0x2d4] sm:$0xf]
    %v226 = vld [vmem:[#allocation2 + $0x2d8] sm:$0xf]
    %v227 = vld [vmem:[#allocation2 + $0x2dc] sm:$0xf]
    %v228 = vld [vmem:[#allocation2 + $0x2e0] sm:$0xf]
    %v229 = vld [vmem:[#allocation2 + $0x2e4] sm:$0xf]
    %v230 = vld [vmem:[#allocation2 + $0x2e8] sm:$0xf]
    %v231 = vld [vmem:[#allocation2 + $0x2ec] sm:$0xf]
    %v232 = vld [vmem:[#allocation2 + $0x2f0] sm:$0xf]
    %v233 = vld [vmem:[#allocation2 + $0x2f4] sm:$0xf]
    %v234 = vld [vmem:[#allocation2 + $0x2f8] sm:$0xf]
    %v235 = vld [vmem:[#allocation2 + $0x2fc] sm:$0xf]
    %v236 = vld [vmem:[#allocation2 + $0x300] sm:$0xf]
    %v237 = vld [vmem:[#allocation2 + $0x304] sm:$0xf]
    %v238 = vld [vmem:[#allocation2 + $0x308] sm:$0xf]
    %v239 = vld [vmem:[#allocation2 + $0x30c] sm:$0xf]
    %v240 = vld [vmem:[#allocation2 + $0x310] sm:$0xf]
    %v241 = vld [vmem:[#allocation2 + $0x314] sm:$0xf]
    %v242 = vld [vmem:[#allocation2 + $0x318] sm:$0xf]
    %v243 = vld [vmem:[#allocation2 + $0x31c] sm:$0xf]
    %v244 = vld [vmem:[#allocation2 + $0x320] sm:$0xf]
    %v245 = vld [vmem:[#allocation2 + $0x324] sm:$0xf]
    %v246 = vld [vmem:[#allocation2 + $0x328] sm:$0xf]
    %v247 = vld [vmem:[#allocation2 + $0x32c] sm:$0xf]
    %v248 = vld [vmem:[#allocation2 + $0x330] sm:$0xf]
    %v249 = vld [vmem:[#allocation2 + $0x334] sm:$0xf]
    %v250 = vld [vmem:[#allocation2 + $0x338] sm:$0xf]
    %v251 = vld [vmem:[#allocation2 + $0x33c] sm:$0xf]
    %v252 = vld [vmem:[#allocation2 + $0x340] sm:$0xf]
    %v253 = vld [vmem:[#allocation2 + $0x344] sm:$0xf]
    %v254 = vld [vmem:[#allocation2 + $0x348] sm:$0xf]
    %v255 = vld [vmem:[#allocation2 + $0x34c] sm:$0xf]
    %v256 = vld [vmem:[#allocation2 + $0x350] sm:$0xf]
    %v257 = vld [vmem:[#allocation2 + $0x354] sm:$0xf]
    %v258 = vld [vmem:[#allocation2 + $0x358] sm:$0xf]
    %v259 = vld [vmem:[#allocation2 + $0x35c] sm:$0xf]
    %v260 = vld [vmem:[#allocation2 + $0x360] sm:$0xf]
    %v261 = vld [vmem:[#allocation2 + $0x364] sm:$0xf]
    %v262 = vld [vmem:[#allocation2 + $0x368] sm:$0xf]
    %v263 = vld [vmem:[#allocation2 + $0x36c] sm:$0xf]
    %v264 = vld [vmem:[#allocation2 + $0x370] sm:$0xf]
    %v265 = vld [vmem:[#allocation2 + $0x374] sm:$0xf]
    %v266 = vld [vmem:[#allocation2 + $0x378] sm:$0xf]
    %v267 = vld [vmem:[#allocation2 + $0x37c] sm:$0xf]
    %v268 = vld [vmem:[#allocation2 + $0x380] sm:$0xf]
    %v269 = vld [vmem:[#allocation2 + $0x384] sm:$0xf]
    %v270 = vld [vmem:[#allocation2 + $0x388] sm:$0xf]
    %v271 = vld [vmem:[#allocation2 + $0x38c] sm:$0xf]
    %v272 = vld [vmem:[#allocation2 + $0x390] sm:$0xf]
    %v273 = vld [vmem:[#allocation2 + $0x394] sm:$0xf]
    %v274 = vld [vmem:[#allocation2 + $0x398] sm:$0xf]
    %v275 = vld [vmem:[#allocation2 + $0x39c] sm:$0xf]
    %v276 = vld [vmem:[#allocation2 + $0x3a0] sm:$0xf]
    %v277 = vld [vmem:[#allocation2 + $0x3a4] sm:$0xf]
    %v278 = vld [vmem:[#allocation2 + $0x3a8] sm:$0xf]
    %v279 = vld [vmem:[#allocation2 + $0x3ac] sm:$0xf]
    %v280 = vld [vmem:[#allocation2 + $0x3b0] sm:$0xf]
    %v281 = vld [vmem:[#allocation2 + $0x3b4] sm:$0xf]
    %v282 = vld [vmem:[#allocation2 + $0x3b8] sm:$0xf]
    %v283 = vld [vmem:[#allocation2 + $0x3bc] sm:$0xf]
    %v284 = vld [vmem:[#allocation2 + $0x3c0] sm:$0xf]
    %v285 = vld [vmem:[#allocation2 + $0x3c4] sm:$0xf]
    %v286 = vld [vmem:[#allocation2 + $0x3c8] sm:$0xf]
    %v287 = vld [vmem:[#allocation2 + $0x3cc] sm:$0xf]
    %v288 = vld [vmem:[#allocation2 + $0x3d0] sm:$0xf]
    %v289 = vld [vmem:[#allocation2 + $0x3d4] sm:$0xf]
    %v290 = vld [vmem:[#allocation2 + $0x3d8] sm:$0xf]
    %v291 = vld [vmem:[#allocation2 + $0x3dc] sm:$0xf]
    %v292 = vld [vmem:[#allocation2 + $0x3e0] sm:$0xf]
    %v293 = vld [vmem:[#allocation2 + $0x3e4] sm:$0xf]
    %v294 = vld [vmem:[#allocation2 + $0x3e8] sm:$0xf]
    %v295 = vld [vmem:[#allocation2 + $0x3ec] sm:$0xf]
    %v296 = vld [vmem:[#allocation2 + $0x3f0] sm:$0xf]
    %v297 = vld [vmem:[#allocation2 + $0x3f4] sm:$0xf]
    %v298 = vld [vmem:[#allocation2 + $0x3f8] sm:$0xf]
    %v299 = vld [vmem:[#allocation2 + $0x3fc] sm:$0xf]
    %v300 = vld [vmem:[#allocation5] sm:$0xf]
    %v301 = vld [vmem:[#allocation5 + $0x4] sm:$0xf]
    %v302 = vld [vmem:[#allocation5 + $0x8] sm:$0xf]
    %v303 = vld [vmem:[#allocation5 + $0xc] sm:$0xf]
    %v304 = vld [vmem:[#allocation5 + $0x10] sm:$0xf]
    %v305 = vld [vmem:[#allocation5 + $0x14] sm:$0xf]
    %v306 = vld [vmem:[#allocation5 + $0x18] sm:$0xf]
    %v307 = vld [vmem:[#allocation5 + $0x1c] sm:$0xf]
    %v308 = vld [vmem:[#allocation5 + $0x20] sm:$0xf]
    %v309 = vld [vmem:[#allocation5 + $0x24] sm:$0xf]
    %v310 = vld [vmem:[#allocation5 + $0x28] sm:$0xf]
    %v311 = vld [vmem:[#allocation5 + $0x2c] sm:$0xf]
    %v312 = vld [vmem:[#allocation5 + $0x30] sm:$0xf]
    %v313 = vld [vmem:[#allocation5 + $0x34] sm:$0xf]
    %v314 = vld [vmem:[#allocation5 + $0x38] sm:$0xf]
    %v315 = vld [vmem:[#allocation5 + $0x3c] sm:$0xf]
    %v572 = vunpack.c.l.b16 %v44
    %v573 = vunpack.c.l.b16 %v45
    %v574 = vunpack.c.l.b16 %v46
    %v575 = vunpack.c.l.b16 %v47
    %v576 = vunpack.c.l.b16 %v48
    %v577 = vunpack.c.l.b16 %v49
    %v578 = vunpack.c.l.b16 %v50
    %v579 = vunpack.c.l.b16 %v51
    %v580 = vunpack.c.l.b16 %v52
    %v581 = vunpack.c.l.b16 %v53
    %v582 = vunpack.c.l.b16 %v54
    %v583 = vunpack.c.l.b16 %v55
    %v584 = vunpack.c.l.b16 %v56
    %v585 = vunpack.c.l.b16 %v57
    %v586 = vunpack.c.l.b16 %v58
    %v587 = vunpack.c.l.b16 %v59
    %v588 = vunpack.c.l.b16 %v60
    %v589 = vunpack.c.l.b16 %v61
    %v590 = vunpack.c.l.b16 %v62
    %v591 = vunpack.c.l.b16 %v63
    %v592 = vunpack.c.l.b16 %v64
    %v593 = vunpack.c.l.b16 %v65
    %v594 = vunpack.c.l.b16 %v66
    %v595 = vunpack.c.l.b16 %v67
    %v596 = vunpack.c.l.b16 %v68
    %v597 = vunpack.c.l.b16 %v69
    %v598 = vunpack.c.l.b16 %v70
    %v599 = vunpack.c.l.b16 %v71
    %v600 = vunpack.c.l.b16 %v72
    %v601 = vunpack.c.l.b16 %v73
    %v602 = vunpack.c.l.b16 %v74
    %v603 = vunpack.c.l.b16 %v75
    %v604 = vunpack.c.l.b16 %v76
    %v605 = vunpack.c.l.b16 %v77
    %v606 = vunpack.c.l.b16 %v78
    %v607 = vunpack.c.l.b16 %v79
    %v608 = vunpack.c.l.b16 %v80
    %v609 = vunpack.c.l.b16 %v81
    %v610 = vunpack.c.l.b16 %v82
    %v611 = vunpack.c.l.b16 %v83
    %v612 = vunpack.c.l.b16 %v84
    %v613 = vunpack.c.l.b16 %v85
    %v614 = vunpack.c.l.b16 %v86
    %v615 = vunpack.c.l.b16 %v87
    %v616 = vunpack.c.l.b16 %v88
    %v617 = vunpack.c.l.b16 %v89
    %v618 = vunpack.c.l.b16 %v90
    %v619 = vunpack.c.l.b16 %v91
    %v620 = vunpack.c.l.b16 %v92
    %v621 = vunpack.c.l.b16 %v93
    %v622 = vunpack.c.l.b16 %v94
    %v623 = vunpack.c.l.b16 %v95
    %v624 = vunpack.c.l.b16 %v96
    %v625 = vunpack.c.l.b16 %v97
    %v626 = vunpack.c.l.b16 %v98
    %v627 = vunpack.c.l.b16 %v99
    %v628 = vunpack.c.l.b16 %v100
    %v629 = vunpack.c.l.b16 %v101
    %v630 = vunpack.c.l.b16 %v102
    %v631 = vunpack.c.l.b16 %v103
    %v632 = vunpack.c.l.b16 %v104
    %v633 = vunpack.c.l.b16 %v105
    %v634 = vunpack.c.l.b16 %v106
    %v635 = vunpack.c.l.b16 %v107
    %v636 = vunpack.c.l.b16 %v108
    %v637 = vunpack.c.l.b16 %v109
    %v638 = vunpack.c.l.b16 %v110
    %v639 = vunpack.c.l.b16 %v111
    %v640 = vunpack.c.l.b16 %v112
    %v641 = vunpack.c.l.b16 %v113
    %v642 = vunpack.c.l.b16 %v114
    %v643 = vunpack.c.l.b16 %v115
    %v644 = vunpack.c.l.b16 %v116
    %v645 = vunpack.c.l.b16 %v117
    %v646 = vunpack.c.l.b16 %v118
    %v647 = vunpack.c.l.b16 %v119
    %v648 = vunpack.c.l.b16 %v120
    %v649 = vunpack.c.l.b16 %v121
    %v650 = vunpack.c.l.b16 %v122
    %v651 = vunpack.c.l.b16 %v123
    %v652 = vunpack.c.l.b16 %v124
    %v653 = vunpack.c.l.b16 %v125
    %v654 = vunpack.c.l.b16 %v126
    %v655 = vunpack.c.l.b16 %v127
    %v656 = vunpack.c.l.b16 %v128
    %v657 = vunpack.c.l.b16 %v129
    %v658 = vunpack.c.l.b16 %v130
    %v659 = vunpack.c.l.b16 %v131
    %v660 = vunpack.c.l.b16 %v132
    %v661 = vunpack.c.l.b16 %v133
    %v662 = vunpack.c.l.b16 %v134
    %v663 = vunpack.c.l.b16 %v135
    %v664 = vunpack.c.l.b16 %v136
    %v665 = vunpack.c.l.b16 %v137
    %v666 = vunpack.c.l.b16 %v138
    %v667 = vunpack.c.l.b16 %v139
    %v668 = vunpack.c.l.b16 %v140
    %v669 = vunpack.c.l.b16 %v141
    %v670 = vunpack.c.l.b16 %v142
    %v671 = vunpack.c.l.b16 %v143
    %v672 = vunpack.c.l.b16 %v144
    %v673 = vunpack.c.l.b16 %v145
    %v674 = vunpack.c.l.b16 %v146
    %v675 = vunpack.c.l.b16 %v147
    %v676 = vunpack.c.l.b16 %v148
    %v677 = vunpack.c.l.b16 %v149
    %v678 = vunpack.c.l.b16 %v150
    %v679 = vunpack.c.l.b16 %v151
    %v680 = vunpack.c.l.b16 %v152
    %v681 = vunpack.c.l.b16 %v153
    %v682 = vunpack.c.l.b16 %v154
    %v683 = vunpack.c.l.b16 %v155
    %v684 = vunpack.c.l.b16 %v156
    %v685 = vunpack.c.l.b16 %v157
    %v686 = vunpack.c.l.b16 %v158
    %v687 = vunpack.c.l.b16 %v159
    %v688 = vunpack.c.l.b16 %v160
    %v689 = vunpack.c.l.b16 %v161
    %v690 = vunpack.c.l.b16 %v162
    %v691 = vunpack.c.l.b16 %v163
    %v692 = vunpack.c.l.b16 %v164
    %v693 = vunpack.c.l.b16 %v165
    %v694 = vunpack.c.l.b16 %v166
    %v695 = vunpack.c.l.b16 %v167
    %v696 = vunpack.c.l.b16 %v168
    %v697 = vunpack.c.l.b16 %v169
    %v698 = vunpack.c.l.b16 %v170
    %v699 = vunpack.c.l.b16 %v171
    %v700 = vunpack.c.l.b16 %v172
    %v701 = vunpack.c.l.b16 %v173
    %v702 = vunpack.c.l.b16 %v174
    %v703 = vunpack.c.l.b16 %v175
    %v704 = vunpack.c.l.b16 %v176
    %v705 = vunpack.c.l.b16 %v177
    %v706 = vunpack.c.l.b16 %v178
    %v707 = vunpack.c.l.b16 %v179
    %v708 = vunpack.c.l.b16 %v180
    %v709 = vunpack.c.l.b16 %v181
    %v710 = vunpack.c.l.b16 %v182
    %v711 = vunpack.c.l.b16 %v183
    %v712 = vunpack.c.l.b16 %v184
    %v713 = vunpack.c.l.b16 %v185
    %v714 = vunpack.c.l.b16 %v186
    %v715 = vunpack.c.l.b16 %v187
    %v716 = vunpack.c.l.b16 %v188
    %v717 = vunpack.c.l.b16 %v189
    %v718 = vunpack.c.l.b16 %v190
    %v719 = vunpack.c.l.b16 %v191
    %v720 = vunpack.c.l.b16 %v192
    %v721 = vunpack.c.l.b16 %v193
    %v722 = vunpack.c.l.b16 %v194
    %v723 = vunpack.c.l.b16 %v195
    %v724 = vunpack.c.l.b16 %v196
    %v725 = vunpack.c.l.b16 %v197
    %v726 = vunpack.c.l.b16 %v198
    %v727 = vunpack.c.l.b16 %v199
    %v728 = vunpack.c.l.b16 %v200
    %v729 = vunpack.c.l.b16 %v201
    %v730 = vunpack.c.l.b16 %v202
    %v731 = vunpack.c.l.b16 %v203
    %v732 = vunpack.c.l.b16 %v204
    %v733 = vunpack.c.l.b16 %v205
    %v734 = vunpack.c.l.b16 %v206
    %v735 = vunpack.c.l.b16 %v207
    %v736 = vunpack.c.l.b16 %v208
    %v737 = vunpack.c.l.b16 %v209
    %v738 = vunpack.c.l.b16 %v210
    %v739 = vunpack.c.l.b16 %v211
    %v740 = vunpack.c.l.b16 %v212
    %v741 = vunpack.c.l.b16 %v213
    %v742 = vunpack.c.l.b16 %v214
    %v743 = vunpack.c.l.b16 %v215
    %v744 = vunpack.c.l.b16 %v216
    %v745 = vunpack.c.l.b16 %v217
    %v746 = vunpack.c.l.b16 %v218
    %v747 = vunpack.c.l.b16 %v219
    %v748 = vunpack.c.l.b16 %v220
    %v749 = vunpack.c.l.b16 %v221
    %v750 = vunpack.c.l.b16 %v222
    %v751 = vunpack.c.l.b16 %v223
    %v752 = vunpack.c.l.b16 %v224
    %v753 = vunpack.c.l.b16 %v225
    %v754 = vunpack.c.l.b16 %v226
    %v755 = vunpack.c.l.b16 %v227
    %v756 = vunpack.c.l.b16 %v228
    %v757 = vunpack.c.l.b16 %v229
    %v758 = vunpack.c.l.b16 %v230
    %v759 = vunpack.c.l.b16 %v231
    %v760 = vunpack.c.l.b16 %v232
    %v761 = vunpack.c.l.b16 %v233
    %v762 = vunpack.c.l.b16 %v234
    %v763 = vunpack.c.l.b16 %v235
    %v764 = vunpack.c.l.b16 %v236
    %v765 = vunpack.c.l.b16 %v237
    %v766 = vunpack.c.l.b16 %v238
    %v767 = vunpack.c.l.b16 %v239
    %v768 = vunpack.c.l.b16 %v240
    %v769 = vunpack.c.l.b16 %v241
    %v770 = vunpack.c.l.b16 %v242
    %v771 = vunpack.c.l.b16 %v243
    %v772 = vunpack.c.l.b16 %v244
    %v773 = vunpack.c.l.b16 %v245
    %v774 = vunpack.c.l.b16 %v246
    %v775 = vunpack.c.l.b16 %v247
    %v776 = vunpack.c.l.b16 %v248
    %v777 = vunpack.c.l.b16 %v249
    %v778 = vunpack.c.l.b16 %v250
    %v779 = vunpack.c.l.b16 %v251
    %v780 = vunpack.c.l.b16 %v252
    %v781 = vunpack.c.l.b16 %v253
    %v782 = vunpack.c.l.b16 %v254
    %v783 = vunpack.c.l.b16 %v255
    %v784 = vunpack.c.l.b16 %v256
    %v785 = vunpack.c.l.b16 %v257
    %v786 = vunpack.c.l.b16 %v258
    %v787 = vunpack.c.l.b16 %v259
    %v788 = vunpack.c.l.b16 %v260
    %v789 = vunpack.c.l.b16 %v261
    %v790 = vunpack.c.l.b16 %v262
    %v791 = vunpack.c.l.b16 %v263
    %v792 = vunpack.c.l.b16 %v264
    %v793 = vunpack.c.l.b16 %v265
    %v794 = vunpack.c.l.b16 %v266
    %v795 = vunpack.c.l.b16 %v267
    %v796 = vunpack.c.l.b16 %v268
    %v797 = vunpack.c.l.b16 %v269
    %v798 = vunpack.c.l.b16 %v270
    %v799 = vunpack.c.l.b16 %v271
    %v800 = vunpack.c.l.b16 %v272
    %v801 = vunpack.c.l.b16 %v273
    %v802 = vunpack.c.l.b16 %v274
    %v803 = vunpack.c.l.b16 %v275
    %v804 = vunpack.c.l.b16 %v276
    %v805 = vunpack.c.l.b16 %v277
    %v806 = vunpack.c.l.b16 %v278
    %v807 = vunpack.c.l.b16 %v279
    %v808 = vunpack.c.l.b16 %v280
    %v809 = vunpack.c.l.b16 %v281
    %v810 = vunpack.c.l.b16 %v282
    %v811 = vunpack.c.l.b16 %v283
    %v812 = vunpack.c.l.b16 %v284
    %v813 = vunpack.c.l.b16 %v285
    %v814 = vunpack.c.l.b16 %v286
    %v815 = vunpack.c.l.b16 %v287
    %v816 = vunpack.c.l.b16 %v288
    %v817 = vunpack.c.l.b16 %v289
    %v818 = vunpack.c.l.b16 %v290
    %v819 = vunpack.c.l.b16 %v291
    %v820 = vunpack.c.l.b16 %v292
    %v821 = vunpack.c.l.b16 %v293
    %v822 = vunpack.c.l.b16 %v294
    %v823 = vunpack.c.l.b16 %v295
    %v824 = vunpack.c.l.b16 %v296
    %v825 = vunpack.c.l.b16 %v297
    %v826 = vunpack.c.l.b16 %v298
    %v827 = vunpack.c.l.b16 %v299
    %v828 = vpack.c.b16 %v573, %v572
    %v829 = vpack.c.b16 %v575, %v574
    %v830 = vpack.c.b16 %v577, %v576
    %v831 = vpack.c.b16 %v579, %v578
    %v832 = vpack.c.b16 %v581, %v580
    %v833 = vpack.c.b16 %v583, %v582
    %v834 = vpack.c.b16 %v585, %v584
    %v835 = vpack.c.b16 %v587, %v586
    %v836 = vpack.c.b16 %v589, %v588
    %v837 = vpack.c.b16 %v591, %v590
    %v838 = vpack.c.b16 %v593, %v592
    %v839 = vpack.c.b16 %v595, %v594
    %v840 = vpack.c.b16 %v597, %v596
    %v841 = vpack.c.b16 %v599, %v598
    %v842 = vpack.c.b16 %v601, %v600
    %v843 = vpack.c.b16 %v603, %v602
    %v844 = vpack.c.b16 %v605, %v604
    %v845 = vpack.c.b16 %v607, %v606
    %v846 = vpack.c.b16 %v609, %v608
    %v847 = vpack.c.b16 %v611, %v610
    %v848 = vpack.c.b16 %v613, %v612
    %v849 = vpack.c.b16 %v615, %v614
    %v850 = vpack.c.b16 %v617, %v616
    %v851 = vpack.c.b16 %v619, %v618
    %v852 = vpack.c.b16 %v621, %v620
    %v853 = vpack.c.b16 %v623, %v622
    %v854 = vpack.c.b16 %v625, %v624
    %v855 = vpack.c.b16 %v627, %v626
    %v856 = vpack.c.b16 %v629, %v628
    %v857 = vpack.c.b16 %v631, %v630
    %v858 = vpack.c.b16 %v633, %v632
    %v859 = vpack.c.b16 %v635, %v634
    %v860 = vpack.c.b16 %v637, %v636
    %v861 = vpack.c.b16 %v639, %v638
    %v862 = vpack.c.b16 %v641, %v640
    %v863 = vpack.c.b16 %v643, %v642
    %v864 = vpack.c.b16 %v645, %v644
    %v865 = vpack.c.b16 %v647, %v646
    %v866 = vpack.c.b16 %v649, %v648
    %v867 = vpack.c.b16 %v651, %v650
    %v868 = vpack.c.b16 %v653, %v652
    %v869 = vpack.c.b16 %v655, %v654
    %v870 = vpack.c.b16 %v657, %v656
    %v871 = vpack.c.b16 %v659, %v658
    %v872 = vpack.c.b16 %v661, %v660
    %v873 = vpack.c.b16 %v663, %v662
    %v874 = vpack.c.b16 %v665, %v664
    %v875 = vpack.c.b16 %v667, %v666
    %v876 = vpack.c.b16 %v669, %v668
    %v877 = vpack.c.b16 %v671, %v670
    %v878 = vpack.c.b16 %v673, %v672
    %v879 = vpack.c.b16 %v675, %v674
    %v880 = vpack.c.b16 %v677, %v676
    %v881 = vpack.c.b16 %v679, %v678
    %v882 = vpack.c.b16 %v681, %v680
    %v883 = vpack.c.b16 %v683, %v682
    %v884 = vpack.c.b16 %v685, %v684
    %v885 = vpack.c.b16 %v687, %v686
    %v886 = vpack.c.b16 %v689, %v688
    %v887 = vpack.c.b16 %v691, %v690
    %v888 = vpack.c.b16 %v693, %v692
    %v889 = vpack.c.b16 %v695, %v694
    %v890 = vpack.c.b16 %v697, %v696
    %v891 = vpack.c.b16 %v699, %v698
    %v892 = vpack.c.b16 %v701, %v700
    %v893 = vpack.c.b16 %v703, %v702
    %v894 = vpack.c.b16 %v705, %v704
    %v895 = vpack.c.b16 %v707, %v706
    %v896 = vpack.c.b16 %v709, %v708
    %v897 = vpack.c.b16 %v711, %v710
    %v898 = vpack.c.b16 %v713, %v712
    %v899 = vpack.c.b16 %v715, %v714
    %v900 = vpack.c.b16 %v717, %v716
    %v901 = vpack.c.b16 %v719, %v718
    %v902 = vpack.c.b16 %v721, %v720
    %v903 = vpack.c.b16 %v723, %v722
    %v904 = vpack.c.b16 %v725, %v724
    %v905 = vpack.c.b16 %v727, %v726
    %v906 = vpack.c.b16 %v729, %v728
    %v907 = vpack.c.b16 %v731, %v730
    %v908 = vpack.c.b16 %v733, %v732
    %v909 = vpack.c.b16 %v735, %v734
    %v910 = vpack.c.b16 %v737, %v736
    %v911 = vpack.c.b16 %v739, %v738
    %v912 = vpack.c.b16 %v741, %v740
    %v913 = vpack.c.b16 %v743, %v742
    %v914 = vpack.c.b16 %v745, %v744
    %v915 = vpack.c.b16 %v747, %v746
    %v916 = vpack.c.b16 %v749, %v748
    %v917 = vpack.c.b16 %v751, %v750
    %v918 = vpack.c.b16 %v753, %v752
    %v919 = vpack.c.b16 %v755, %v754
    %v920 = vpack.c.b16 %v757, %v756
    %v921 = vpack.c.b16 %v759, %v758
    %v922 = vpack.c.b16 %v761, %v760
    %v923 = vpack.c.b16 %v763, %v762
    %v924 = vpack.c.b16 %v765, %v764
    %v925 = vpack.c.b16 %v767, %v766
    %v926 = vpack.c.b16 %v769, %v768
    %v927 = vpack.c.b16 %v771, %v770
    %v928 = vpack.c.b16 %v773, %v772
    %v929 = vpack.c.b16 %v775, %v774
    %v930 = vpack.c.b16 %v777, %v776
    %v931 = vpack.c.b16 %v779, %v778
    %v932 = vpack.c.b16 %v781, %v780
    %v933 = vpack.c.b16 %v783, %v782
    %v934 = vpack.c.b16 %v785, %v784
    %v935 = vpack.c.b16 %v787, %v786
    %v936 = vpack.c.b16 %v789, %v788
    %v937 = vpack.c.b16 %v791, %v790
    %v938 = vpack.c.b16 %v793, %v792
    %v939 = vpack.c.b16 %v795, %v794
    %v940 = vpack.c.b16 %v797, %v796
    %v941 = vpack.c.b16 %v799, %v798
    %v942 = vpack.c.b16 %v801, %v800
    %v943 = vpack.c.b16 %v803, %v802
    %v944 = vpack.c.b16 %v805, %v804
    %v945 = vpack.c.b16 %v807, %v806
    %v946 = vpack.c.b16 %v809, %v808
    %v947 = vpack.c.b16 %v811, %v810
    %v948 = vpack.c.b16 %v813, %v812
    %v949 = vpack.c.b16 %v815, %v814
    %v950 = vpack.c.b16 %v817, %v816
    %v951 = vpack.c.b16 %v819, %v818
    %v952 = vpack.c.b16 %v821, %v820
    %v953 = vpack.c.b16 %v823, %v822
    %v954 = vpack.c.b16 %v825, %v824
    %v955 = vpack.c.b16 %v827, %v826
    %v1100 = vunpack.c.l.b16 %v300
    %v1101 = vunpack.c.l.b16 %v301
    %v1102 = vunpack.c.l.b16 %v302
    %v1103 = vunpack.c.l.b16 %v303
    %v1104 = vunpack.c.l.b16 %v304
    %v1105 = vunpack.c.l.b16 %v305
    %v1106 = vunpack.c.l.b16 %v306
    %v1107 = vunpack.c.l.b16 %v307
    %v1108 = vunpack.c.l.b16 %v308
    %v1109 = vunpack.c.l.b16 %v309
    %v1110 = vunpack.c.l.b16 %v310
    %v1111 = vunpack.c.l.b16 %v311
    %v1112 = vunpack.c.l.b16 %v312
    %v1113 = vunpack.c.l.b16 %v313
    %v1114 = vunpack.c.l.b16 %v314
    %v1115 = vunpack.c.l.b16 %v315
    %v1116 = vpack.c.b16 %v1101, %v1100
    %v1117 = vpack.c.b16 %v1103, %v1102
    %v1118 = vpack.c.b16 %v1105, %v1104
    %v1119 = vpack.c.b16 %v1107, %v1106
    %v1120 = vpack.c.b16 %v1109, %v1108
    %v1121 = vpack.c.b16 %v1111, %v1110
    %v1122 = vpack.c.b16 %v1113, %v1112
    %v1123 = vpack.c.b16 %v1115, %v1114
    %1132 = vmatprep.subr.bf16.mxu0 0
    %1133 = vmatpush1.bf16.msra.mxu0 %v1116
    %1134 = vmatprep.subr.bf16.mxu0 0
    %1135 = vmatpush1.bf16.msra.mxu0 %v1117
    %1136 = vmatprep.subr.bf16.mxu0 0
    %1137 = vmatpush1.bf16.msra.mxu0 %v1118
    %1138 = vmatprep.subr.bf16.mxu0 0
    %1139 = vmatpush1.bf16.msra.mxu0 %v1119
    %1140 = vmatprep.subr.bf16.mxu0 0
    %1141 = vmatpush1.bf16.msra.mxu0 %v1120
    %1142 = vmatprep.subr.bf16.mxu0 0
    %1143 = vmatpush1.bf16.msra.mxu0 %v1121
    %1144 = vmatprep.subr.bf16.mxu0 0
    %1145 = vmatpush1.bf16.msra.mxu0 %v1122
    %1146 = vmatprep.subr.bf16.mxu0 0
    %1147 = vmatpush1.bf16.msra.mxu0 %v1123
    %1148 = vmatprep.subr.bf16.mxu0 0
    %1149 = vmatpush1.bf16.msra.mxu0 0
    %1150 = vmatprep.subr.bf16.mxu0 0
    %1151 = vmatpush1.bf16.msra.mxu0 0
    %1152 = vmatprep.subr.bf16.mxu0 0
    %1153 = vmatpush1.bf16.msra.mxu0 0
    %1154 = vmatprep.subr.bf16.mxu0 0
    %1155 = vmatpush1.bf16.msra.mxu0 0
    %1156 = vmatprep.subr.bf16.mxu0 0
    %1157 = vmatpush1.bf16.msra.mxu0 0
    %1158 = vmatprep.subr.bf16.mxu0 0
    %1159 = vmatpush1.bf16.msra.mxu0 0
    %1160 = vmatprep.subr.bf16.mxu0 0
    %1161 = vmatpush1.bf16.msra.mxu0 0
    %1162 = vmatprep.subr.bf16.mxu0 0
    %1163 = vmatpush1.bf16.msra.mxu0 0
    %1164 = vmatprep.mubr.bf16.mxu0 0
    %1165 = vmatmul.mubr.bf16.gmra.mrb[0].mxu0 %v828
    %v1166 = vpop.f32.mrb[0].mxu0
    %v1167 = vadd.f32 0.0, %v1166
    %v1168 = vpop.f32.mrb[0].mxu0
    %v1169 = vpop.f32.mrb[0].mxu0
    %v1170 = vadd.f32 0.0, %v1169
    %v1171 = vpop.f32.mrb[0].mxu0
    %1172 = vmatprep.mubr.bf16.mxu0 0
    %1173 = vmatmul.mubr.bf16.gmra.mrb[0].mxu0 %v829
    %v1174 = vpop.f32.mrb[0].mxu0
    %v1175 = vadd.f32 0.0, %v1174
    %v1176 = vpop.f32.mrb[0].mxu0
    %v1177 = vpop.f32.mrb[0].mxu0
    %v1178 = vadd.f32 0.0, %v1177
    %v1179 = vpop.f32.mrb[0].mxu0
    %1180 = vmatprep.mubr.bf16.mxu0 0
    %1181 = vmatmul.mubr.bf16.gmra.mrb[0].mxu0 %v830
    %v1182 = vpop.f32.mrb[0].mxu0
    %v1183 = vadd.f32 0.0, %v1182
    %v1184 = vpop.f32.mrb[0].mxu0
    %v1185 = vpop.f32.mrb[0].mxu0
    %v1186 = vadd.f32 0.0, %v1185
    %v1187 = vpop.f32.mrb[0].mxu0
    %1188 = vmatprep.mubr.bf16.mxu0 0
    %1189 = vmatmul.mubr.bf16.gmra.mrb[0].mxu0 %v831
    %v1190 = vpop.f32.mrb[0].mxu0
    %v1191 = vadd.f32 0.0, %v1190
    %v1192 = vpop.f32.mrb[0].mxu0
    %v1193 = vpop.f32.mrb[0].mxu0
    %v1194 = vadd.f32 0.0, %v1193
    %v1195 = vpop.f32.mrb[0].mxu0
    %1196 = vmatprep.mubr.bf16.mxu0 0
    %1197 = vmatmul.mubr.bf16.gmra.mrb[0].mxu0 %v832
    %v1198 = vpop.f32.mrb[0].mxu0
    %v1199 = vadd.f32 0.0, %v1198
    %v1200 = vpop.f32.mrb[0].mxu0
    %v1201 = vpop.f32.mrb[0].mxu0
    %v1202 = vadd.f32 0.0, %v1201
    %v1203 = vpop.f32.mrb[0].mxu0
    %1204 = vmatprep.mubr.bf16.mxu0 0
    %1205 = vmatmul.mubr.bf16.gmra.mrb[0].mxu0 %v833
    %v1206 = vpop.f32.mrb[0].mxu0
    %v1207 = vadd.f32 0.0, %v1206
    %v1208 = vpop.f32.mrb[0].mxu0
    %v1209 = vpop.f32.mrb[0].mxu0
    %v1210 = vadd.f32 0.0, %v1209
    %v1211 = vpop.f32.mrb[0].mxu0
    %1212 = vmatprep.mubr.bf16.mxu0 0
    %1213 = vmatmul.mubr.bf16.gmra.mrb[0].mxu0 %v834
    %v1214 = vpop.f32.mrb[0].mxu0
    %v1215 = vadd.f32 0.0, %v1214
    %v1216 = vpop.f32.mrb[0].mxu0
    %v1217 = vpop.f32.mrb[0].mxu0
    %v1218 = vadd.f32 0.0, %v1217
    %v1219 = vpop.f32.mrb[0].mxu0
    %1220 = vmatprep.mubr.bf16.mxu0 0
    %1221 = vmatmul.mubr.bf16.gmra.mrb[0].mxu0 %v835
    %v1222 = vpop.f32.mrb[0].mxu0
    %v1223 = vadd.f32 0.0, %v1222
    %v1224 = vpop.f32.mrb[0].mxu0
    %v1225 = vpop.f32.mrb[0].mxu0
    %v1226 = vadd.f32 0.0, %v1225
    %v1227 = vpop.f32.mrb[0].mxu0
    %1228 = vmatprep.mubr.bf16.mxu0 0
    %1229 = vmatmul.mubr.bf16.gmra.mrb[0].mxu0 %v836
    %v1230 = vpop.f32.mrb[0].mxu0
    %v1231 = vadd.f32 0.0, %v1230
    %v1232 = vpop.f32.mrb[0].mxu0
    %v1233 = vpop.f32.mrb[0].mxu0
    %v1234 = vadd.f32 0.0, %v1233
    %v1235 = vpop.f32.mrb[0].mxu0
    %1236 = vmatprep.mubr.bf16.mxu0 0
    %1237 = vmatmul.mubr.bf16.gmra.mrb[0].mxu0 %v837
    %v1238 = vpop.f32.mrb[0].mxu0
    %v1239 = vadd.f32 0.0, %v1238
    %v1240 = vpop.f32.mrb[0].mxu0
    %v1241 = vpop.f32.mrb[0].mxu0
    %v1242 = vadd.f32 0.0, %v1241
    %v1243 = vpop.f32.mrb[0].mxu0
    %1244 = vmatprep.mubr.bf16.mxu0 0
    %1245 = vmatmul.mubr.bf16.gmra.mrb[0].mxu0 %v838
    %v1246 = vpop.f32.mrb[0].mxu0
    %v1247 = vadd.f32 0.0, %v1246
    %v1248 = vpop.f32.mrb[0].mxu0
    %v1249 = vpop.f32.mrb[0].mxu0
    %v1250 = vadd.f32 0.0, %v1249
    %v1251 = vpop.f32.mrb[0].mxu0
    %1252 = vmatprep.mubr.bf16.mxu0 0
    %1253 = vmatmul.mubr.bf16.gmra.mrb[0].mxu0 %v839
    %v1254 = vpop.f32.mrb[0].mxu0
    %v1255 = vadd.f32 0.0, %v1254
    %v1256 = vpop.f32.mrb[0].mxu0
    %v1257 = vpop.f32.mrb[0].mxu0
    %v1258 = vadd.f32 0.0, %v1257
    %v1259 = vpop.f32.mrb[0].mxu0
    %1260 = vmatprep.mubr.bf16.mxu0 0
    %1261 = vmatmul.mubr.bf16.gmra.mrb[0].mxu0 %v840
    %v1262 = vpop.f32.mrb[0].mxu0
    %v1263 = vadd.f32 0.0, %v1262
    %v1264 = vpop.f32.mrb[0].mxu0
    %v1265 = vpop.f32.mrb[0].mxu0
    %v1266 = vadd.f32 0.0, %v1265
    %v1267 = vpop.f32.mrb[0].mxu0
    %1268 = vmatprep.mubr.bf16.mxu0 0
    %1269 = vmatmul.mubr.bf16.gmra.mrb[0].mxu0 %v841
    %v1270 = vpop.f32.mrb[0].mxu0
    %v1271 = vadd.f32 0.0, %v1270
    %v1272 = vpop.f32.mrb[0].mxu0
    %v1273 = vpop.f32.mrb[0].mxu0
    %v1274 = vadd.f32 0.0, %v1273
    %v1275 = vpop.f32.mrb[0].mxu0
    %1276 = vmatprep.mubr.bf16.mxu0 0
    %1277 = vmatmul.mubr.bf16.gmra.mrb[0].mxu0 %v842
    %v1278 = vpop.f32.mrb[0].mxu0
    %v1279 = vadd.f32 0.0, %v1278
    %v1280 = vpop.f32.mrb[0].mxu0
    %v1281 = vpop.f32.mrb[0].mxu0
    %v1282 = vadd.f32 0.0, %v1281
    %v1283 = vpop.f32.mrb[0].mxu0
    %1284 = vmatprep.mubr.bf16.mxu0 0
    %1285 = vmatmul.mubr.bf16.gmra.mrb[0].mxu0 %v843
    %v1286 = vpop.f32.mrb[0].mxu0
    %v1287 = vadd.f32 0.0, %v1286
    %v1288 = vpop.f32.mrb[0].mxu0
    %v1289 = vpop.f32.mrb[0].mxu0
    %v1290 = vadd.f32 0.0, %v1289
    %v1291 = vpop.f32.mrb[0].mxu0
    %1292 = vmatprep.mubr.bf16.mxu0 0
    %1293 = vmatmul.mubr.bf16.gmra.mrb[0].mxu0 %v844
    %v1294 = vpop.f32.mrb[0].mxu0
    %v1295 = vadd.f32 0.0, %v1294
    %v1296 = vpop.f32.mrb[0].mxu0
    %v1297 = vpop.f32.mrb[0].mxu0
    %v1298 = vadd.f32 0.0, %v1297
    %v1299 = vpop.f32.mrb[0].mxu0
    %1300 = vmatprep.mubr.bf16.mxu0 0
    %1301 = vmatmul.mubr.bf16.gmra.mrb[0].mxu0 %v845
    %v1302 = vpop.f32.mrb[0].mxu0
    %v1303 = vadd.f32 0.0, %v1302
    %v1304 = vpop.f32.mrb[0].mxu0
    %v1305 = vpop.f32.mrb[0].mxu0
    %v1306 = vadd.f32 0.0, %v1305
    %v1307 = vpop.f32.mrb[0].mxu0
    %1308 = vmatprep.mubr.bf16.mxu0 0
    %1309 = vmatmul.mubr.bf16.gmra.mrb[0].mxu0 %v846
    %v1310 = vpop.f32.mrb[0].mxu0
    %v1311 = vadd.f32 0.0, %v1310
    %v1312 = vpop.f32.mrb[0].mxu0
    %v1313 = vpop.f32.mrb[0].mxu0
    %v1314 = vadd.f32 0.0, %v1313
    %v1315 = vpop.f32.mrb[0].mxu0
    %1316 = vmatprep.mubr.bf16.mxu0 0
    %1317 = vmatmul.mubr.bf16.gmra.mrb[0].mxu0 %v847
    %v1318 = vpop.f32.mrb[0].mxu0
    %v1319 = vadd.f32 0.0, %v1318
    %v1320 = vpop.f32.mrb[0].mxu0
    %v1321 = vpop.f32.mrb[0].mxu0
    %v1322 = vadd.f32 0.0, %v1321
    %v1323 = vpop.f32.mrb[0].mxu0
    %1324 = vmatprep.mubr.bf16.mxu0 0
    %1325 = vmatmul.mubr.bf16.gmra.mrb[0].mxu0 %v848
    %v1326 = vpop.f32.mrb[0].mxu0
    %v1327 = vadd.f32 0.0, %v1326
    %v1328 = vpop.f32.mrb[0].mxu0
    %v1329 = vpop.f32.mrb[0].mxu0
    %v1330 = vadd.f32 0.0, %v1329
    %v1331 = vpop.f32.mrb[0].mxu0
    %1332 = vmatprep.mubr.bf16.mxu0 0
    %1333 = vmatmul.mubr.bf16.gmra.mrb[0].mxu0 %v849
    %v1334 = vpop.f32.mrb[0].mxu0
    %v1335 = vadd.f32 0.0, %v1334
    %v1336 = vpop.f32.mrb[0].mxu0
    %v1337 = vpop.f32.mrb[0].mxu0
    %v1338 = vadd.f32 0.0, %v1337
    %v1339 = vpop.f32.mrb[0].mxu0
    %1340 = vmatprep.mubr.bf16.mxu0 0
    %1341 = vmatmul.mubr.bf16.gmra.mrb[0].mxu0 %v850
    %v1342 = vpop.f32.mrb[0].mxu0
    %v1343 = vadd.f32 0.0, %v1342
    %v1344 = vpop.f32.mrb[0].mxu0
    %v1345 = vpop.f32.mrb[0].mxu0
    %v1346 = vadd.f32 0.0, %v1345
    %v1347 = vpop.f32.mrb[0].mxu0
    %1348 = vmatprep.mubr.bf16.mxu0 0
    %1349 = vmatmul.mubr.bf16.gmra.mrb[0].mxu0 %v851
    %v1350 = vpop.f32.mrb[0].mxu0
    %v1351 = vadd.f32 0.0, %v1350
    %v1352 = vpop.f32.mrb[0].mxu0
    %v1353 = vpop.f32.mrb[0].mxu0
    %v1354 = vadd.f32 0.0, %v1353
    %v1355 = vpop.f32.mrb[0].mxu0
    %1356 = vmatprep.mubr.bf16.mxu0 0
    %1357 = vmatmul.mubr.bf16.gmra.mrb[0].mxu0 %v852
    %v1358 = vpop.f32.mrb[0].mxu0
    %v1359 = vadd.f32 0.0, %v1358
    %v1360 = vpop.f32.mrb[0].mxu0
    %v1361 = vpop.f32.mrb[0].mxu0
    %v1362 = vadd.f32 0.0, %v1361
    %v1363 = vpop.f32.mrb[0].mxu0
    %1364 = vmatprep.mubr.bf16.mxu0 0
    %1365 = vmatmul.mubr.bf16.gmra.mrb[0].mxu0 %v853
    %v1366 = vpop.f32.mrb[0].mxu0
    %v1367 = vadd.f32 0.0, %v1366
    %v1368 = vpop.f32.mrb[0].mxu0
    %v1369 = vpop.f32.mrb[0].mxu0
    %v1370 = vadd.f32 0.0, %v1369
    %v1371 = vpop.f32.mrb[0].mxu0
    %1372 = vmatprep.mubr.bf16.mxu0 0
    %1373 = vmatmul.mubr.bf16.gmra.mrb[0].mxu0 %v854
    %v1374 = vpop.f32.mrb[0].mxu0
    %v1375 = vadd.f32 0.0, %v1374
    %v1376 = vpop.f32.mrb[0].mxu0
    %v1377 = vpop.f32.mrb[0].mxu0
    %v1378 = vadd.f32 0.0, %v1377
    %v1379 = vpop.f32.mrb[0].mxu0
    %1380 = vmatprep.mubr.bf16.mxu0 0
    %1381 = vmatmul.mubr.bf16.gmra.mrb[0].mxu0 %v855
    %v1382 = vpop.f32.mrb[0].mxu0
    %v1383 = vadd.f32 0.0, %v1382
    %v1384 = vpop.f32.mrb[0].mxu0
    %v1385 = vpop.f32.mrb[0].mxu0
    %v1386 = vadd.f32 0.0, %v1385
    %v1387 = vpop.f32.mrb[0].mxu0
    %1388 = vmatprep.mubr.bf16.mxu0 0
    %1389 = vmatmul.mubr.bf16.gmra.mrb[0].mxu0 %v856
    %v1390 = vpop.f32.mrb[0].mxu0
    %v1391 = vadd.f32 0.0, %v1390
    %v1392 = vpop.f32.mrb[0].mxu0
    %v1393 = vpop.f32.mrb[0].mxu0
    %v1394 = vadd.f32 0.0, %v1393
    %v1395 = vpop.f32.mrb[0].mxu0
    %1396 = vmatprep.mubr.bf16.mxu0 0
    %1397 = vmatmul.mubr.bf16.gmra.mrb[0].mxu0 %v857
    %v1398 = vpop.f32.mrb[0].mxu0
    %v1399 = vadd.f32 0.0, %v1398
    %v1400 = vpop.f32.mrb[0].mxu0
    %v1401 = vpop.f32.mrb[0].mxu0
    %v1402 = vadd.f32 0.0, %v1401
    %v1403 = vpop.f32.mrb[0].mxu0
    %1404 = vmatprep.mubr.bf16.mxu0 0
    %1405 = vmatmul.mubr.bf16.gmra.mrb[0].mxu0 %v858
    %v1406 = vpop.f32.mrb[0].mxu0
    %v1407 = vadd.f32 0.0, %v1406
    %v1408 = vpop.f32.mrb[0].mxu0
    %v1409 = vpop.f32.mrb[0].mxu0
    %v1410 = vadd.f32 0.0, %v1409
    %v1411 = vpop.f32.mrb[0].mxu0
    %1412 = vmatprep.mubr.bf16.mxu0 0
    %1413 = vmatmul.mubr.bf16.gmra.mrb[0].mxu0 %v859
    %v1414 = vpop.f32.mrb[0].mxu0
    %v1415 = vadd.f32 0.0, %v1414
    %v1416 = vpop.f32.mrb[0].mxu0
    %v1417 = vpop.f32.mrb[0].mxu0
    %v1418 = vadd.f32 0.0, %v1417
    %v1419 = vpop.f32.mrb[0].mxu0
    %1420 = vmatprep.mubr.bf16.mxu0 0
    %1421 = vmatmul.mubr.bf16.gmra.mrb[0].mxu0 %v860
    %v1422 = vpop.f32.mrb[0].mxu0
    %v1423 = vadd.f32 0.0, %v1422
    %v1424 = vpop.f32.mrb[0].mxu0
    %v1425 = vpop.f32.mrb[0].mxu0
    %v1426 = vadd.f32 0.0, %v1425
    %v1427 = vpop.f32.mrb[0].mxu0
    %1428 = vmatprep.mubr.bf16.mxu0 0
    %1429 = vmatmul.mubr.bf16.gmra.mrb[0].mxu0 %v861
    %v1430 = vpop.f32.mrb[0].mxu0
    %v1431 = vadd.f32 0.0, %v1430
    %v1432 = vpop.f32.mrb[0].mxu0
    %v1433 = vpop.f32.mrb[0].mxu0
    %v1434 = vadd.f32 0.0, %v1433
    %v1435 = vpop.f32.mrb[0].mxu0
    %1436 = vmatprep.mubr.bf16.mxu0 0
    %1437 = vmatmul.mubr.bf16.gmra.mrb[0].mxu0 %v862
    %v1438 = vpop.f32.mrb[0].mxu0
    %v1439 = vadd.f32 0.0, %v1438
    %v1440 = vpop.f32.mrb[0].mxu0
    %v1441 = vpop.f32.mrb[0].mxu0
    %v1442 = vadd.f32 0.0, %v1441
    %v1443 = vpop.f32.mrb[0].mxu0
    %1444 = vmatprep.mubr.bf16.mxu0 0
    %1445 = vmatmul.mubr.bf16.gmra.mrb[0].mxu0 %v863
    %v1446 = vpop.f32.mrb[0].mxu0
    %v1447 = vadd.f32 0.0, %v1446
    %v1448 = vpop.f32.mrb[0].mxu0
    %v1449 = vpop.f32.mrb[0].mxu0
    %v1450 = vadd.f32 0.0, %v1449
    %v1451 = vpop.f32.mrb[0].mxu0
    %1452 = vmatprep.mubr.bf16.mxu0 0
    %1453 = vmatmul.mubr.bf16.gmra.mrb[0].mxu0 %v864
    %v1454 = vpop.f32.mrb[0].mxu0
    %v1455 = vadd.f32 0.0, %v1454
    %v1456 = vpop.f32.mrb[0].mxu0
    %v1457 = vpop.f32.mrb[0].mxu0
    %v1458 = vadd.f32 0.0, %v1457
    %v1459 = vpop.f32.mrb[0].mxu0
    %1460 = vmatprep.mubr.bf16.mxu0 0
    %1461 = vmatmul.mubr.bf16.gmra.mrb[0].mxu0 %v865
    %v1462 = vpop.f32.mrb[0].mxu0
    %v1463 = vadd.f32 0.0, %v1462
    %v1464 = vpop.f32.mrb[0].mxu0
    %v1465 = vpop.f32.mrb[0].mxu0
    %v1466 = vadd.f32 0.0, %v1465
    %v1467 = vpop.f32.mrb[0].mxu0
    %1468 = vmatprep.mubr.bf16.mxu0 0
    %1469 = vmatmul.mubr.bf16.gmra.mrb[0].mxu0 %v866
    %v1470 = vpop.f32.mrb[0].mxu0
    %v1471 = vadd.f32 0.0, %v1470
    %v1472 = vpop.f32.mrb[0].mxu0
    %v1473 = vpop.f32.mrb[0].mxu0
    %v1474 = vadd.f32 0.0, %v1473
    %v1475 = vpop.f32.mrb[0].mxu0
    %1476 = vmatprep.mubr.bf16.mxu0 0
    %1477 = vmatmul.mubr.bf16.gmra.mrb[0].mxu0 %v867
    %v1478 = vpop.f32.mrb[0].mxu0
    %v1479 = vadd.f32 0.0, %v1478
    %v1480 = vpop.f32.mrb[0].mxu0
    %v1481 = vpop.f32.mrb[0].mxu0
    %v1482 = vadd.f32 0.0, %v1481
    %v1483 = vpop.f32.mrb[0].mxu0
    %1484 = vmatprep.mubr.bf16.mxu0 0
    %1485 = vmatmul.mubr.bf16.gmra.mrb[0].mxu0 %v868
    %v1486 = vpop.f32.mrb[0].mxu0
    %v1487 = vadd.f32 0.0, %v1486
    %v1488 = vpop.f32.mrb[0].mxu0
    %v1489 = vpop.f32.mrb[0].mxu0
    %v1490 = vadd.f32 0.0, %v1489
    %v1491 = vpop.f32.mrb[0].mxu0
    %1492 = vmatprep.mubr.bf16.mxu0 0
    %1493 = vmatmul.mubr.bf16.gmra.mrb[0].mxu0 %v869
    %v1494 = vpop.f32.mrb[0].mxu0
    %v1495 = vadd.f32 0.0, %v1494
    %v1496 = vpop.f32.mrb[0].mxu0
    %v1497 = vpop.f32.mrb[0].mxu0
    %v1498 = vadd.f32 0.0, %v1497
    %v1499 = vpop.f32.mrb[0].mxu0
    %1500 = vmatprep.mubr.bf16.mxu0 0
    %1501 = vmatmul.mubr.bf16.gmra.mrb[0].mxu0 %v870
    %v1502 = vpop.f32.mrb[0].mxu0
    %v1503 = vadd.f32 0.0, %v1502
    %v1504 = vpop.f32.mrb[0].mxu0
    %v1505 = vpop.f32.mrb[0].mxu0
    %v1506 = vadd.f32 0.0, %v1505
    %v1507 = vpop.f32.mrb[0].mxu0
    %1508 = vmatprep.mubr.bf16.mxu0 0
    %1509 = vmatmul.mubr.bf16.gmra.mrb[0].mxu0 %v871
    %v1510 = vpop.f32.mrb[0].mxu0
    %v1511 = vadd.f32 0.0, %v1510
    %v1512 = vpop.f32.mrb[0].mxu0
    %v1513 = vpop.f32.mrb[0].mxu0
    %v1514 = vadd.f32 0.0, %v1513
    %v1515 = vpop.f32.mrb[0].mxu0
    %1516 = vmatprep.mubr.bf16.mxu0 0
    %1517 = vmatmul.mubr.bf16.gmra.mrb[0].mxu0 %v872
    %v1518 = vpop.f32.mrb[0].mxu0
    %v1519 = vadd.f32 0.0, %v1518
    %v1520 = vpop.f32.mrb[0].mxu0
    %v1521 = vpop.f32.mrb[0].mxu0
    %v1522 = vadd.f32 0.0, %v1521
    %v1523 = vpop.f32.mrb[0].mxu0
    %1524 = vmatprep.mubr.bf16.mxu0 0
    %1525 = vmatmul.mubr.bf16.gmra.mrb[0].mxu0 %v873
    %v1526 = vpop.f32.mrb[0].mxu0
    %v1527 = vadd.f32 0.0, %v1526
    %v1528 = vpop.f32.mrb[0].mxu0
    %v1529 = vpop.f32.mrb[0].mxu0
    %v1530 = vadd.f32 0.0, %v1529
    %v1531 = vpop.f32.mrb[0].mxu0
    %1532 = vmatprep.mubr.bf16.mxu0 0
    %1533 = vmatmul.mubr.bf16.gmra.mrb[0].mxu0 %v874
    %v1534 = vpop.f32.mrb[0].mxu0
    %v1535 = vadd.f32 0.0, %v1534
    %v1536 = vpop.f32.mrb[0].mxu0
    %v1537 = vpop.f32.mrb[0].mxu0
    %v1538 = vadd.f32 0.0, %v1537
    %v1539 = vpop.f32.mrb[0].mxu0
    %1540 = vmatprep.mubr.bf16.mxu0 0
    %1541 = vmatmul.mubr.bf16.gmra.mrb[0].mxu0 %v875
    %v1542 = vpop.f32.mrb[0].mxu0
    %v1543 = vadd.f32 0.0, %v1542
    %v1544 = vpop.f32.mrb[0].mxu0
    %v1545 = vpop.f32.mrb[0].mxu0
    %v1546 = vadd.f32 0.0, %v1545
    %v1547 = vpop.f32.mrb[0].mxu0
    %1548 = vmatprep.mubr.bf16.mxu0 0
    %1549 = vmatmul.mubr.bf16.gmra.mrb[0].mxu0 %v876
    %v1550 = vpop.f32.mrb[0].mxu0
    %v1551 = vadd.f32 0.0, %v1550
    %v1552 = vpop.f32.mrb[0].mxu0
    %v1553 = vpop.f32.mrb[0].mxu0
    %v1554 = vadd.f32 0.0, %v1553
    %v1555 = vpop.f32.mrb[0].mxu0
    %1556 = vmatprep.mubr.bf16.mxu0 0
    %1557 = vmatmul.mubr.bf16.gmra.mrb[0].mxu0 %v877
    %v1558 = vpop.f32.mrb[0].mxu0
    %v1559 = vadd.f32 0.0, %v1558
    %v1560 = vpop.f32.mrb[0].mxu0
    %v1561 = vpop.f32.mrb[0].mxu0
    %v1562 = vadd.f32 0.0, %v1561
    %v1563 = vpop.f32.mrb[0].mxu0
    %1564 = vmatprep.mubr.bf16.mxu0 0
    %1565 = vmatmul.mubr.bf16.gmra.mrb[0].mxu0 %v878
    %v1566 = vpop.f32.mrb[0].mxu0
    %v1567 = vadd.f32 0.0, %v1566
    %v1568 = vpop.f32.mrb[0].mxu0
    %v1569 = vpop.f32.mrb[0].mxu0
    %v1570 = vadd.f32 0.0, %v1569
    %v1571 = vpop.f32.mrb[0].mxu0
    %1572 = vmatprep.mubr.bf16.mxu0 0
    %1573 = vmatmul.mubr.bf16.gmra.mrb[0].mxu0 %v879
    %v1574 = vpop.f32.mrb[0].mxu0
    %v1575 = vadd.f32 0.0, %v1574
    %v1576 = vpop.f32.mrb[0].mxu0
    %v1577 = vpop.f32.mrb[0].mxu0
    %v1578 = vadd.f32 0.0, %v1577
    %v1579 = vpop.f32.mrb[0].mxu0
    %1580 = vmatprep.mubr.bf16.mxu0 0
    %1581 = vmatmul.mubr.bf16.gmra.mrb[0].mxu0 %v880
    %v1582 = vpop.f32.mrb[0].mxu0
    %v1583 = vadd.f32 0.0, %v1582
    %v1584 = vpop.f32.mrb[0].mxu0
    %v1585 = vpop.f32.mrb[0].mxu0
    %v1586 = vadd.f32 0.0, %v1585
    %v1587 = vpop.f32.mrb[0].mxu0
    %1588 = vmatprep.mubr.bf16.mxu0 0
    %1589 = vmatmul.mubr.bf16.gmra.mrb[0].mxu0 %v881
    %v1590 = vpop.f32.mrb[0].mxu0
    %v1591 = vadd.f32 0.0, %v1590
    %v1592 = vpop.f32.mrb[0].mxu0
    %v1593 = vpop.f32.mrb[0].mxu0
    %v1594 = vadd.f32 0.0, %v1593
    %v1595 = vpop.f32.mrb[0].mxu0
    %1596 = vmatprep.mubr.bf16.mxu0 0
    %1597 = vmatmul.mubr.bf16.gmra.mrb[0].mxu0 %v882
    %v1598 = vpop.f32.mrb[0].mxu0
    %v1599 = vadd.f32 0.0, %v1598
    %v1600 = vpop.f32.mrb[0].mxu0
    %v1601 = vpop.f32.mrb[0].mxu0
    %v1602 = vadd.f32 0.0, %v1601
    %v1603 = vpop.f32.mrb[0].mxu0
    %1604 = vmatprep.mubr.bf16.mxu0 0
    %1605 = vmatmul.mubr.bf16.gmra.mrb[0].mxu0 %v883
    %v1606 = vpop.f32.mrb[0].mxu0
    %v1607 = vadd.f32 0.0, %v1606
    %v1608 = vpop.f32.mrb[0].mxu0
    %v1609 = vpop.f32.mrb[0].mxu0
    %v1610 = vadd.f32 0.0, %v1609
    %v1611 = vpop.f32.mrb[0].mxu0
    %1612 = vmatprep.mubr.bf16.mxu0 0
    %1613 = vmatmul.mubr.bf16.gmra.mrb[0].mxu0 %v884
    %v1614 = vpop.f32.mrb[0].mxu0
    %v1615 = vadd.f32 0.0, %v1614
    %v1616 = vpop.f32.mrb[0].mxu0
    %v1617 = vpop.f32.mrb[0].mxu0
    %v1618 = vadd.f32 0.0, %v1617
    %v1619 = vpop.f32.mrb[0].mxu0
    %1620 = vmatprep.mubr.bf16.mxu0 0
    %1621 = vmatmul.mubr.bf16.gmra.mrb[0].mxu0 %v885
    %v1622 = vpop.f32.mrb[0].mxu0
    %v1623 = vadd.f32 0.0, %v1622
    %v1624 = vpop.f32.mrb[0].mxu0
    %v1625 = vpop.f32.mrb[0].mxu0
    %v1626 = vadd.f32 0.0, %v1625
    %v1627 = vpop.f32.mrb[0].mxu0
    %1628 = vmatprep.mubr.bf16.mxu0 0
    %1629 = vmatmul.mubr.bf16.gmra.mrb[0].mxu0 %v886
    %v1630 = vpop.f32.mrb[0].mxu0
    %v1631 = vadd.f32 0.0, %v1630
    %v1632 = vpop.f32.mrb[0].mxu0
    %v1633 = vpop.f32.mrb[0].mxu0
    %v1634 = vadd.f32 0.0, %v1633
    %v1635 = vpop.f32.mrb[0].mxu0
    %1636 = vmatprep.mubr.bf16.mxu0 0
    %1637 = vmatmul.mubr.bf16.gmra.mrb[0].mxu0 %v887
    %v1638 = vpop.f32.mrb[0].mxu0
    %v1639 = vadd.f32 0.0, %v1638
    %v1640 = vpop.f32.mrb[0].mxu0
    %v1641 = vpop.f32.mrb[0].mxu0
    %v1642 = vadd.f32 0.0, %v1641
    %v1643 = vpop.f32.mrb[0].mxu0
    %1644 = vmatprep.mubr.bf16.mxu0 0
    %1645 = vmatmul.mubr.bf16.gmra.mrb[0].mxu0 %v888
    %v1646 = vpop.f32.mrb[0].mxu0
    %v1647 = vadd.f32 0.0, %v1646
    %v1648 = vpop.f32.mrb[0].mxu0
    %v1649 = vpop.f32.mrb[0].mxu0
    %v1650 = vadd.f32 0.0, %v1649
    %v1651 = vpop.f32.mrb[0].mxu0
    %1652 = vmatprep.mubr.bf16.mxu0 0
    %1653 = vmatmul.mubr.bf16.gmra.mrb[0].mxu0 %v889
    %v1654 = vpop.f32.mrb[0].mxu0
    %v1655 = vadd.f32 0.0, %v1654
    %v1656 = vpop.f32.mrb[0].mxu0
    %v1657 = vpop.f32.mrb[0].mxu0
    %v1658 = vadd.f32 0.0, %v1657
    %v1659 = vpop.f32.mrb[0].mxu0
    %1660 = vmatprep.mubr.bf16.mxu0 0
    %1661 = vmatmul.mubr.bf16.gmra.mrb[0].mxu0 %v890
    %v1662 = vpop.f32.mrb[0].mxu0
    %v1663 = vadd.f32 0.0, %v1662
    %v1664 = vpop.f32.mrb[0].mxu0
    %v1665 = vpop.f32.mrb[0].mxu0
    %v1666 = vadd.f32 0.0, %v1665
    %v1667 = vpop.f32.mrb[0].mxu0
    %1668 = vmatprep.mubr.bf16.mxu0 0
    %1669 = vmatmul.mubr.bf16.gmra.mrb[0].mxu0 %v891
    %v1670 = vpop.f32.mrb[0].mxu0
    %v1671 = vadd.f32 0.0, %v1670
    %v1672 = vpop.f32.mrb[0].mxu0
    %v1673 = vpop.f32.mrb[0].mxu0
    %v1674 = vadd.f32 0.0, %v1673
    %v1675 = vpop.f32.mrb[0].mxu0
    %1676 = vmatprep.mubr.bf16.mxu0 0
    %1677 = vmatmul.mubr.bf16.gmra.mrb[0].mxu0 %v892
    %v1678 = vpop.f32.mrb[0].mxu0
    %v1679 = vadd.f32 0.0, %v1678
    %v1680 = vpop.f32.mrb[0].mxu0
    %v1681 = vpop.f32.mrb[0].mxu0
    %v1682 = vadd.f32 0.0, %v1681
    %v1683 = vpop.f32.mrb[0].mxu0
    %1684 = vmatprep.mubr.bf16.mxu0 0
    %1685 = vmatmul.mubr.bf16.gmra.mrb[0].mxu0 %v893
    %v1686 = vpop.f32.mrb[0].mxu0
    %v1687 = vadd.f32 0.0, %v1686
    %v1688 = vpop.f32.mrb[0].mxu0
    %v1689 = vpop.f32.mrb[0].mxu0
    %v1690 = vadd.f32 0.0, %v1689
    %v1691 = vpop.f32.mrb[0].mxu0
    %1692 = vmatprep.mubr.bf16.mxu0 0
    %1693 = vmatmul.mubr.bf16.gmra.mrb[0].mxu0 %v894
    %v1694 = vpop.f32.mrb[0].mxu0
    %v1695 = vadd.f32 0.0, %v1694
    %v1696 = vpop.f32.mrb[0].mxu0
    %v1697 = vpop.f32.mrb[0].mxu0
    %v1698 = vadd.f32 0.0, %v1697
    %v1699 = vpop.f32.mrb[0].mxu0
    %1700 = vmatprep.mubr.bf16.mxu0 0
    %1701 = vmatmul.mubr.bf16.gmra.mrb[0].mxu0 %v895
    %v1702 = vpop.f32.mrb[0].mxu0
    %v1703 = vadd.f32 0.0, %v1702
    %v1704 = vpop.f32.mrb[0].mxu0
    %v1705 = vpop.f32.mrb[0].mxu0
    %v1706 = vadd.f32 0.0, %v1705
    %v1707 = vpop.f32.mrb[0].mxu0
    %1708 = vmatprep.mubr.bf16.mxu0 0
    %1709 = vmatmul.mubr.bf16.gmra.mrb[0].mxu0 %v896
    %v1710 = vpop.f32.mrb[0].mxu0
    %v1711 = vadd.f32 0.0, %v1710
    %v1712 = vpop.f32.mrb[0].mxu0
    %v1713 = vpop.f32.mrb[0].mxu0
    %v1714 = vadd.f32 0.0, %v1713
    %v1715 = vpop.f32.mrb[0].mxu0
    %1716 = vmatprep.mubr.bf16.mxu0 0
    %1717 = vmatmul.mubr.bf16.gmra.mrb[0].mxu0 %v897
    %v1718 = vpop.f32.mrb[0].mxu0
    %v1719 = vadd.f32 0.0, %v1718
    %v1720 = vpop.f32.mrb[0].mxu0
    %v1721 = vpop.f32.mrb[0].mxu0
    %v1722 = vadd.f32 0.0, %v1721
    %v1723 = vpop.f32.mrb[0].mxu0
    %1724 = vmatprep.mubr.bf16.mxu0 0
    %1725 = vmatmul.mubr.bf16.gmra.mrb[0].mxu0 %v898
    %v1726 = vpop.f32.mrb[0].mxu0
    %v1727 = vadd.f32 0.0, %v1726
    %v1728 = vpop.f32.mrb[0].mxu0
    %v1729 = vpop.f32.mrb[0].mxu0
    %v1730 = vadd.f32 0.0, %v1729
    %v1731 = vpop.f32.mrb[0].mxu0
    %1732 = vmatprep.mubr.bf16.mxu0 0
    %1733 = vmatmul.mubr.bf16.gmra.mrb[0].mxu0 %v899
    %v1734 = vpop.f32.mrb[0].mxu0
    %v1735 = vadd.f32 0.0, %v1734
    %v1736 = vpop.f32.mrb[0].mxu0
    %v1737 = vpop.f32.mrb[0].mxu0
    %v1738 = vadd.f32 0.0, %v1737
    %v1739 = vpop.f32.mrb[0].mxu0
    %1740 = vmatprep.mubr.bf16.mxu0 0
    %1741 = vmatmul.mubr.bf16.gmra.mrb[0].mxu0 %v900
    %v1742 = vpop.f32.mrb[0].mxu0
    %v1743 = vadd.f32 0.0, %v1742
    %v1744 = vpop.f32.mrb[0].mxu0
    %v1745 = vpop.f32.mrb[0].mxu0
    %v1746 = vadd.f32 0.0, %v1745
    %v1747 = vpop.f32.mrb[0].mxu0
    %1748 = vmatprep.mubr.bf16.mxu0 0
    %1749 = vmatmul.mubr.bf16.gmra.mrb[0].mxu0 %v901
    %v1750 = vpop.f32.mrb[0].mxu0
    %v1751 = vadd.f32 0.0, %v1750
    %v1752 = vpop.f32.mrb[0].mxu0
    %v1753 = vpop.f32.mrb[0].mxu0
    %v1754 = vadd.f32 0.0, %v1753
    %v1755 = vpop.f32.mrb[0].mxu0
    %1756 = vmatprep.mubr.bf16.mxu0 0
    %1757 = vmatmul.mubr.bf16.gmra.mrb[0].mxu0 %v902
    %v1758 = vpop.f32.mrb[0].mxu0
    %v1759 = vadd.f32 0.0, %v1758
    %v1760 = vpop.f32.mrb[0].mxu0
    %v1761 = vpop.f32.mrb[0].mxu0
    %v1762 = vadd.f32 0.0, %v1761
    %v1763 = vpop.f32.mrb[0].mxu0
    %1764 = vmatprep.mubr.bf16.mxu0 0
    %1765 = vmatmul.mubr.bf16.gmra.mrb[0].mxu0 %v903
    %v1766 = vpop.f32.mrb[0].mxu0
    %v1767 = vadd.f32 0.0, %v1766
    %v1768 = vpop.f32.mrb[0].mxu0
    %v1769 = vpop.f32.mrb[0].mxu0
    %v1770 = vadd.f32 0.0, %v1769
    %v1771 = vpop.f32.mrb[0].mxu0
    %1772 = vmatprep.mubr.bf16.mxu0 0
    %1773 = vmatmul.mubr.bf16.gmra.mrb[0].mxu0 %v904
    %v1774 = vpop.f32.mrb[0].mxu0
    %v1775 = vadd.f32 0.0, %v1774
    %v1776 = vpop.f32.mrb[0].mxu0
    %v1777 = vpop.f32.mrb[0].mxu0
    %v1778 = vadd.f32 0.0, %v1777
    %v1779 = vpop.f32.mrb[0].mxu0
    %1780 = vmatprep.mubr.bf16.mxu0 0
    %1781 = vmatmul.mubr.bf16.gmra.mrb[0].mxu0 %v905
    %v1782 = vpop.f32.mrb[0].mxu0
    %v1783 = vadd.f32 0.0, %v1782
    %v1784 = vpop.f32.mrb[0].mxu0
    %v1785 = vpop.f32.mrb[0].mxu0
    %v1786 = vadd.f32 0.0, %v1785
    %v1787 = vpop.f32.mrb[0].mxu0
    %1788 = vmatprep.mubr.bf16.mxu0 0
    %1789 = vmatmul.mubr.bf16.gmra.mrb[0].mxu0 %v906
    %v1790 = vpop.f32.mrb[0].mxu0
    %v1791 = vadd.f32 0.0, %v1790
    %v1792 = vpop.f32.mrb[0].mxu0
    %v1793 = vpop.f32.mrb[0].mxu0
    %v1794 = vadd.f32 0.0, %v1793
    %v1795 = vpop.f32.mrb[0].mxu0
    %1796 = vmatprep.mubr.bf16.mxu0 0
    %1797 = vmatmul.mubr.bf16.gmra.mrb[0].mxu0 %v907
    %v1798 = vpop.f32.mrb[0].mxu0
    %v1799 = vadd.f32 0.0, %v1798
    %v1800 = vpop.f32.mrb[0].mxu0
    %v1801 = vpop.f32.mrb[0].mxu0
    %v1802 = vadd.f32 0.0, %v1801
    %v1803 = vpop.f32.mrb[0].mxu0
    %1804 = vmatprep.mubr.bf16.mxu0 0
    %1805 = vmatmul.mubr.bf16.gmra.mrb[0].mxu0 %v908
    %v1806 = vpop.f32.mrb[0].mxu0
    %v1807 = vadd.f32 0.0, %v1806
    %v1808 = vpop.f32.mrb[0].mxu0
    %v1809 = vpop.f32.mrb[0].mxu0
    %v1810 = vadd.f32 0.0, %v1809
    %v1811 = vpop.f32.mrb[0].mxu0
    %1812 = vmatprep.mubr.bf16.mxu0 0
    %1813 = vmatmul.mubr.bf16.gmra.mrb[0].mxu0 %v909
    %v1814 = vpop.f32.mrb[0].mxu0
    %v1815 = vadd.f32 0.0, %v1814
    %v1816 = vpop.f32.mrb[0].mxu0
    %v1817 = vpop.f32.mrb[0].mxu0
    %v1818 = vadd.f32 0.0, %v1817
    %v1819 = vpop.f32.mrb[0].mxu0
    %1820 = vmatprep.mubr.bf16.mxu0 0
    %1821 = vmatmul.mubr.bf16.gmra.mrb[0].mxu0 %v910
    %v1822 = vpop.f32.mrb[0].mxu0
    %v1823 = vadd.f32 0.0, %v1822
    %v1824 = vpop.f32.mrb[0].mxu0
    %v1825 = vpop.f32.mrb[0].mxu0
    %v1826 = vadd.f32 0.0, %v1825
    %v1827 = vpop.f32.mrb[0].mxu0
    %1828 = vmatprep.mubr.bf16.mxu0 0
    %1829 = vmatmul.mubr.bf16.gmra.mrb[0].mxu0 %v911
    %v1830 = vpop.f32.mrb[0].mxu0
    %v1831 = vadd.f32 0.0, %v1830
    %v1832 = vpop.f32.mrb[0].mxu0
    %v1833 = vpop.f32.mrb[0].mxu0
    %v1834 = vadd.f32 0.0, %v1833
    %v1835 = vpop.f32.mrb[0].mxu0
    %1836 = vmatprep.mubr.bf16.mxu0 0
    %1837 = vmatmul.mubr.bf16.gmra.mrb[0].mxu0 %v912
    %v1838 = vpop.f32.mrb[0].mxu0
    %v1839 = vadd.f32 0.0, %v1838
    %v1840 = vpop.f32.mrb[0].mxu0
    %v1841 = vpop.f32.mrb[0].mxu0
    %v1842 = vadd.f32 0.0, %v1841
    %v1843 = vpop.f32.mrb[0].mxu0
    %1844 = vmatprep.mubr.bf16.mxu0 0
    %1845 = vmatmul.mubr.bf16.gmra.mrb[0].mxu0 %v913
    %v1846 = vpop.f32.mrb[0].mxu0
    %v1847 = vadd.f32 0.0, %v1846
    %v1848 = vpop.f32.mrb[0].mxu0
    %v1849 = vpop.f32.mrb[0].mxu0
    %v1850 = vadd.f32 0.0, %v1849
    %v1851 = vpop.f32.mrb[0].mxu0
    %1852 = vmatprep.mubr.bf16.mxu0 0
    %1853 = vmatmul.mubr.bf16.gmra.mrb[0].mxu0 %v914
    %v1854 = vpop.f32.mrb[0].mxu0
    %v1855 = vadd.f32 0.0, %v1854
    %v1856 = vpop.f32.mrb[0].mxu0
    %v1857 = vpop.f32.mrb[0].mxu0
    %v1858 = vadd.f32 0.0, %v1857
    %v1859 = vpop.f32.mrb[0].mxu0
    %1860 = vmatprep.mubr.bf16.mxu0 0
    %1861 = vmatmul.mubr.bf16.gmra.mrb[0].mxu0 %v915
    %v1862 = vpop.f32.mrb[0].mxu0
    %v1863 = vadd.f32 0.0, %v1862
    %v1864 = vpop.f32.mrb[0].mxu0
    %v1865 = vpop.f32.mrb[0].mxu0
    %v1866 = vadd.f32 0.0, %v1865
    %v1867 = vpop.f32.mrb[0].mxu0
    %1868 = vmatprep.mubr.bf16.mxu0 0
    %1869 = vmatmul.mubr.bf16.gmra.mrb[0].mxu0 %v916
    %v1870 = vpop.f32.mrb[0].mxu0
    %v1871 = vadd.f32 0.0, %v1870
    %v1872 = vpop.f32.mrb[0].mxu0
    %v1873 = vpop.f32.mrb[0].mxu0
    %v1874 = vadd.f32 0.0, %v1873
    %v1875 = vpop.f32.mrb[0].mxu0
    %1876 = vmatprep.mubr.bf16.mxu0 0
    %1877 = vmatmul.mubr.bf16.gmra.mrb[0].mxu0 %v917
    %v1878 = vpop.f32.mrb[0].mxu0
    %v1879 = vadd.f32 0.0, %v1878
    %v1880 = vpop.f32.mrb[0].mxu0
    %v1881 = vpop.f32.mrb[0].mxu0
    %v1882 = vadd.f32 0.0, %v1881
    %v1883 = vpop.f32.mrb[0].mxu0
    %1884 = vmatprep.mubr.bf16.mxu0 0
    %1885 = vmatmul.mubr.bf16.gmra.mrb[0].mxu0 %v918
    %v1886 = vpop.f32.mrb[0].mxu0
    %v1887 = vadd.f32 0.0, %v1886
    %v1888 = vpop.f32.mrb[0].mxu0
    %v1889 = vpop.f32.mrb[0].mxu0
    %v1890 = vadd.f32 0.0, %v1889
    %v1891 = vpop.f32.mrb[0].mxu0
    %1892 = vmatprep.mubr.bf16.mxu0 0
    %1893 = vmatmul.mubr.bf16.gmra.mrb[0].mxu0 %v919
    %v1894 = vpop.f32.mrb[0].mxu0
    %v1895 = vadd.f32 0.0, %v1894
    %v1896 = vpop.f32.mrb[0].mxu0
    %v1897 = vpop.f32.mrb[0].mxu0
    %v1898 = vadd.f32 0.0, %v1897
    %v1899 = vpop.f32.mrb[0].mxu0
    %1900 = vmatprep.mubr.bf16.mxu0 0
    %1901 = vmatmul.mubr.bf16.gmra.mrb[0].mxu0 %v920
    %v1902 = vpop.f32.mrb[0].mxu0
    %v1903 = vadd.f32 0.0, %v1902
    %v1904 = vpop.f32.mrb[0].mxu0
    %v1905 = vpop.f32.mrb[0].mxu0
    %v1906 = vadd.f32 0.0, %v1905
    %v1907 = vpop.f32.mrb[0].mxu0
    %1908 = vmatprep.mubr.bf16.mxu0 0
    %1909 = vmatmul.mubr.bf16.gmra.mrb[0].mxu0 %v921
    %v1910 = vpop.f32.mrb[0].mxu0
    %v1911 = vadd.f32 0.0, %v1910
    %v1912 = vpop.f32.mrb[0].mxu0
    %v1913 = vpop.f32.mrb[0].mxu0
    %v1914 = vadd.f32 0.0, %v1913
    %v1915 = vpop.f32.mrb[0].mxu0
    %1916 = vmatprep.mubr.bf16.mxu0 0
    %1917 = vmatmul.mubr.bf16.gmra.mrb[0].mxu0 %v922
    %v1918 = vpop.f32.mrb[0].mxu0
    %v1919 = vadd.f32 0.0, %v1918
    %v1920 = vpop.f32.mrb[0].mxu0
    %v1921 = vpop.f32.mrb[0].mxu0
    %v1922 = vadd.f32 0.0, %v1921
    %v1923 = vpop.f32.mrb[0].mxu0
    %1924 = vmatprep.mubr.bf16.mxu0 0
    %1925 = vmatmul.mubr.bf16.gmra.mrb[0].mxu0 %v923
    %v1926 = vpop.f32.mrb[0].mxu0
    %v1927 = vadd.f32 0.0, %v1926
    %v1928 = vpop.f32.mrb[0].mxu0
    %v1929 = vpop.f32.mrb[0].mxu0
    %v1930 = vadd.f32 0.0, %v1929
    %v1931 = vpop.f32.mrb[0].mxu0
    %1932 = vmatprep.mubr.bf16.mxu0 0
    %1933 = vmatmul.mubr.bf16.gmra.mrb[0].mxu0 %v924
    %v1934 = vpop.f32.mrb[0].mxu0
    %v1935 = vadd.f32 0.0, %v1934
    %v1936 = vpop.f32.mrb[0].mxu0
    %v1937 = vpop.f32.mrb[0].mxu0
    %v1938 = vadd.f32 0.0, %v1937
    %v1939 = vpop.f32.mrb[0].mxu0
    %1940 = vmatprep.mubr.bf16.mxu0 0
    %1941 = vmatmul.mubr.bf16.gmra.mrb[0].mxu0 %v925
    %v1942 = vpop.f32.mrb[0].mxu0
    %v1943 = vadd.f32 0.0, %v1942
    %v1944 = vpop.f32.mrb[0].mxu0
    %v1945 = vpop.f32.mrb[0].mxu0
    %v1946 = vadd.f32 0.0, %v1945
    %v1947 = vpop.f32.mrb[0].mxu0
    %1948 = vmatprep.mubr.bf16.mxu0 0
    %1949 = vmatmul.mubr.bf16.gmra.mrb[0].mxu0 %v926
    %v1950 = vpop.f32.mrb[0].mxu0
    %v1951 = vadd.f32 0.0, %v1950
    %v1952 = vpop.f32.mrb[0].mxu0
    %v1953 = vpop.f32.mrb[0].mxu0
    %v1954 = vadd.f32 0.0, %v1953
    %v1955 = vpop.f32.mrb[0].mxu0
    %1956 = vmatprep.mubr.bf16.mxu0 0
    %1957 = vmatmul.mubr.bf16.gmra.mrb[0].mxu0 %v927
    %v1958 = vpop.f32.mrb[0].mxu0
    %v1959 = vadd.f32 0.0, %v1958
    %v1960 = vpop.f32.mrb[0].mxu0
    %v1961 = vpop.f32.mrb[0].mxu0
    %v1962 = vadd.f32 0.0, %v1961
    %v1963 = vpop.f32.mrb[0].mxu0
    %1964 = vmatprep.mubr.bf16.mxu0 0
    %1965 = vmatmul.mubr.bf16.gmra.mrb[0].mxu0 %v928
    %v1966 = vpop.f32.mrb[0].mxu0
    %v1967 = vadd.f32 0.0, %v1966
    %v1968 = vpop.f32.mrb[0].mxu0
    %v1969 = vpop.f32.mrb[0].mxu0
    %v1970 = vadd.f32 0.0, %v1969
    %v1971 = vpop.f32.mrb[0].mxu0
    %1972 = vmatprep.mubr.bf16.mxu0 0
    %1973 = vmatmul.mubr.bf16.gmra.mrb[0].mxu0 %v929
    %v1974 = vpop.f32.mrb[0].mxu0
    %v1975 = vadd.f32 0.0, %v1974
    %v1976 = vpop.f32.mrb[0].mxu0
    %v1977 = vpop.f32.mrb[0].mxu0
    %v1978 = vadd.f32 0.0, %v1977
    %v1979 = vpop.f32.mrb[0].mxu0
    %1980 = vmatprep.mubr.bf16.mxu0 0
    %1981 = vmatmul.mubr.bf16.gmra.mrb[0].mxu0 %v930
    %v1982 = vpop.f32.mrb[0].mxu0
    %v1983 = vadd.f32 0.0, %v1982
    %v1984 = vpop.f32.mrb[0].mxu0
    %v1985 = vpop.f32.mrb[0].mxu0
    %v1986 = vadd.f32 0.0, %v1985
    %v1987 = vpop.f32.mrb[0].mxu0
    %1988 = vmatprep.mubr.bf16.mxu0 0
    %1989 = vmatmul.mubr.bf16.gmra.mrb[0].mxu0 %v931
    %v1990 = vpop.f32.mrb[0].mxu0
    %v1991 = vadd.f32 0.0, %v1990
    %v1992 = vpop.f32.mrb[0].mxu0
    %v1993 = vpop.f32.mrb[0].mxu0
    %v1994 = vadd.f32 0.0, %v1993
    %v1995 = vpop.f32.mrb[0].mxu0
    %1996 = vmatprep.mubr.bf16.mxu0 0
    %1997 = vmatmul.mubr.bf16.gmra.mrb[0].mxu0 %v932
    %v1998 = vpop.f32.mrb[0].mxu0
    %v1999 = vadd.f32 0.0, %v1998
    %v2000 = vpop.f32.mrb[0].mxu0
    %v2001 = vpop.f32.mrb[0].mxu0
    %v2002 = vadd.f32 0.0, %v2001
    %v2003 = vpop.f32.mrb[0].mxu0
    %2004 = vmatprep.mubr.bf16.mxu0 0
    %2005 = vmatmul.mubr.bf16.gmra.mrb[0].mxu0 %v933
    %v2006 = vpop.f32.mrb[0].mxu0
    %v2007 = vadd.f32 0.0, %v2006
    %v2008 = vpop.f32.mrb[0].mxu0
    %v2009 = vpop.f32.mrb[0].mxu0
    %v2010 = vadd.f32 0.0, %v2009
    %v2011 = vpop.f32.mrb[0].mxu0
    %2012 = vmatprep.mubr.bf16.mxu0 0
    %2013 = vmatmul.mubr.bf16.gmra.mrb[0].mxu0 %v934
    %v2014 = vpop.f32.mrb[0].mxu0
    %v2015 = vadd.f32 0.0, %v2014
    %v2016 = vpop.f32.mrb[0].mxu0
    %v2017 = vpop.f32.mrb[0].mxu0
    %v2018 = vadd.f32 0.0, %v2017
    %v2019 = vpop.f32.mrb[0].mxu0
    %2020 = vmatprep.mubr.bf16.mxu0 0
    %2021 = vmatmul.mubr.bf16.gmra.mrb[0].mxu0 %v935
    %v2022 = vpop.f32.mrb[0].mxu0
    %v2023 = vadd.f32 0.0, %v2022
    %v2024 = vpop.f32.mrb[0].mxu0
    %v2025 = vpop.f32.mrb[0].mxu0
    %v2026 = vadd.f32 0.0, %v2025
    %v2027 = vpop.f32.mrb[0].mxu0
    %2028 = vmatprep.mubr.bf16.mxu0 0
    %2029 = vmatmul.mubr.bf16.gmra.mrb[0].mxu0 %v936
    %v2030 = vpop.f32.mrb[0].mxu0
    %v2031 = vadd.f32 0.0, %v2030
    %v2032 = vpop.f32.mrb[0].mxu0
    %v2033 = vpop.f32.mrb[0].mxu0
    %v2034 = vadd.f32 0.0, %v2033
    %v2035 = vpop.f32.mrb[0].mxu0
    %2036 = vmatprep.mubr.bf16.mxu0 0
    %2037 = vmatmul.mubr.bf16.gmra.mrb[0].mxu0 %v937
    %v2038 = vpop.f32.mrb[0].mxu0
    %v2039 = vadd.f32 0.0, %v2038
    %v2040 = vpop.f32.mrb[0].mxu0
    %v2041 = vpop.f32.mrb[0].mxu0
    %v2042 = vadd.f32 0.0, %v2041
    %v2043 = vpop.f32.mrb[0].mxu0
    %2044 = vmatprep.mubr.bf16.mxu0 0
    %2045 = vmatmul.mubr.bf16.gmra.mrb[0].mxu0 %v938
    %v2046 = vpop.f32.mrb[0].mxu0
    %v2047 = vadd.f32 0.0, %v2046
    %v2048 = vpop.f32.mrb[0].mxu0
    %v2049 = vpop.f32.mrb[0].mxu0
    %v2050 = vadd.f32 0.0, %v2049
    %v2051 = vpop.f32.mrb[0].mxu0
    %2052 = vmatprep.mubr.bf16.mxu0 0
    %2053 = vmatmul.mubr.bf16.gmra.mrb[0].mxu0 %v939
    %v2054 = vpop.f32.mrb[0].mxu0
    %v2055 = vadd.f32 0.0, %v2054
    %v2056 = vpop.f32.mrb[0].mxu0
    %v2057 = vpop.f32.mrb[0].mxu0
    %v2058 = vadd.f32 0.0, %v2057
    %v2059 = vpop.f32.mrb[0].mxu0
    %2060 = vmatprep.mubr.bf16.mxu0 0
    %2061 = vmatmul.mubr.bf16.gmra.mrb[0].mxu0 %v940
    %v2062 = vpop.f32.mrb[0].mxu0
    %v2063 = vadd.f32 0.0, %v2062
    %v2064 = vpop.f32.mrb[0].mxu0
    %v2065 = vpop.f32.mrb[0].mxu0
    %v2066 = vadd.f32 0.0, %v2065
    %v2067 = vpop.f32.mrb[0].mxu0
    %2068 = vmatprep.mubr.bf16.mxu0 0
    %2069 = vmatmul.mubr.bf16.gmra.mrb[0].mxu0 %v941
    %v2070 = vpop.f32.mrb[0].mxu0
    %v2071 = vadd.f32 0.0, %v2070
    %v2072 = vpop.f32.mrb[0].mxu0
    %v2073 = vpop.f32.mrb[0].mxu0
    %v2074 = vadd.f32 0.0, %v2073
    %v2075 = vpop.f32.mrb[0].mxu0
    %2076 = vmatprep.mubr.bf16.mxu0 0
    %2077 = vmatmul.mubr.bf16.gmra.mrb[0].mxu0 %v942
    %v2078 = vpop.f32.mrb[0].mxu0
    %v2079 = vadd.f32 0.0, %v2078
    %v2080 = vpop.f32.mrb[0].mxu0
    %v2081 = vpop.f32.mrb[0].mxu0
    %v2082 = vadd.f32 0.0, %v2081
    %v2083 = vpop.f32.mrb[0].mxu0
    %2084 = vmatprep.mubr.bf16.mxu0 0
    %2085 = vmatmul.mubr.bf16.gmra.mrb[0].mxu0 %v943
    %v2086 = vpop.f32.mrb[0].mxu0
    %v2087 = vadd.f32 0.0, %v2086
    %v2088 = vpop.f32.mrb[0].mxu0
    %v2089 = vpop.f32.mrb[0].mxu0
    %v2090 = vadd.f32 0.0, %v2089
    %v2091 = vpop.f32.mrb[0].mxu0
    %2092 = vmatprep.mubr.bf16.mxu0 0
    %2093 = vmatmul.mubr.bf16.gmra.mrb[0].mxu0 %v944
    %v2094 = vpop.f32.mrb[0].mxu0
    %v2095 = vadd.f32 0.0, %v2094
    %v2096 = vpop.f32.mrb[0].mxu0
    %v2097 = vpop.f32.mrb[0].mxu0
    %v2098 = vadd.f32 0.0, %v2097
    %v2099 = vpop.f32.mrb[0].mxu0
    %2100 = vmatprep.mubr.bf16.mxu0 0
    %2101 = vmatmul.mubr.bf16.gmra.mrb[0].mxu0 %v945
    %v2102 = vpop.f32.mrb[0].mxu0
    %v2103 = vadd.f32 0.0, %v2102
    %v2104 = vpop.f32.mrb[0].mxu0
    %v2105 = vpop.f32.mrb[0].mxu0
    %v2106 = vadd.f32 0.0, %v2105
    %v2107 = vpop.f32.mrb[0].mxu0
    %2108 = vmatprep.mubr.bf16.mxu0 0
    %2109 = vmatmul.mubr.bf16.gmra.mrb[0].mxu0 %v946
    %v2110 = vpop.f32.mrb[0].mxu0
    %v2111 = vadd.f32 0.0, %v2110
    %v2112 = vpop.f32.mrb[0].mxu0
    %v2113 = vpop.f32.mrb[0].mxu0
    %v2114 = vadd.f32 0.0, %v2113
    %v2115 = vpop.f32.mrb[0].mxu0
    %2116 = vmatprep.mubr.bf16.mxu0 0
    %2117 = vmatmul.mubr.bf16.gmra.mrb[0].mxu0 %v947
    %v2118 = vpop.f32.mrb[0].mxu0
    %v2119 = vadd.f32 0.0, %v2118
    %v2120 = vpop.f32.mrb[0].mxu0
    %v2121 = vpop.f32.mrb[0].mxu0
    %v2122 = vadd.f32 0.0, %v2121
    %v2123 = vpop.f32.mrb[0].mxu0
    %2124 = vmatprep.mubr.bf16.mxu0 0
    %2125 = vmatmul.mubr.bf16.gmra.mrb[0].mxu0 %v948
    %v2126 = vpop.f32.mrb[0].mxu0
    %v2127 = vadd.f32 0.0, %v2126
    %v2128 = vpop.f32.mrb[0].mxu0
    %v2129 = vpop.f32.mrb[0].mxu0
    %v2130 = vadd.f32 0.0, %v2129
    %v2131 = vpop.f32.mrb[0].mxu0
    %2132 = vmatprep.mubr.bf16.mxu0 0
    %2133 = vmatmul.mubr.bf16.gmra.mrb[0].mxu0 %v949
    %v2134 = vpop.f32.mrb[0].mxu0
    %v2135 = vadd.f32 0.0, %v2134
    %v2136 = vpop.f32.mrb[0].mxu0
    %v2137 = vpop.f32.mrb[0].mxu0
    %v2138 = vadd.f32 0.0, %v2137
    %v2139 = vpop.f32.mrb[0].mxu0
    %2140 = vmatprep.mubr.bf16.mxu0 0
    %2141 = vmatmul.mubr.bf16.gmra.mrb[0].mxu0 %v950
    %v2142 = vpop.f32.mrb[0].mxu0
    %v2143 = vadd.f32 0.0, %v2142
    %v2144 = vpop.f32.mrb[0].mxu0
    %v2145 = vpop.f32.mrb[0].mxu0
    %v2146 = vadd.f32 0.0, %v2145
    %v2147 = vpop.f32.mrb[0].mxu0
    %2148 = vmatprep.mubr.bf16.mxu0 0
    %2149 = vmatmul.mubr.bf16.gmra.mrb[0].mxu0 %v951
    %v2150 = vpop.f32.mrb[0].mxu0
    %v2151 = vadd.f32 0.0, %v2150
    %v2152 = vpop.f32.mrb[0].mxu0
    %v2153 = vpop.f32.mrb[0].mxu0
    %v2154 = vadd.f32 0.0, %v2153
    %v2155 = vpop.f32.mrb[0].mxu0
    %2156 = vmatprep.mubr.bf16.mxu0 0
    %2157 = vmatmul.mubr.bf16.gmra.mrb[0].mxu0 %v952
    %v2158 = vpop.f32.mrb[0].mxu0
    %v2159 = vadd.f32 0.0, %v2158
    %v2160 = vpop.f32.mrb[0].mxu0
    %v2161 = vpop.f32.mrb[0].mxu0
    %v2162 = vadd.f32 0.0, %v2161
    %v2163 = vpop.f32.mrb[0].mxu0
    %2164 = vmatprep.mubr.bf16.mxu0 0
    %2165 = vmatmul.mubr.bf16.gmra.mrb[0].mxu0 %v953
    %v2166 = vpop.f32.mrb[0].mxu0
    %v2167 = vadd.f32 0.0, %v2166
    %v2168 = vpop.f32.mrb[0].mxu0
    %v2169 = vpop.f32.mrb[0].mxu0
    %v2170 = vadd.f32 0.0, %v2169
    %v2171 = vpop.f32.mrb[0].mxu0
    %2172 = vmatprep.mubr.bf16.mxu0 0
    %2173 = vmatmul.mubr.bf16.gmra.mrb[0].mxu0 %v954
    %v2174 = vpop.f32.mrb[0].mxu0
    %v2175 = vadd.f32 0.0, %v2174
    %v2176 = vpop.f32.mrb[0].mxu0
    %v2177 = vpop.f32.mrb[0].mxu0
    %v2178 = vadd.f32 0.0, %v2177
    %v2179 = vpop.f32.mrb[0].mxu0
    %2180 = vmatprep.mubr.bf16.mxu0 0
    %2181 = vmatmul.mubr.bf16.gmra.mrb[0].mxu0 %v955
    %v2182 = vpop.f32.mrb[0].mxu0
    %v2183 = vadd.f32 0.0, %v2182
    %v2184 = vpop.f32.mrb[0].mxu0
    %v2185 = vpop.f32.mrb[0].mxu0
    %v2186 = vadd.f32 0.0, %v2185
    %v2187 = vpop.f32.mrb[0].mxu0
    %2188 = vdwg.mxu0
    %v2189 = vadd.f32 %v1167, %v1170
    %v2190 = vadd.f32 %v2189, %v1175
    %v2191 = vadd.f32 %v2190, %v1178
    %v2192 = vadd.f32 %v2191, %v1183
    %v2193 = vadd.f32 %v2192, %v1186
    %v2194 = vadd.f32 %v2193, %v1191
    %v2195 = vadd.f32 %v2194, %v1194
    %v2196 = vadd.f32 %v2195, %v1199
    %v2197 = vadd.f32 %v2196, %v1202
    %v2198 = vadd.f32 %v2197, %v1207
    %v2199 = vadd.f32 %v2198, %v1210
    %v2200 = vadd.f32 %v2199, %v1215
    %v2201 = vadd.f32 %v2200, %v1218
    %v2202 = vadd.f32 %v2201, %v1223
    %v2203 = vadd.f32 %v2202, %v1226
    %v2204 = vadd.f32 %v2203, %v1231
    %v2205 = vadd.f32 %v2204, %v1234
    %v2206 = vadd.f32 %v2205, %v1239
    %v2207 = vadd.f32 %v2206, %v1242
    %v2208 = vadd.f32 %v2207, %v1247
    %v2209 = vadd.f32 %v2208, %v1250
    %v2210 = vadd.f32 %v2209, %v1255
    %v2211 = vadd.f32 %v2210, %v1258
    %v2212 = vadd.f32 %v2211, %v1263
    %v2213 = vadd.f32 %v2212, %v1266
    %v2214 = vadd.f32 %v2213, %v1271
    %v2215 = vadd.f32 %v2214, %v1274
    %v2216 = vadd.f32 %v2215, %v1279
    %v2217 = vadd.f32 %v2216, %v1282
    %v2218 = vadd.f32 %v2217, %v1287
    %v2219 = vadd.f32 %v2218, %v1290
    %v2220 = vadd.f32 %v2219, %v1295
    %v2221 = vadd.f32 %v2220, %v1298
    %v2222 = vadd.f32 %v2221, %v1303
    %v2223 = vadd.f32 %v2222, %v1306
    %v2224 = vadd.f32 %v2223, %v1311
    %v2225 = vadd.f32 %v2224, %v1314
    %v2226 = vadd.f32 %v2225, %v1319
    %v2227 = vadd.f32 %v2226, %v1322
    %v2228 = vadd.f32 %v2227, %v1327
    %v2229 = vadd.f32 %v2228, %v1330
    %v2230 = vadd.f32 %v2229, %v1335
    %v2231 = vadd.f32 %v2230, %v1338
    %v2232 = vadd.f32 %v2231, %v1343
    %v2233 = vadd.f32 %v2232, %v1346
    %v2234 = vadd.f32 %v2233, %v1351
    %v2235 = vadd.f32 %v2234, %v1354
    %v2236 = vadd.f32 %v2235, %v1359
    %v2237 = vadd.f32 %v2236, %v1362
    %v2238 = vadd.f32 %v2237, %v1367
    %v2239 = vadd.f32 %v2238, %v1370
    %v2240 = vadd.f32 %v2239, %v1375
    %v2241 = vadd.f32 %v2240, %v1378
    %v2242 = vadd.f32 %v2241, %v1383
    %v2243 = vadd.f32 %v2242, %v1386
    %v2244 = vadd.f32 %v2243, %v1391
    %v2245 = vadd.f32 %v2244, %v1394
    %v2246 = vadd.f32 %v2245, %v1399
    %v2247 = vadd.f32 %v2246, %v1402
    %v2248 = vadd.f32 %v2247, %v1407
    %v2249 = vadd.f32 %v2248, %v1410
    %v2250 = vadd.f32 %v2249, %v1415
    %v2251 = vadd.f32 %v2250, %v1418
    %v2252 = vadd.f32 %v2251, %v1423
    %v2253 = vadd.f32 %v2252, %v1426
    %v2254 = vadd.f32 %v2253, %v1431
    %v2255 = vadd.f32 %v2254, %v1434
    %v2256 = vadd.f32 %v2255, %v1439
    %v2257 = vadd.f32 %v2256, %v1442
    %v2258 = vadd.f32 %v2257, %v1447
    %v2259 = vadd.f32 %v2258, %v1450
    %v2260 = vadd.f32 %v2259, %v1455
    %v2261 = vadd.f32 %v2260, %v1458
    %v2262 = vadd.f32 %v2261, %v1463
    %v2263 = vadd.f32 %v2262, %v1466
    %v2264 = vadd.f32 %v2263, %v1471
    %v2265 = vadd.f32 %v2264, %v1474
    %v2266 = vadd.f32 %v2265, %v1479
    %v2267 = vadd.f32 %v2266, %v1482
    %v2268 = vadd.f32 %v2267, %v1487
    %v2269 = vadd.f32 %v2268, %v1490
    %v2270 = vadd.f32 %v2269, %v1495
    %v2271 = vadd.f32 %v2270, %v1498
    %v2272 = vadd.f32 %v2271, %v1503
    %v2273 = vadd.f32 %v2272, %v1506
    %v2274 = vadd.f32 %v2273, %v1511
    %v2275 = vadd.f32 %v2274, %v1514
    %v2276 = vadd.f32 %v2275, %v1519
    %v2277 = vadd.f32 %v2276, %v1522
    %v2278 = vadd.f32 %v2277, %v1527
    %v2279 = vadd.f32 %v2278, %v1530
    %v2280 = vadd.f32 %v2279, %v1535
    %v2281 = vadd.f32 %v2280, %v1538
    %v2282 = vadd.f32 %v2281, %v1543
    %v2283 = vadd.f32 %v2282, %v1546
    %v2284 = vadd.f32 %v2283, %v1551
    %v2285 = vadd.f32 %v2284, %v1554
    %v2286 = vadd.f32 %v2285, %v1559
    %v2287 = vadd.f32 %v2286, %v1562
    %v2288 = vadd.f32 %v2287, %v1567
    %v2289 = vadd.f32 %v2288, %v1570
    %v2290 = vadd.f32 %v2289, %v1575
    %v2291 = vadd.f32 %v2290, %v1578
    %v2292 = vadd.f32 %v2291, %v1583
    %v2293 = vadd.f32 %v2292, %v1586
    %v2294 = vadd.f32 %v2293, %v1591
    %v2295 = vadd.f32 %v2294, %v1594
    %v2296 = vadd.f32 %v2295, %v1599
    %v2297 = vadd.f32 %v2296, %v1602
    %v2298 = vadd.f32 %v2297, %v1607
    %v2299 = vadd.f32 %v2298, %v1610
    %v2300 = vadd.f32 %v2299, %v1615
    %v2301 = vadd.f32 %v2300, %v1618
    %v2302 = vadd.f32 %v2301, %v1623
    %v2303 = vadd.f32 %v2302, %v1626
    %v2304 = vadd.f32 %v2303, %v1631
    %v2305 = vadd.f32 %v2304, %v1634
    %v2306 = vadd.f32 %v2305, %v1639
    %v2307 = vadd.f32 %v2306, %v1642
    %v2308 = vadd.f32 %v2307, %v1647
    %v2309 = vadd.f32 %v2308, %v1650
    %v2310 = vadd.f32 %v2309, %v1655
    %v2311 = vadd.f32 %v2310, %v1658
    %v2312 = vadd.f32 %v2311, %v1663
    %v2313 = vadd.f32 %v2312, %v1666
    %v2314 = vadd.f32 %v2313, %v1671
    %v2315 = vadd.f32 %v2314, %v1674
    %v2316 = vadd.f32 %v2315, %v1679
    %v2317 = vadd.f32 %v2316, %v1682
    %v2318 = vadd.f32 %v2317, %v1687
    %v2319 = vadd.f32 %v2318, %v1690
    %v2320 = vadd.f32 %v2319, %v1695
    %v2321 = vadd.f32 %v2320, %v1698
    %v2322 = vadd.f32 %v2321, %v1703
    %v2323 = vadd.f32 %v2322, %v1706
    %v2324 = vadd.f32 %v2323, %v1711
    %v2325 = vadd.f32 %v2324, %v1714
    %v2326 = vadd.f32 %v2325, %v1719
    %v2327 = vadd.f32 %v2326, %v1722
    %v2328 = vadd.f32 %v2327, %v1727
    %v2329 = vadd.f32 %v2328, %v1730
    %v2330 = vadd.f32 %v2329, %v1735
    %v2331 = vadd.f32 %v2330, %v1738
    %v2332 = vadd.f32 %v2331, %v1743
    %v2333 = vadd.f32 %v2332, %v1746
    %v2334 = vadd.f32 %v2333, %v1751
    %v2335 = vadd.f32 %v2334, %v1754
    %v2336 = vadd.f32 %v2335, %v1759
    %v2337 = vadd.f32 %v2336, %v1762
    %v2338 = vadd.f32 %v2337, %v1767
    %v2339 = vadd.f32 %v2338, %v1770
    %v2340 = vadd.f32 %v2339, %v1775
    %v2341 = vadd.f32 %v2340, %v1778
    %v2342 = vadd.f32 %v2341, %v1783
    %v2343 = vadd.f32 %v2342, %v1786
    %v2344 = vadd.f32 %v2343, %v1791
    %v2345 = vadd.f32 %v2344, %v1794
    %v2346 = vadd.f32 %v2345, %v1799
    %v2347 = vadd.f32 %v2346, %v1802
    %v2348 = vadd.f32 %v2347, %v1807
    %v2349 = vadd.f32 %v2348, %v1810
    %v2350 = vadd.f32 %v2349, %v1815
    %v2351 = vadd.f32 %v2350, %v1818
    %v2352 = vadd.f32 %v2351, %v1823
    %v2353 = vadd.f32 %v2352, %v1826
    %v2354 = vadd.f32 %v2353, %v1831
    %v2355 = vadd.f32 %v2354, %v1834
    %v2356 = vadd.f32 %v2355, %v1839
    %v2357 = vadd.f32 %v2356, %v1842
    %v2358 = vadd.f32 %v2357, %v1847
    %v2359 = vadd.f32 %v2358, %v1850
    %v2360 = vadd.f32 %v2359, %v1855
    %v2361 = vadd.f32 %v2360, %v1858
    %v2362 = vadd.f32 %v2361, %v1863
    %v2363 = vadd.f32 %v2362, %v1866
    %v2364 = vadd.f32 %v2363, %v1871
    %v2365 = vadd.f32 %v2364, %v1874
    %v2366 = vadd.f32 %v2365, %v1879
    %v2367 = vadd.f32 %v2366, %v1882
    %v2368 = vadd.f32 %v2367, %v1887
    %v2369 = vadd.f32 %v2368, %v1890
    %v2370 = vadd.f32 %v2369, %v1895
    %v2371 = vadd.f32 %v2370, %v1898
    %v2372 = vadd.f32 %v2371, %v1903
    %v2373 = vadd.f32 %v2372, %v1906
    %v2374 = vadd.f32 %v2373, %v1911
    %v2375 = vadd.f32 %v2374, %v1914
    %v2376 = vadd.f32 %v2375, %v1919
    %v2377 = vadd.f32 %v2376, %v1922
    %v2378 = vadd.f32 %v2377, %v1927
    %v2379 = vadd.f32 %v2378, %v1930
    %v2380 = vadd.f32 %v2379, %v1935
    %v2381 = vadd.f32 %v2380, %v1938
    %v2382 = vadd.f32 %v2381, %v1943
    %v2383 = vadd.f32 %v2382, %v1946
    %v2384 = vadd.f32 %v2383, %v1951
    %v2385 = vadd.f32 %v2384, %v1954
    %v2386 = vadd.f32 %v2385, %v1959
    %v2387 = vadd.f32 %v2386, %v1962
    %v2388 = vadd.f32 %v2387, %v1967
    %v2389 = vadd.f32 %v2388, %v1970
    %v2390 = vadd.f32 %v2389, %v1975
    %v2391 = vadd.f32 %v2390, %v1978
    %v2392 = vadd.f32 %v2391, %v1983
    %v2393 = vadd.f32 %v2392, %v1986
    %v2394 = vadd.f32 %v2393, %v1991
    %v2395 = vadd.f32 %v2394, %v1994
    %v2396 = vadd.f32 %v2395, %v1999
    %v2397 = vadd.f32 %v2396, %v2002
    %v2398 = vadd.f32 %v2397, %v2007
    %v2399 = vadd.f32 %v2398, %v2010
    %v2400 = vadd.f32 %v2399, %v2015
    %v2401 = vadd.f32 %v2400, %v2018
    %v2402 = vadd.f32 %v2401, %v2023
    %v2403 = vadd.f32 %v2402, %v2026
    %v2404 = vadd.f32 %v2403, %v2031
    %v2405 = vadd.f32 %v2404, %v2034
    %v2406 = vadd.f32 %v2405, %v2039
    %v2407 = vadd.f32 %v2406, %v2042
    %v2408 = vadd.f32 %v2407, %v2047
    %v2409 = vadd.f32 %v2408, %v2050
    %v2410 = vadd.f32 %v2409, %v2055
    %v2411 = vadd.f32 %v2410, %v2058
    %v2412 = vadd.f32 %v2411, %v2063
    %v2413 = vadd.f32 %v2412, %v2066
    %v2414 = vadd.f32 %v2413, %v2071
    %v2415 = vadd.f32 %v2414, %v2074
    %v2416 = vadd.f32 %v2415, %v2079
    %v2417 = vadd.f32 %v2416, %v2082
    %v2418 = vadd.f32 %v2417, %v2087
    %v2419 = vadd.f32 %v2418, %v2090
    %v2420 = vadd.f32 %v2419, %v2095
    %v2421 = vadd.f32 %v2420, %v2098
    %v2422 = vadd.f32 %v2421, %v2103
    %v2423 = vadd.f32 %v2422, %v2106
    %v2424 = vadd.f32 %v2423, %v2111
    %v2425 = vadd.f32 %v2424, %v2114
    %v2426 = vadd.f32 %v2425, %v2119
    %v2427 = vadd.f32 %v2426, %v2122
    %v2428 = vadd.f32 %v2427, %v2127
    %v2429 = vadd.f32 %v2428, %v2130
    %v2430 = vadd.f32 %v2429, %v2135
    %v2431 = vadd.f32 %v2430, %v2138
    %v2432 = vadd.f32 %v2431, %v2143
    %v2433 = vadd.f32 %v2432, %v2146
    %v2434 = vadd.f32 %v2433, %v2151
    %v2435 = vadd.f32 %v2434, %v2154
    %v2436 = vadd.f32 %v2435, %v2159
    %v2437 = vadd.f32 %v2436, %v2162
    %v2438 = vadd.f32 %v2437, %v2167
    %v2439 = vadd.f32 %v2438, %v2170
    %v2440 = vadd.f32 %v2439, %v2175
    %v2441 = vadd.f32 %v2440, %v2178
    %v2442 = vadd.f32 %v2441, %v2183
    %v2443 = vadd.f32 %v2442, %v2186
    %v2444 = vrot.slane %v2443, 4
    %v2445 = vadd.f32 %v2443, %v2444
    %v2446 = vrot.slane %v2445, 2
    %v2447 = vadd.f32 %v2445, %v2446
    %v2448 = vrot.slane %v2447, 1
    %v2449 = vadd.f32 %v2447, %v2448
    %v2450 = vmul.f32 %v2449, 0.00048828125
    %v2451 = vmul.f32 %v1167, %v1167
    %v2452 = vmul.f32 %v1170, %v1170
    %v2453 = vmul.f32 %v1175, %v1175
    %v2454 = vmul.f32 %v1178, %v1178
    %v2455 = vmul.f32 %v1183, %v1183
    %v2456 = vmul.f32 %v1186, %v1186
    %v2457 = vmul.f32 %v1191, %v1191
    %v2458 = vmul.f32 %v1194, %v1194
    %v2459 = vmul.f32 %v1199, %v1199
    %v2460 = vmul.f32 %v1202, %v1202
    %v2461 = vmul.f32 %v1207, %v1207
    %v2462 = vmul.f32 %v1210, %v1210
    %v2463 = vmul.f32 %v1215, %v1215
    %v2464 = vmul.f32 %v1218, %v1218
    %v2465 = vmul.f32 %v1223, %v1223
    %v2466 = vmul.f32 %v1226, %v1226
    %v2467 = vmul.f32 %v1231, %v1231
    %v2468 = vmul.f32 %v1234, %v1234
    %v2469 = vmul.f32 %v1239, %v1239
    %v2470 = vmul.f32 %v1242, %v1242
    %v2471 = vmul.f32 %v1247, %v1247
    %v2472 = vmul.f32 %v1250, %v1250
    %v2473 = vmul.f32 %v1255, %v1255
    %v2474 = vmul.f32 %v1258, %v1258
    %v2475 = vmul.f32 %v1263, %v1263
    %v2476 = vmul.f32 %v1266, %v1266
    %v2477 = vmul.f32 %v1271, %v1271
    %v2478 = vmul.f32 %v1274, %v1274
    %v2479 = vmul.f32 %v1279, %v1279
    %v2480 = vmul.f32 %v1282, %v1282
    %v2481 = vmul.f32 %v1287, %v1287
    %v2482 = vmul.f32 %v1290, %v1290
    %v2483 = vmul.f32 %v1295, %v1295
    %v2484 = vmul.f32 %v1298, %v1298
    %v2485 = vmul.f32 %v1303, %v1303
    %v2486 = vmul.f32 %v1306, %v1306
    %v2487 = vmul.f32 %v1311, %v1311
    %v2488 = vmul.f32 %v1314, %v1314
    %v2489 = vmul.f32 %v1319, %v1319
    %v2490 = vmul.f32 %v1322, %v1322
    %v2491 = vmul.f32 %v1327, %v1327
    %v2492 = vmul.f32 %v1330, %v1330
    %v2493 = vmul.f32 %v1335, %v1335
    %v2494 = vmul.f32 %v1338, %v1338
    %v2495 = vmul.f32 %v1343, %v1343
    %v2496 = vmul.f32 %v1346, %v1346
    %v2497 = vmul.f32 %v1351, %v1351
    %v2498 = vmul.f32 %v1354, %v1354
    %v2499 = vmul.f32 %v1359, %v1359
    %v2500 = vmul.f32 %v1362, %v1362
    %v2501 = vmul.f32 %v1367, %v1367
    %v2502 = vmul.f32 %v1370, %v1370
    %v2503 = vmul.f32 %v1375, %v1375
    %v2504 = vmul.f32 %v1378, %v1378
    %v2505 = vmul.f32 %v1383, %v1383
    %v2506 = vmul.f32 %v1386, %v1386
    %v2507 = vmul.f32 %v1391, %v1391
    %v2508 = vmul.f32 %v1394, %v1394
    %v2509 = vmul.f32 %v1399, %v1399
    %v2510 = vmul.f32 %v1402, %v1402
    %v2511 = vmul.f32 %v1407, %v1407
    %v2512 = vmul.f32 %v1410, %v1410
    %v2513 = vmul.f32 %v1415, %v1415
    %v2514 = vmul.f32 %v1418, %v1418
    %v2515 = vmul.f32 %v1423, %v1423
    %v2516 = vmul.f32 %v1426, %v1426
    %v2517 = vmul.f32 %v1431, %v1431
    %v2518 = vmul.f32 %v1434, %v1434
    %v2519 = vmul.f32 %v1439, %v1439
    %v2520 = vmul.f32 %v1442, %v1442
    %v2521 = vmul.f32 %v1447, %v1447
    %v2522 = vmul.f32 %v1450, %v1450
    %v2523 = vmul.f32 %v1455, %v1455
    %v2524 = vmul.f32 %v1458, %v1458
    %v2525 = vmul.f32 %v1463, %v1463
    %v2526 = vmul.f32 %v1466, %v1466
    %v2527 = vmul.f32 %v1471, %v1471
    %v2528 = vmul.f32 %v1474, %v1474
    %v2529 = vmul.f32 %v1479, %v1479
    %v2530 = vmul.f32 %v1482, %v1482
    %v2531 = vmul.f32 %v1487, %v1487
    %v2532 = vmul.f32 %v1490, %v1490
    %v2533 = vmul.f32 %v1495, %v1495
    %v2534 = vmul.f32 %v1498, %v1498
    %v2535 = vmul.f32 %v1503, %v1503
    %v2536 = vmul.f32 %v1506, %v1506
    %v2537 = vmul.f32 %v1511, %v1511
    %v2538 = vmul.f32 %v1514, %v1514
    %v2539 = vmul.f32 %v1519, %v1519
    %v2540 = vmul.f32 %v1522, %v1522
    %v2541 = vmul.f32 %v1527, %v1527
    %v2542 = vmul.f32 %v1530, %v1530
    %v2543 = vmul.f32 %v1535, %v1535
    %v2544 = vmul.f32 %v1538, %v1538
    %v2545 = vmul.f32 %v1543, %v1543
    %v2546 = vmul.f32 %v1546, %v1546
    %v2547 = vmul.f32 %v1551, %v1551
    %v2548 = vmul.f32 %v1554, %v1554
    %v2549 = vmul.f32 %v1559, %v1559
    %v2550 = vmul.f32 %v1562, %v1562
    %v2551 = vmul.f32 %v1567, %v1567
    %v2552 = vmul.f32 %v1570, %v1570
    %v2553 = vmul.f32 %v1575, %v1575
    %v2554 = vmul.f32 %v1578, %v1578
    %v2555 = vmul.f32 %v1583, %v1583
    %v2556 = vmul.f32 %v1586, %v1586
    %v2557 = vmul.f32 %v1591, %v1591
    %v2558 = vmul.f32 %v1594, %v1594
    %v2559 = vmul.f32 %v1599, %v1599
    %v2560 = vmul.f32 %v1602, %v1602
    %v2561 = vmul.f32 %v1607, %v1607
    %v2562 = vmul.f32 %v1610, %v1610
    %v2563 = vmul.f32 %v1615, %v1615
    %v2564 = vmul.f32 %v1618, %v1618
    %v2565 = vmul.f32 %v1623, %v1623
    %v2566 = vmul.f32 %v1626, %v1626
    %v2567 = vmul.f32 %v1631, %v1631
    %v2568 = vmul.f32 %v1634, %v1634
    %v2569 = vmul.f32 %v1639, %v1639
    %v2570 = vmul.f32 %v1642, %v1642
    %v2571 = vmul.f32 %v1647, %v1647
    %v2572 = vmul.f32 %v1650, %v1650
    %v2573 = vmul.f32 %v1655, %v1655
    %v2574 = vmul.f32 %v1658, %v1658
    %v2575 = vmul.f32 %v1663, %v1663
    %v2576 = vmul.f32 %v1666, %v1666
    %v2577 = vmul.f32 %v1671, %v1671
    %v2578 = vmul.f32 %v1674, %v1674
    %v2579 = vmul.f32 %v1679, %v1679
    %v2580 = vmul.f32 %v1682, %v1682
    %v2581 = vmul.f32 %v1687, %v1687
    %v2582 = vmul.f32 %v1690, %v1690
    %v2583 = vmul.f32 %v1695, %v1695
    %v2584 = vmul.f32 %v1698, %v1698
    %v2585 = vmul.f32 %v1703, %v1703
    %v2586 = vmul.f32 %v1706, %v1706
    %v2587 = vmul.f32 %v1711, %v1711
    %v2588 = vmul.f32 %v1714, %v1714
    %v2589 = vmul.f32 %v1719, %v1719
    %v2590 = vmul.f32 %v1722, %v1722
    %v2591 = vmul.f32 %v1727, %v1727
    %v2592 = vmul.f32 %v1730, %v1730
    %v2593 = vmul.f32 %v1735, %v1735
    %v2594 = vmul.f32 %v1738, %v1738
    %v2595 = vmul.f32 %v1743, %v1743
    %v2596 = vmul.f32 %v1746, %v1746
    %v2597 = vmul.f32 %v1751, %v1751
    %v2598 = vmul.f32 %v1754, %v1754
    %v2599 = vmul.f32 %v1759, %v1759
    %v2600 = vmul.f32 %v1762, %v1762
    %v2601 = vmul.f32 %v1767, %v1767
    %v2602 = vmul.f32 %v1770, %v1770
    %v2603 = vmul.f32 %v1775, %v1775
    %v2604 = vmul.f32 %v1778, %v1778
    %v2605 = vmul.f32 %v1783, %v1783
    %v2606 = vmul.f32 %v1786, %v1786
    %v2607 = vmul.f32 %v1791, %v1791
    %v2608 = vmul.f32 %v1794, %v1794
    %v2609 = vmul.f32 %v1799, %v1799
    %v2610 = vmul.f32 %v1802, %v1802
    %v2611 = vmul.f32 %v1807, %v1807
    %v2612 = vmul.f32 %v1810, %v1810
    %v2613 = vmul.f32 %v1815, %v1815
    %v2614 = vmul.f32 %v1818, %v1818
    %v2615 = vmul.f32 %v1823, %v1823
    %v2616 = vmul.f32 %v1826, %v1826
    %v2617 = vmul.f32 %v1831, %v1831
    %v2618 = vmul.f32 %v1834, %v1834
    %v2619 = vmul.f32 %v1839, %v1839
    %v2620 = vmul.f32 %v1842, %v1842
    %v2621 = vmul.f32 %v1847, %v1847
    %v2622 = vmul.f32 %v1850, %v1850
    %v2623 = vmul.f32 %v1855, %v1855
    %v2624 = vmul.f32 %v1858, %v1858
    %v2625 = vmul.f32 %v1863, %v1863
    %v2626 = vmul.f32 %v1866, %v1866
    %v2627 = vmul.f32 %v1871, %v1871
    %v2628 = vmul.f32 %v1874, %v1874
    %v2629 = vmul.f32 %v1879, %v1879
    %v2630 = vmul.f32 %v1882, %v1882
    %v2631 = vmul.f32 %v1887, %v1887
    %v2632 = vmul.f32 %v1890, %v1890
    %v2633 = vmul.f32 %v1895, %v1895
    %v2634 = vmul.f32 %v1898, %v1898
    %v2635 = vmul.f32 %v1903, %v1903
    %v2636 = vmul.f32 %v1906, %v1906
    %v2637 = vmul.f32 %v1911, %v1911
    %v2638 = vmul.f32 %v1914, %v1914
    %v2639 = vmul.f32 %v1919, %v1919
    %v2640 = vmul.f32 %v1922, %v1922
    %v2641 = vmul.f32 %v1927, %v1927
    %v2642 = vmul.f32 %v1930, %v1930
    %v2643 = vmul.f32 %v1935, %v1935
    %v2644 = vmul.f32 %v1938, %v1938
    %v2645 = vmul.f32 %v1943, %v1943
    %v2646 = vmul.f32 %v1946, %v1946
    %v2647 = vmul.f32 %v1951, %v1951
    %v2648 = vmul.f32 %v1954, %v1954
    %v2649 = vmul.f32 %v1959, %v1959
    %v2650 = vmul.f32 %v1962, %v1962
    %v2651 = vmul.f32 %v1967, %v1967
    %v2652 = vmul.f32 %v1970, %v1970
    %v2653 = vmul.f32 %v1975, %v1975
    %v2654 = vmul.f32 %v1978, %v1978
    %v2655 = vmul.f32 %v1983, %v1983
    %v2656 = vmul.f32 %v1986, %v1986
    %v2657 = vmul.f32 %v1991, %v1991
    %v2658 = vmul.f32 %v1994, %v1994
    %v2659 = vmul.f32 %v1999, %v1999
    %v2660 = vmul.f32 %v2002, %v2002
    %v2661 = vmul.f32 %v2007, %v2007
    %v2662 = vmul.f32 %v2010, %v2010
    %v2663 = vmul.f32 %v2015, %v2015
    %v2664 = vmul.f32 %v2018, %v2018
    %v2665 = vmul.f32 %v2023, %v2023
    %v2666 = vmul.f32 %v2026, %v2026
    %v2667 = vmul.f32 %v2031, %v2031
    %v2668 = vmul.f32 %v2034, %v2034
    %v2669 = vmul.f32 %v2039, %v2039
    %v2670 = vmul.f32 %v2042, %v2042
    %v2671 = vmul.f32 %v2047, %v2047
    %v2672 = vmul.f32 %v2050, %v2050
    %v2673 = vmul.f32 %v2055, %v2055
    %v2674 = vmul.f32 %v2058, %v2058
    %v2675 = vmul.f32 %v2063, %v2063
    %v2676 = vmul.f32 %v2066, %v2066
    %v2677 = vmul.f32 %v2071, %v2071
    %v2678 = vmul.f32 %v2074, %v2074
    %v2679 = vmul.f32 %v2079, %v2079
    %v2680 = vmul.f32 %v2082, %v2082
    %v2681 = vmul.f32 %v2087, %v2087
    %v2682 = vmul.f32 %v2090, %v2090
    %v2683 = vmul.f32 %v2095, %v2095
    %v2684 = vmul.f32 %v2098, %v2098
    %v2685 = vmul.f32 %v2103, %v2103
    %v2686 = vmul.f32 %v2106, %v2106
    %v2687 = vmul.f32 %v2111, %v2111
    %v2688 = vmul.f32 %v2114, %v2114
    %v2689 = vmul.f32 %v2119, %v2119
    %v2690 = vmul.f32 %v2122, %v2122
    %v2691 = vmul.f32 %v2127, %v2127
    %v2692 = vmul.f32 %v2130, %v2130
    %v2693 = vmul.f32 %v2135, %v2135
    %v2694 = vmul.f32 %v2138, %v2138
    %v2695 = vmul.f32 %v2143, %v2143
    %v2696 = vmul.f32 %v2146, %v2146
    %v2697 = vmul.f32 %v2151, %v2151
    %v2698 = vmul.f32 %v2154, %v2154
    %v2699 = vmul.f32 %v2159, %v2159
    %v2700 = vmul.f32 %v2162, %v2162
    %v2701 = vmul.f32 %v2167, %v2167
    %v2702 = vmul.f32 %v2170, %v2170
    %v2703 = vmul.f32 %v2175, %v2175
    %v2704 = vmul.f32 %v2178, %v2178
    %v2705 = vmul.f32 %v2183, %v2183
    %v2706 = vmul.f32 %v2186, %v2186
    %v2707 = vadd.f32 %v2451, %v2452
    %v2708 = vadd.f32 %v2707, %v2453
    %v2709 = vadd.f32 %v2708, %v2454
    %v2710 = vadd.f32 %v2709, %v2455
    %v2711 = vadd.f32 %v2710, %v2456
    %v2712 = vadd.f32 %v2711, %v2457
    %v2713 = vadd.f32 %v2712, %v2458
    %v2714 = vadd.f32 %v2713, %v2459
    %v2715 = vadd.f32 %v2714, %v2460
    %v2716 = vadd.f32 %v2715, %v2461
    %v2717 = vadd.f32 %v2716, %v2462
    %v2718 = vadd.f32 %v2717, %v2463
    %v2719 = vadd.f32 %v2718, %v2464
    %v2720 = vadd.f32 %v2719, %v2465
    %v2721 = vadd.f32 %v2720, %v2466
    %v2722 = vadd.f32 %v2721, %v2467
    %v2723 = vadd.f32 %v2722, %v2468
    %v2724 = vadd.f32 %v2723, %v2469
    %v2725 = vadd.f32 %v2724, %v2470
    %v2726 = vadd.f32 %v2725, %v2471
    %v2727 = vadd.f32 %v2726, %v2472
    %v2728 = vadd.f32 %v2727, %v2473
    %v2729 = vadd.f32 %v2728, %v2474
    %v2730 = vadd.f32 %v2729, %v2475
    %v2731 = vadd.f32 %v2730, %v2476
    %v2732 = vadd.f32 %v2731, %v2477
    %v2733 = vadd.f32 %v2732, %v2478
    %v2734 = vadd.f32 %v2733, %v2479
    %v2735 = vadd.f32 %v2734, %v2480
    %v2736 = vadd.f32 %v2735, %v2481
    %v2737 = vadd.f32 %v2736, %v2482
    %v2738 = vadd.f32 %v2737, %v2483
    %v2739 = vadd.f32 %v2738, %v2484
    %v2740 = vadd.f32 %v2739, %v2485
    %v2741 = vadd.f32 %v2740, %v2486
    %v2742 = vadd.f32 %v2741, %v2487
    %v2743 = vadd.f32 %v2742, %v2488
    %v2744 = vadd.f32 %v2743, %v2489
    %v2745 = vadd.f32 %v2744, %v2490
    %v2746 = vadd.f32 %v2745, %v2491
    %v2747 = vadd.f32 %v2746, %v2492
    %v2748 = vadd.f32 %v2747, %v2493
    %v2749 = vadd.f32 %v2748, %v2494
    %v2750 = vadd.f32 %v2749, %v2495
    %v2751 = vadd.f32 %v2750, %v2496
    %v2752 = vadd.f32 %v2751, %v2497
    %v2753 = vadd.f32 %v2752, %v2498
    %v2754 = vadd.f32 %v2753, %v2499
    %v2755 = vadd.f32 %v2754, %v2500
    %v2756 = vadd.f32 %v2755, %v2501
    %v2757 = vadd.f32 %v2756, %v2502
    %v2758 = vadd.f32 %v2757, %v2503
    %v2759 = vadd.f32 %v2758, %v2504
    %v2760 = vadd.f32 %v2759, %v2505
    %v2761 = vadd.f32 %v2760, %v2506
    %v2762 = vadd.f32 %v2761, %v2507
    %v2763 = vadd.f32 %v2762, %v2508
    %v2764 = vadd.f32 %v2763, %v2509
    %v2765 = vadd.f32 %v2764, %v2510
    %v2766 = vadd.f32 %v2765, %v2511
    %v2767 = vadd.f32 %v2766, %v2512
    %v2768 = vadd.f32 %v2767, %v2513
    %v2769 = vadd.f32 %v2768, %v2514
    %v2770 = vadd.f32 %v2769, %v2515
    %v2771 = vadd.f32 %v2770, %v2516
    %v2772 = vadd.f32 %v2771, %v2517
    %v2773 = vadd.f32 %v2772, %v2518
    %v2774 = vadd.f32 %v2773, %v2519
    %v2775 = vadd.f32 %v2774, %v2520
    %v2776 = vadd.f32 %v2775, %v2521
    %v2777 = vadd.f32 %v2776, %v2522
    %v2778 = vadd.f32 %v2777, %v2523
    %v2779 = vadd.f32 %v2778, %v2524
    %v2780 = vadd.f32 %v2779, %v2525
    %v2781 = vadd.f32 %v2780, %v2526
    %v2782 = vadd.f32 %v2781, %v2527
    %v2783 = vadd.f32 %v2782, %v2528
    %v2784 = vadd.f32 %v2783, %v2529
    %v2785 = vadd.f32 %v2784, %v2530
    %v2786 = vadd.f32 %v2785, %v2531
    %v2787 = vadd.f32 %v2786, %v2532
    %v2788 = vadd.f32 %v2787, %v2533
    %v2789 = vadd.f32 %v2788, %v2534
    %v2790 = vadd.f32 %v2789, %v2535
    %v2791 = vadd.f32 %v2790, %v2536
    %v2792 = vadd.f32 %v2791, %v2537
    %v2793 = vadd.f32 %v2792, %v2538
    %v2794 = vadd.f32 %v2793, %v2539
    %v2795 = vadd.f32 %v2794, %v2540
    %v2796 = vadd.f32 %v2795, %v2541
    %v2797 = vadd.f32 %v2796, %v2542
    %v2798 = vadd.f32 %v2797, %v2543
    %v2799 = vadd.f32 %v2798, %v2544
    %v2800 = vadd.f32 %v2799, %v2545
    %v2801 = vadd.f32 %v2800, %v2546
    %v2802 = vadd.f32 %v2801, %v2547
    %v2803 = vadd.f32 %v2802, %v2548
    %v2804 = vadd.f32 %v2803, %v2549
    %v2805 = vadd.f32 %v2804, %v2550
    %v2806 = vadd.f32 %v2805, %v2551
    %v2807 = vadd.f32 %v2806, %v2552
    %v2808 = vadd.f32 %v2807, %v2553
    %v2809 = vadd.f32 %v2808, %v2554
    %v2810 = vadd.f32 %v2809, %v2555
    %v2811 = vadd.f32 %v2810, %v2556
    %v2812 = vadd.f32 %v2811, %v2557
    %v2813 = vadd.f32 %v2812, %v2558
    %v2814 = vadd.f32 %v2813, %v2559
    %v2815 = vadd.f32 %v2814, %v2560
    %v2816 = vadd.f32 %v2815, %v2561
    %v2817 = vadd.f32 %v2816, %v2562
    %v2818 = vadd.f32 %v2817, %v2563
    %v2819 = vadd.f32 %v2818, %v2564
    %v2820 = vadd.f32 %v2819, %v2565
    %v2821 = vadd.f32 %v2820, %v2566
    %v2822 = vadd.f32 %v2821, %v2567
    %v2823 = vadd.f32 %v2822, %v2568
    %v2824 = vadd.f32 %v2823, %v2569
    %v2825 = vadd.f32 %v2824, %v2570
    %v2826 = vadd.f32 %v2825, %v2571
    %v2827 = vadd.f32 %v2826, %v2572
    %v2828 = vadd.f32 %v2827, %v2573
    %v2829 = vadd.f32 %v2828, %v2574
    %v2830 = vadd.f32 %v2829, %v2575
    %v2831 = vadd.f32 %v2830, %v2576
    %v2832 = vadd.f32 %v2831, %v2577
    %v2833 = vadd.f32 %v2832, %v2578
    %v2834 = vadd.f32 %v2833, %v2579
    %v2835 = vadd.f32 %v2834, %v2580
    %v2836 = vadd.f32 %v2835, %v2581
    %v2837 = vadd.f32 %v2836, %v2582
    %v2838 = vadd.f32 %v2837, %v2583
    %v2839 = vadd.f32 %v2838, %v2584
    %v2840 = vadd.f32 %v2839, %v2585
    %v2841 = vadd.f32 %v2840, %v2586
    %v2842 = vadd.f32 %v2841, %v2587
    %v2843 = vadd.f32 %v2842, %v2588
    %v2844 = vadd.f32 %v2843, %v2589
    %v2845 = vadd.f32 %v2844, %v2590
    %v2846 = vadd.f32 %v2845, %v2591
    %v2847 = vadd.f32 %v2846, %v2592
    %v2848 = vadd.f32 %v2847, %v2593
    %v2849 = vadd.f32 %v2848, %v2594
    %v2850 = vadd.f32 %v2849, %v2595
    %v2851 = vadd.f32 %v2850, %v2596
    %v2852 = vadd.f32 %v2851, %v2597
    %v2853 = vadd.f32 %v2852, %v2598
    %v2854 = vadd.f32 %v2853, %v2599
    %v2855 = vadd.f32 %v2854, %v2600
    %v2856 = vadd.f32 %v2855, %v2601
    %v2857 = vadd.f32 %v2856, %v2602
    %v2858 = vadd.f32 %v2857, %v2603
    %v2859 = vadd.f32 %v2858, %v2604
    %v2860 = vadd.f32 %v2859, %v2605
    %v2861 = vadd.f32 %v2860, %v2606
    %v2862 = vadd.f32 %v2861, %v2607
    %v2863 = vadd.f32 %v2862, %v2608
    %v2864 = vadd.f32 %v2863, %v2609
    %v2865 = vadd.f32 %v2864, %v2610
    %v2866 = vadd.f32 %v2865, %v2611
    %v2867 = vadd.f32 %v2866, %v2612
    %v2868 = vadd.f32 %v2867, %v2613
    %v2869 = vadd.f32 %v2868, %v2614
    %v2870 = vadd.f32 %v2869, %v2615
    %v2871 = vadd.f32 %v2870, %v2616
    %v2872 = vadd.f32 %v2871, %v2617
    %v2873 = vadd.f32 %v2872, %v2618
    %v2874 = vadd.f32 %v2873, %v2619
    %v2875 = vadd.f32 %v2874, %v2620
    %v2876 = vadd.f32 %v2875, %v2621
    %v2877 = vadd.f32 %v2876, %v2622
    %v2878 = vadd.f32 %v2877, %v2623
    %v2879 = vadd.f32 %v2878, %v2624
    %v2880 = vadd.f32 %v2879, %v2625
    %v2881 = vadd.f32 %v2880, %v2626
    %v2882 = vadd.f32 %v2881, %v2627
    %v2883 = vadd.f32 %v2882, %v2628
    %v2884 = vadd.f32 %v2883, %v2629
    %v2885 = vadd.f32 %v2884, %v2630
    %v2886 = vadd.f32 %v2885, %v2631
    %v2887 = vadd.f32 %v2886, %v2632
    %v2888 = vadd.f32 %v2887, %v2633
    %v2889 = vadd.f32 %v2888, %v2634
    %v2890 = vadd.f32 %v2889, %v2635
    %v2891 = vadd.f32 %v2890, %v2636
    %v2892 = vadd.f32 %v2891, %v2637
    %v2893 = vadd.f32 %v2892, %v2638
    %v2894 = vadd.f32 %v2893, %v2639
    %v2895 = vadd.f32 %v2894, %v2640
    %v2896 = vadd.f32 %v2895, %v2641
    %v2897 = vadd.f32 %v2896, %v2642
    %v2898 = vadd.f32 %v2897, %v2643
    %v2899 = vadd.f32 %v2898, %v2644
    %v2900 = vadd.f32 %v2899, %v2645
    %v2901 = vadd.f32 %v2900, %v2646
    %v2902 = vadd.f32 %v2901, %v2647
    %v2903 = vadd.f32 %v2902, %v2648
    %v2904 = vadd.f32 %v2903, %v2649
    %v2905 = vadd.f32 %v2904, %v2650
    %v2906 = vadd.f32 %v2905, %v2651
    %v2907 = vadd.f32 %v2906, %v2652
    %v2908 = vadd.f32 %v2907, %v2653
    %v2909 = vadd.f32 %v2908, %v2654
    %v2910 = vadd.f32 %v2909, %v2655
    %v2911 = vadd.f32 %v2910, %v2656
    %v2912 = vadd.f32 %v2911, %v2657
    %v2913 = vadd.f32 %v2912, %v2658
    %v2914 = vadd.f32 %v2913, %v2659
    %v2915 = vadd.f32 %v2914, %v2660
    %v2916 = vadd.f32 %v2915, %v2661
    %v2917 = vadd.f32 %v2916, %v2662
    %v2918 = vadd.f32 %v2917, %v2663
    %v2919 = vadd.f32 %v2918, %v2664
    %v2920 = vadd.f32 %v2919, %v2665
    %v2921 = vadd.f32 %v2920, %v2666
    %v2922 = vadd.f32 %v2921, %v2667
    %v2923 = vadd.f32 %v2922, %v2668
    %v2924 = vadd.f32 %v2923, %v2669
    %v2925 = vadd.f32 %v2924, %v2670
    %v2926 = vadd.f32 %v2925, %v2671
    %v2927 = vadd.f32 %v2926, %v2672
    %v2928 = vadd.f32 %v2927, %v2673
    %v2929 = vadd.f32 %v2928, %v2674
    %v2930 = vadd.f32 %v2929, %v2675
    %v2931 = vadd.f32 %v2930, %v2676
    %v2932 = vadd.f32 %v2931, %v2677
    %v2933 = vadd.f32 %v2932, %v2678
    %v2934 = vadd.f32 %v2933, %v2679
    %v2935 = vadd.f32 %v2934, %v2680
    %v2936 = vadd.f32 %v2935, %v2681
    %v2937 = vadd.f32 %v2936, %v2682
    %v2938 = vadd.f32 %v2937, %v2683
    %v2939 = vadd.f32 %v2938, %v2684
    %v2940 = vadd.f32 %v2939, %v2685
    %v2941 = vadd.f32 %v2940, %v2686
    %v2942 = vadd.f32 %v2941, %v2687
    %v2943 = vadd.f32 %v2942, %v2688
    %v2944 = vadd.f32 %v2943, %v2689
    %v2945 = vadd.f32 %v2944, %v2690
    %v2946 = vadd.f32 %v2945, %v2691
    %v2947 = vadd.f32 %v2946, %v2692
    %v2948 = vadd.f32 %v2947, %v2693
    %v2949 = vadd.f32 %v2948, %v2694
    %v2950 = vadd.f32 %v2949, %v2695
    %v2951 = vadd.f32 %v2950, %v2696
    %v2952 = vadd.f32 %v2951, %v2697
    %v2953 = vadd.f32 %v2952, %v2698
    %v2954 = vadd.f32 %v2953, %v2699
    %v2955 = vadd.f32 %v2954, %v2700
    %v2956 = vadd.f32 %v2955, %v2701
    %v2957 = vadd.f32 %v2956, %v2702
    %v2958 = vadd.f32 %v2957, %v2703
    %v2959 = vadd.f32 %v2958, %v2704
    %v2960 = vadd.f32 %v2959, %v2705
    %v2961 = vadd.f32 %v2960, %v2706
    %v2962 = vrot.slane %v2961, 4
    %v2963 = vadd.f32 %v2961, %v2962
    %v2964 = vrot.slane %v2963, 2
    %v2965 = vadd.f32 %v2963, %v2964
    %v2966 = vrot.slane %v2965, 1
    %v2967 = vadd.f32 %v2965, %v2966
    %v2968 = vmul.f32 %v2967, 0.00048828125
    %v2969 = vmul.f32 %v2450, %v2450
    %v2970 = vsub.f32 %v2968, %v2969
    %v2971 = vld [vmem:[%s2] sm:$0x1]
    %v2972 = vld [vmem:[%s2 + $0x1] sm:$0x1]
    %v2973 = vadd.f32 %v2970, 1e-05
    %v2974 = vrsqrt.pop %v2973
    %v2975 = vmul.f32 %v2971, %v2974
    %v2976 = vmul.f32 %v2450, %v2975
    %v2977 = vsub.f32 %v2972, %v2976
    %v2978 = vmul.f32 %v2975, 0.25
    %v2979 = vmul.f32 %v2977, 0.25
    %v2980 = vlaneseq
    %v2981 = vshrl.u32 %v2980, 7
    %v2982 = vsub.s32 0, %v2981
    %v2983 = vrot.slane %v2978, %v2982
    %v2984 = vmul.f32 %v1167, %v2983
    %v2985 = vmul.f32 %v1170, %v2983
    %v2986 = vmul.f32 %v1175, %v2983
    %v2987 = vmul.f32 %v1178, %v2983
    %v2988 = vmul.f32 %v1183, %v2983
    %v2989 = vmul.f32 %v1186, %v2983
    %v2990 = vmul.f32 %v1191, %v2983
    %v2991 = vmul.f32 %v1194, %v2983
    %v2992 = vmul.f32 %v1199, %v2983
    %v2993 = vmul.f32 %v1202, %v2983
    %v2994 = vmul.f32 %v1207, %v2983
    %v2995 = vmul.f32 %v1210, %v2983
    %v2996 = vmul.f32 %v1215, %v2983
    %v2997 = vmul.f32 %v1218, %v2983
    %v2998 = vmul.f32 %v1223, %v2983
    %v2999 = vmul.f32 %v1226, %v2983
    %v3000 = vmul.f32 %v1231, %v2983
    %v3001 = vmul.f32 %v1234, %v2983
    %v3002 = vmul.f32 %v1239, %v2983
    %v3003 = vmul.f32 %v1242, %v2983
    %v3004 = vmul.f32 %v1247, %v2983
    %v3005 = vmul.f32 %v1250, %v2983
    %v3006 = vmul.f32 %v1255, %v2983
    %v3007 = vmul.f32 %v1258, %v2983
    %v3008 = vmul.f32 %v1263, %v2983
    %v3009 = vmul.f32 %v1266, %v2983
    %v3010 = vmul.f32 %v1271, %v2983
    %v3011 = vmul.f32 %v1274, %v2983
    %v3012 = vmul.f32 %v1279, %v2983
    %v3013 = vmul.f32 %v1282, %v2983
    %v3014 = vmul.f32 %v1287, %v2983
    %v3015 = vmul.f32 %v1290, %v2983
    %v3016 = vmul.f32 %v1295, %v2983
    %v3017 = vmul.f32 %v1298, %v2983
    %v3018 = vmul.f32 %v1303, %v2983
    %v3019 = vmul.f32 %v1306, %v2983
    %v3020 = vmul.f32 %v1311, %v2983
    %v3021 = vmul.f32 %v1314, %v2983
    %v3022 = vmul.f32 %v1319, %v2983
    %v3023 = vmul.f32 %v1322, %v2983
    %v3024 = vmul.f32 %v1327, %v2983
    %v3025 = vmul.f32 %v1330, %v2983
    %v3026 = vmul.f32 %v1335, %v2983
    %v3027 = vmul.f32 %v1338, %v2983
    %v3028 = vmul.f32 %v1343, %v2983
    %v3029 = vmul.f32 %v1346, %v2983
    %v3030 = vmul.f32 %v1351, %v2983
    %v3031 = vmul.f32 %v1354, %v2983
    %v3032 = vmul.f32 %v1359, %v2983
    %v3033 = vmul.f32 %v1362, %v2983
    %v3034 = vmul.f32 %v1367, %v2983
    %v3035 = vmul.f32 %v1370, %v2983
    %v3036 = vmul.f32 %v1375, %v2983
    %v3037 = vmul.f32 %v1378, %v2983
    %v3038 = vmul.f32 %v1383, %v2983
    %v3039 = vmul.f32 %v1386, %v2983
    %v3040 = vmul.f32 %v1391, %v2983
    %v3041 = vmul.f32 %v1394, %v2983
    %v3042 = vmul.f32 %v1399, %v2983
    %v3043 = vmul.f32 %v1402, %v2983
    %v3044 = vmul.f32 %v1407, %v2983
    %v3045 = vmul.f32 %v1410, %v2983
    %v3046 = vmul.f32 %v1415, %v2983
    %v3047 = vmul.f32 %v1418, %v2983
    %v3048 = vmul.f32 %v1423, %v2983
    %v3049 = vmul.f32 %v1426, %v2983
    %v3050 = vmul.f32 %v1431, %v2983
    %v3051 = vmul.f32 %v1434, %v2983
    %v3052 = vmul.f32 %v1439, %v2983
    %v3053 = vmul.f32 %v1442, %v2983
    %v3054 = vmul.f32 %v1447, %v2983
    %v3055 = vmul.f32 %v1450, %v2983
    %v3056 = vmul.f32 %v1455, %v2983
    %v3057 = vmul.f32 %v1458, %v2983
    %v3058 = vmul.f32 %v1463, %v2983
    %v3059 = vmul.f32 %v1466, %v2983
    %v3060 = vmul.f32 %v1471, %v2983
    %v3061 = vmul.f32 %v1474, %v2983
    %v3062 = vmul.f32 %v1479, %v2983
    %v3063 = vmul.f32 %v1482, %v2983
    %v3064 = vmul.f32 %v1487, %v2983
    %v3065 = vmul.f32 %v1490, %v2983
    %v3066 = vmul.f32 %v1495, %v2983
    %v3067 = vmul.f32 %v1498, %v2983
    %v3068 = vmul.f32 %v1503, %v2983
    %v3069 = vmul.f32 %v1506, %v2983
    %v3070 = vmul.f32 %v1511, %v2983
    %v3071 = vmul.f32 %v1514, %v2983
    %v3072 = vmul.f32 %v1519, %v2983
    %v3073 = vmul.f32 %v1522, %v2983
    %v3074 = vmul.f32 %v1527, %v2983
    %v3075 = vmul.f32 %v1530, %v2983
    %v3076 = vmul.f32 %v1535, %v2983
    %v3077 = vmul.f32 %v1538, %v2983
    %v3078 = vmul.f32 %v1543, %v2983
    %v3079 = vmul.f32 %v1546, %v2983
    %v3080 = vmul.f32 %v1551, %v2983
    %v3081 = vmul.f32 %v1554, %v2983
    %v3082 = vmul.f32 %v1559, %v2983
    %v3083 = vmul.f32 %v1562, %v2983
    %v3084 = vmul.f32 %v1567, %v2983
    %v3085 = vmul.f32 %v1570, %v2983
    %v3086 = vmul.f32 %v1575, %v2983
    %v3087 = vmul.f32 %v1578, %v2983
    %v3088 = vmul.f32 %v1583, %v2983
    %v3089 = vmul.f32 %v1586, %v2983
    %v3090 = vmul.f32 %v1591, %v2983
    %v3091 = vmul.f32 %v1594, %v2983
    %v3092 = vmul.f32 %v1599, %v2983
    %v3093 = vmul.f32 %v1602, %v2983
    %v3094 = vmul.f32 %v1607, %v2983
    %v3095 = vmul.f32 %v1610, %v2983
    %v3096 = vmul.f32 %v1615, %v2983
    %v3097 = vmul.f32 %v1618, %v2983
    %v3098 = vmul.f32 %v1623, %v2983
    %v3099 = vmul.f32 %v1626, %v2983
    %v3100 = vmul.f32 %v1631, %v2983
    %v3101 = vmul.f32 %v1634, %v2983
    %v3102 = vmul.f32 %v1639, %v2983
    %v3103 = vmul.f32 %v1642, %v2983
    %v3104 = vmul.f32 %v1647, %v2983
    %v3105 = vmul.f32 %v1650, %v2983
    %v3106 = vmul.f32 %v1655, %v2983
    %v3107 = vmul.f32 %v1658, %v2983
    %v3108 = vmul.f32 %v1663, %v2983
    %v3109 = vmul.f32 %v1666, %v2983
    %v3110 = vmul.f32 %v1671, %v2983
    %v3111 = vmul.f32 %v1674, %v2983
    %v3112 = vmul.f32 %v1679, %v2983
    %v3113 = vmul.f32 %v1682, %v2983
    %v3114 = vmul.f32 %v1687, %v2983
    %v3115 = vmul.f32 %v1690, %v2983
    %v3116 = vmul.f32 %v1695, %v2983
    %v3117 = vmul.f32 %v1698, %v2983
    %v3118 = vmul.f32 %v1703, %v2983
    %v3119 = vmul.f32 %v1706, %v2983
    %v3120 = vmul.f32 %v1711, %v2983
    %v3121 = vmul.f32 %v1714, %v2983
    %v3122 = vmul.f32 %v1719, %v2983
    %v3123 = vmul.f32 %v1722, %v2983
    %v3124 = vmul.f32 %v1727, %v2983
    %v3125 = vmul.f32 %v1730, %v2983
    %v3126 = vmul.f32 %v1735, %v2983
    %v3127 = vmul.f32 %v1738, %v2983
    %v3128 = vmul.f32 %v1743, %v2983
    %v3129 = vmul.f32 %v1746, %v2983
    %v3130 = vmul.f32 %v1751, %v2983
    %v3131 = vmul.f32 %v1754, %v2983
    %v3132 = vmul.f32 %v1759, %v2983
    %v3133 = vmul.f32 %v1762, %v2983
    %v3134 = vmul.f32 %v1767, %v2983
    %v3135 = vmul.f32 %v1770, %v2983
    %v3136 = vmul.f32 %v1775, %v2983
    %v3137 = vmul.f32 %v1778, %v2983
    %v3138 = vmul.f32 %v1783, %v2983
    %v3139 = vmul.f32 %v1786, %v2983
    %v3140 = vmul.f32 %v1791, %v2983
    %v3141 = vmul.f32 %v1794, %v2983
    %v3142 = vmul.f32 %v1799, %v2983
    %v3143 = vmul.f32 %v1802, %v2983
    %v3144 = vmul.f32 %v1807, %v2983
    %v3145 = vmul.f32 %v1810, %v2983
    %v3146 = vmul.f32 %v1815, %v2983
    %v3147 = vmul.f32 %v1818, %v2983
    %v3148 = vmul.f32 %v1823, %v2983
    %v3149 = vmul.f32 %v1826, %v2983
    %v3150 = vmul.f32 %v1831, %v2983
    %v3151 = vmul.f32 %v1834, %v2983
    %v3152 = vmul.f32 %v1839, %v2983
    %v3153 = vmul.f32 %v1842, %v2983
    %v3154 = vmul.f32 %v1847, %v2983
    %v3155 = vmul.f32 %v1850, %v2983
    %v3156 = vmul.f32 %v1855, %v2983
    %v3157 = vmul.f32 %v1858, %v2983
    %v3158 = vmul.f32 %v1863, %v2983
    %v3159 = vmul.f32 %v1866, %v2983
    %v3160 = vmul.f32 %v1871, %v2983
    %v3161 = vmul.f32 %v1874, %v2983
    %v3162 = vmul.f32 %v1879, %v2983
    %v3163 = vmul.f32 %v1882, %v2983
    %v3164 = vmul.f32 %v1887, %v2983
    %v3165 = vmul.f32 %v1890, %v2983
    %v3166 = vmul.f32 %v1895, %v2983
    %v3167 = vmul.f32 %v1898, %v2983
    %v3168 = vmul.f32 %v1903, %v2983
    %v3169 = vmul.f32 %v1906, %v2983
    %v3170 = vmul.f32 %v1911, %v2983
    %v3171 = vmul.f32 %v1914, %v2983
    %v3172 = vmul.f32 %v1919, %v2983
    %v3173 = vmul.f32 %v1922, %v2983
    %v3174 = vmul.f32 %v1927, %v2983
    %v3175 = vmul.f32 %v1930, %v2983
    %v3176 = vmul.f32 %v1935, %v2983
    %v3177 = vmul.f32 %v1938, %v2983
    %v3178 = vmul.f32 %v1943, %v2983
    %v3179 = vmul.f32 %v1946, %v2983
    %v3180 = vmul.f32 %v1951, %v2983
    %v3181 = vmul.f32 %v1954, %v2983
    %v3182 = vmul.f32 %v1959, %v2983
    %v3183 = vmul.f32 %v1962, %v2983
    %v3184 = vmul.f32 %v1967, %v2983
    %v3185 = vmul.f32 %v1970, %v2983
    %v3186 = vmul.f32 %v1975, %v2983
    %v3187 = vmul.f32 %v1978, %v2983
    %v3188 = vmul.f32 %v1983, %v2983
    %v3189 = vmul.f32 %v1986, %v2983
    %v3190 = vmul.f32 %v1991, %v2983
    %v3191 = vmul.f32 %v1994, %v2983
    %v3192 = vmul.f32 %v1999, %v2983
    %v3193 = vmul.f32 %v2002, %v2983
    %v3194 = vmul.f32 %v2007, %v2983
    %v3195 = vmul.f32 %v2010, %v2983
    %v3196 = vmul.f32 %v2015, %v2983
    %v3197 = vmul.f32 %v2018, %v2983
    %v3198 = vmul.f32 %v2023, %v2983
    %v3199 = vmul.f32 %v2026, %v2983
    %v3200 = vmul.f32 %v2031, %v2983
    %v3201 = vmul.f32 %v2034, %v2983
    %v3202 = vmul.f32 %v2039, %v2983
    %v3203 = vmul.f32 %v2042, %v2983
    %v3204 = vmul.f32 %v2047, %v2983
    %v3205 = vmul.f32 %v2050, %v2983
    %v3206 = vmul.f32 %v2055, %v2983
    %v3207 = vmul.f32 %v2058, %v2983
    %v3208 = vmul.f32 %v2063, %v2983
    %v3209 = vmul.f32 %v2066, %v2983
    %v3210 = vmul.f32 %v2071, %v2983
    %v3211 = vmul.f32 %v2074, %v2983
    %v3212 = vmul.f32 %v2079, %v2983
    %v3213 = vmul.f32 %v2082, %v2983
    %v3214 = vmul.f32 %v2087, %v2983
    %v3215 = vmul.f32 %v2090, %v2983
    %v3216 = vmul.f32 %v2095, %v2983
    %v3217 = vmul.f32 %v2098, %v2983
    %v3218 = vmul.f32 %v2103, %v2983
    %v3219 = vmul.f32 %v2106, %v2983
    %v3220 = vmul.f32 %v2111, %v2983
    %v3221 = vmul.f32 %v2114, %v2983
    %v3222 = vmul.f32 %v2119, %v2983
    %v3223 = vmul.f32 %v2122, %v2983
    %v3224 = vmul.f32 %v2127, %v2983
    %v3225 = vmul.f32 %v2130, %v2983
    %v3226 = vmul.f32 %v2135, %v2983
    %v3227 = vmul.f32 %v2138, %v2983
    %v3228 = vmul.f32 %v2143, %v2983
    %v3229 = vmul.f32 %v2146, %v2983
    %v3230 = vmul.f32 %v2151, %v2983
    %v3231 = vmul.f32 %v2154, %v2983
    %v3232 = vmul.f32 %v2159, %v2983
    %v3233 = vmul.f32 %v2162, %v2983
    %v3234 = vmul.f32 %v2167, %v2983
    %v3235 = vmul.f32 %v2170, %v2983
    %v3236 = vmul.f32 %v2175, %v2983
    %v3237 = vmul.f32 %v2178, %v2983
    %v3238 = vmul.f32 %v2183, %v2983
    %v3239 = vmul.f32 %v2186, %v2983
    %v3240 = vlaneseq
    %v3241 = vshrl.u32 %v3240, 7
    %v3242 = vsub.s32 0, %v3241
    %v3243 = vrot.slane %v2979, %v3242
    %v3244 = vadd.f32 %v2984, %v3243
    %v3245 = vadd.f32 %v2985, %v3243
    %v3246 = vadd.f32 %v2986, %v3243
    %v3247 = vadd.f32 %v2987, %v3243
    %v3248 = vadd.f32 %v2988, %v3243
    %v3249 = vadd.f32 %v2989, %v3243
    %v3250 = vadd.f32 %v2990, %v3243
    %v3251 = vadd.f32 %v2991, %v3243
    %v3252 = vadd.f32 %v2992, %v3243
    %v3253 = vadd.f32 %v2993, %v3243
    %v3254 = vadd.f32 %v2994, %v3243
    %v3255 = vadd.f32 %v2995, %v3243
    %v3256 = vadd.f32 %v2996, %v3243
    %v3257 = vadd.f32 %v2997, %v3243
    %v3258 = vadd.f32 %v2998, %v3243
    %v3259 = vadd.f32 %v2999, %v3243
    %v3260 = vadd.f32 %v3000, %v3243
    %v3261 = vadd.f32 %v3001, %v3243
    %v3262 = vadd.f32 %v3002, %v3243
    %v3263 = vadd.f32 %v3003, %v3243
    %v3264 = vadd.f32 %v3004, %v3243
    %v3265 = vadd.f32 %v3005, %v3243
    %v3266 = vadd.f32 %v3006, %v3243
    %v3267 = vadd.f32 %v3007, %v3243
    %v3268 = vadd.f32 %v3008, %v3243
    %v3269 = vadd.f32 %v3009, %v3243
    %v3270 = vadd.f32 %v3010, %v3243
    %v3271 = vadd.f32 %v3011, %v3243
    %v3272 = vadd.f32 %v3012, %v3243
    %v3273 = vadd.f32 %v3013, %v3243
    %v3274 = vadd.f32 %v3014, %v3243
    %v3275 = vadd.f32 %v3015, %v3243
    %v3276 = vadd.f32 %v3016, %v3243
    %v3277 = vadd.f32 %v3017, %v3243
    %v3278 = vadd.f32 %v3018, %v3243
    %v3279 = vadd.f32 %v3019, %v3243
    %v3280 = vadd.f32 %v3020, %v3243
    %v3281 = vadd.f32 %v3021, %v3243
    %v3282 = vadd.f32 %v3022, %v3243
    %v3283 = vadd.f32 %v3023, %v3243
    %v3284 = vadd.f32 %v3024, %v3243
    %v3285 = vadd.f32 %v3025, %v3243
    %v3286 = vadd.f32 %v3026, %v3243
    %v3287 = vadd.f32 %v3027, %v3243
    %v3288 = vadd.f32 %v3028, %v3243
    %v3289 = vadd.f32 %v3029, %v3243
    %v3290 = vadd.f32 %v3030, %v3243
    %v3291 = vadd.f32 %v3031, %v3243
    %v3292 = vadd.f32 %v3032, %v3243
    %v3293 = vadd.f32 %v3033, %v3243
    %v3294 = vadd.f32 %v3034, %v3243
    %v3295 = vadd.f32 %v3035, %v3243
    %v3296 = vadd.f32 %v3036, %v3243
    %v3297 = vadd.f32 %v3037, %v3243
    %v3298 = vadd.f32 %v3038, %v3243
    %v3299 = vadd.f32 %v3039, %v3243
    %v3300 = vadd.f32 %v3040, %v3243
    %v3301 = vadd.f32 %v3041, %v3243
    %v3302 = vadd.f32 %v3042, %v3243
    %v3303 = vadd.f32 %v3043, %v3243
    %v3304 = vadd.f32 %v3044, %v3243
    %v3305 = vadd.f32 %v3045, %v3243
    %v3306 = vadd.f32 %v3046, %v3243
    %v3307 = vadd.f32 %v3047, %v3243
    %v3308 = vadd.f32 %v3048, %v3243
    %v3309 = vadd.f32 %v3049, %v3243
    %v3310 = vadd.f32 %v3050, %v3243
    %v3311 = vadd.f32 %v3051, %v3243
    %v3312 = vadd.f32 %v3052, %v3243
    %v3313 = vadd.f32 %v3053, %v3243
    %v3314 = vadd.f32 %v3054, %v3243
    %v3315 = vadd.f32 %v3055, %v3243
    %v3316 = vadd.f32 %v3056, %v3243
    %v3317 = vadd.f32 %v3057, %v3243
    %v3318 = vadd.f32 %v3058, %v3243
    %v3319 = vadd.f32 %v3059, %v3243
    %v3320 = vadd.f32 %v3060, %v3243
    %v3321 = vadd.f32 %v3061, %v3243
    %v3322 = vadd.f32 %v3062, %v3243
    %v3323 = vadd.f32 %v3063, %v3243
    %v3324 = vadd.f32 %v3064, %v3243
    %v3325 = vadd.f32 %v3065, %v3243
    %v3326 = vadd.f32 %v3066, %v3243
    %v3327 = vadd.f32 %v3067, %v3243
    %v3328 = vadd.f32 %v3068, %v3243
    %v3329 = vadd.f32 %v3069, %v3243
    %v3330 = vadd.f32 %v3070, %v3243
    %v3331 = vadd.f32 %v3071, %v3243
    %v3332 = vadd.f32 %v3072, %v3243
    %v3333 = vadd.f32 %v3073, %v3243
    %v3334 = vadd.f32 %v3074, %v3243
    %v3335 = vadd.f32 %v3075, %v3243
    %v3336 = vadd.f32 %v3076, %v3243
    %v3337 = vadd.f32 %v3077, %v3243
    %v3338 = vadd.f32 %v3078, %v3243
    %v3339 = vadd.f32 %v3079, %v3243
    %v3340 = vadd.f32 %v3080, %v3243
    %v3341 = vadd.f32 %v3081, %v3243
    %v3342 = vadd.f32 %v3082, %v3243
    %v3343 = vadd.f32 %v3083, %v3243
    %v3344 = vadd.f32 %v3084, %v3243
    %v3345 = vadd.f32 %v3085, %v3243
    %v3346 = vadd.f32 %v3086, %v3243
    %v3347 = vadd.f32 %v3087, %v3243
    %v3348 = vadd.f32 %v3088, %v3243
    %v3349 = vadd.f32 %v3089, %v3243
    %v3350 = vadd.f32 %v3090, %v3243
    %v3351 = vadd.f32 %v3091, %v3243
    %v3352 = vadd.f32 %v3092, %v3243
    %v3353 = vadd.f32 %v3093, %v3243
    %v3354 = vadd.f32 %v3094, %v3243
    %v3355 = vadd.f32 %v3095, %v3243
    %v3356 = vadd.f32 %v3096, %v3243
    %v3357 = vadd.f32 %v3097, %v3243
    %v3358 = vadd.f32 %v3098, %v3243
    %v3359 = vadd.f32 %v3099, %v3243
    %v3360 = vadd.f32 %v3100, %v3243
    %v3361 = vadd.f32 %v3101, %v3243
    %v3362 = vadd.f32 %v3102, %v3243
    %v3363 = vadd.f32 %v3103, %v3243
    %v3364 = vadd.f32 %v3104, %v3243
    %v3365 = vadd.f32 %v3105, %v3243
    %v3366 = vadd.f32 %v3106, %v3243
    %v3367 = vadd.f32 %v3107, %v3243
    %v3368 = vadd.f32 %v3108, %v3243
    %v3369 = vadd.f32 %v3109, %v3243
    %v3370 = vadd.f32 %v3110, %v3243
    %v3371 = vadd.f32 %v3111, %v3243
    %v3372 = vadd.f32 %v3112, %v3243
    %v3373 = vadd.f32 %v3113, %v3243
    %v3374 = vadd.f32 %v3114, %v3243
    %v3375 = vadd.f32 %v3115, %v3243
    %v3376 = vadd.f32 %v3116, %v3243
    %v3377 = vadd.f32 %v3117, %v3243
    %v3378 = vadd.f32 %v3118, %v3243
    %v3379 = vadd.f32 %v3119, %v3243
    %v3380 = vadd.f32 %v3120, %v3243
    %v3381 = vadd.f32 %v3121, %v3243
    %v3382 = vadd.f32 %v3122, %v3243
    %v3383 = vadd.f32 %v3123, %v3243
    %v3384 = vadd.f32 %v3124, %v3243
    %v3385 = vadd.f32 %v3125, %v3243
    %v3386 = vadd.f32 %v3126, %v3243
    %v3387 = vadd.f32 %v3127, %v3243
    %v3388 = vadd.f32 %v3128, %v3243
    %v3389 = vadd.f32 %v3129, %v3243
    %v3390 = vadd.f32 %v3130, %v3243
    %v3391 = vadd.f32 %v3131, %v3243
    %v3392 = vadd.f32 %v3132, %v3243
    %v3393 = vadd.f32 %v3133, %v3243
    %v3394 = vadd.f32 %v3134, %v3243
    %v3395 = vadd.f32 %v3135, %v3243
    %v3396 = vadd.f32 %v3136, %v3243
    %v3397 = vadd.f32 %v3137, %v3243
    %v3398 = vadd.f32 %v3138, %v3243
    %v3399 = vadd.f32 %v3139, %v3243
    %v3400 = vadd.f32 %v3140, %v3243
    %v3401 = vadd.f32 %v3141, %v3243
    %v3402 = vadd.f32 %v3142, %v3243
    %v3403 = vadd.f32 %v3143, %v3243
    %v3404 = vadd.f32 %v3144, %v3243
    %v3405 = vadd.f32 %v3145, %v3243
    %v3406 = vadd.f32 %v3146, %v3243
    %v3407 = vadd.f32 %v3147, %v3243
    %v3408 = vadd.f32 %v3148, %v3243
    %v3409 = vadd.f32 %v3149, %v3243
    %v3410 = vadd.f32 %v3150, %v3243
    %v3411 = vadd.f32 %v3151, %v3243
    %v3412 = vadd.f32 %v3152, %v3243
    %v3413 = vadd.f32 %v3153, %v3243
    %v3414 = vadd.f32 %v3154, %v3243
    %v3415 = vadd.f32 %v3155, %v3243
    %v3416 = vadd.f32 %v3156, %v3243
    %v3417 = vadd.f32 %v3157, %v3243
    %v3418 = vadd.f32 %v3158, %v3243
    %v3419 = vadd.f32 %v3159, %v3243
    %v3420 = vadd.f32 %v3160, %v3243
    %v3421 = vadd.f32 %v3161, %v3243
    %v3422 = vadd.f32 %v3162, %v3243
    %v3423 = vadd.f32 %v3163, %v3243
    %v3424 = vadd.f32 %v3164, %v3243
    %v3425 = vadd.f32 %v3165, %v3243
    %v3426 = vadd.f32 %v3166, %v3243
    %v3427 = vadd.f32 %v3167, %v3243
    %v3428 = vadd.f32 %v3168, %v3243
    %v3429 = vadd.f32 %v3169, %v3243
    %v3430 = vadd.f32 %v3170, %v3243
    %v3431 = vadd.f32 %v3171, %v3243
    %v3432 = vadd.f32 %v3172, %v3243
    %v3433 = vadd.f32 %v3173, %v3243
    %v3434 = vadd.f32 %v3174, %v3243
    %v3435 = vadd.f32 %v3175, %v3243
    %v3436 = vadd.f32 %v3176, %v3243
    %v3437 = vadd.f32 %v3177, %v3243
    %v3438 = vadd.f32 %v3178, %v3243
    %v3439 = vadd.f32 %v3179, %v3243
    %v3440 = vadd.f32 %v3180, %v3243
    %v3441 = vadd.f32 %v3181, %v3243
    %v3442 = vadd.f32 %v3182, %v3243
    %v3443 = vadd.f32 %v3183, %v3243
    %v3444 = vadd.f32 %v3184, %v3243
    %v3445 = vadd.f32 %v3185, %v3243
    %v3446 = vadd.f32 %v3186, %v3243
    %v3447 = vadd.f32 %v3187, %v3243
    %v3448 = vadd.f32 %v3188, %v3243
    %v3449 = vadd.f32 %v3189, %v3243
    %v3450 = vadd.f32 %v3190, %v3243
    %v3451 = vadd.f32 %v3191, %v3243
    %v3452 = vadd.f32 %v3192, %v3243
    %v3453 = vadd.f32 %v3193, %v3243
    %v3454 = vadd.f32 %v3194, %v3243
    %v3455 = vadd.f32 %v3195, %v3243
    %v3456 = vadd.f32 %v3196, %v3243
    %v3457 = vadd.f32 %v3197, %v3243
    %v3458 = vadd.f32 %v3198, %v3243
    %v3459 = vadd.f32 %v3199, %v3243
    %v3460 = vadd.f32 %v3200, %v3243
    %v3461 = vadd.f32 %v3201, %v3243
    %v3462 = vadd.f32 %v3202, %v3243
    %v3463 = vadd.f32 %v3203, %v3243
    %v3464 = vadd.f32 %v3204, %v3243
    %v3465 = vadd.f32 %v3205, %v3243
    %v3466 = vadd.f32 %v3206, %v3243
    %v3467 = vadd.f32 %v3207, %v3243
    %v3468 = vadd.f32 %v3208, %v3243
    %v3469 = vadd.f32 %v3209, %v3243
    %v3470 = vadd.f32 %v3210, %v3243
    %v3471 = vadd.f32 %v3211, %v3243
    %v3472 = vadd.f32 %v3212, %v3243
    %v3473 = vadd.f32 %v3213, %v3243
    %v3474 = vadd.f32 %v3214, %v3243
    %v3475 = vadd.f32 %v3215, %v3243
    %v3476 = vadd.f32 %v3216, %v3243
    %v3477 = vadd.f32 %v3217, %v3243
    %v3478 = vadd.f32 %v3218, %v3243
    %v3479 = vadd.f32 %v3219, %v3243
    %v3480 = vadd.f32 %v3220, %v3243
    %v3481 = vadd.f32 %v3221, %v3243
    %v3482 = vadd.f32 %v3222, %v3243
    %v3483 = vadd.f32 %v3223, %v3243
    %v3484 = vadd.f32 %v3224, %v3243
    %v3485 = vadd.f32 %v3225, %v3243
    %v3486 = vadd.f32 %v3226, %v3243
    %v3487 = vadd.f32 %v3227, %v3243
    %v3488 = vadd.f32 %v3228, %v3243
    %v3489 = vadd.f32 %v3229, %v3243
    %v3490 = vadd.f32 %v3230, %v3243
    %v3491 = vadd.f32 %v3231, %v3243
    %v3492 = vadd.f32 %v3232, %v3243
    %v3493 = vadd.f32 %v3233, %v3243
    %v3494 = vadd.f32 %v3234, %v3243
    %v3495 = vadd.f32 %v3235, %v3243
    %v3496 = vadd.f32 %v3236, %v3243
    %v3497 = vadd.f32 %v3237, %v3243
    %v3498 = vadd.f32 %v3238, %v3243
    %v3499 = vadd.f32 %v3239, %v3243
    %v3500 = vmax.f32 %v3244, 0.0
    %v3501 = vmax.f32 %v3245, 0.0
    %v3502 = vmax.f32 %v3246, 0.0
    %v3503 = vmax.f32 %v3247, 0.0
    %v3504 = vmax.f32 %v3248, 0.0
    %v3505 = vmax.f32 %v3249, 0.0
    %v3506 = vmax.f32 %v3250, 0.0
    %v3507 = vmax.f32 %v3251, 0.0
    %v3508 = vmax.f32 %v3252, 0.0
    %v3509 = vmax.f32 %v3253, 0.0
    %v3510 = vmax.f32 %v3254, 0.0
    %v3511 = vmax.f32 %v3255, 0.0
    %v3512 = vmax.f32 %v3256, 0.0
    %v3513 = vmax.f32 %v3257, 0.0
    %v3514 = vmax.f32 %v3258, 0.0
    %v3515 = vmax.f32 %v3259, 0.0
    %v3516 = vmax.f32 %v3260, 0.0
    %v3517 = vmax.f32 %v3261, 0.0
    %v3518 = vmax.f32 %v3262, 0.0
    %v3519 = vmax.f32 %v3263, 0.0
    %v3520 = vmax.f32 %v3264, 0.0
    %v3521 = vmax.f32 %v3265, 0.0
    %v3522 = vmax.f32 %v3266, 0.0
    %v3523 = vmax.f32 %v3267, 0.0
    %v3524 = vmax.f32 %v3268, 0.0
    %v3525 = vmax.f32 %v3269, 0.0
    %v3526 = vmax.f32 %v3270, 0.0
    %v3527 = vmax.f32 %v3271, 0.0
    %v3528 = vmax.f32 %v3272, 0.0
    %v3529 = vmax.f32 %v3273, 0.0
    %v3530 = vmax.f32 %v3274, 0.0
    %v3531 = vmax.f32 %v3275, 0.0
    %v3532 = vmax.f32 %v3276, 0.0
    %v3533 = vmax.f32 %v3277, 0.0
    %v3534 = vmax.f32 %v3278, 0.0
    %v3535 = vmax.f32 %v3279, 0.0
    %v3536 = vmax.f32 %v3280, 0.0
    %v3537 = vmax.f32 %v3281, 0.0
    %v3538 = vmax.f32 %v3282, 0.0
    %v3539 = vmax.f32 %v3283, 0.0
    %v3540 = vmax.f32 %v3284, 0.0
    %v3541 = vmax.f32 %v3285, 0.0
    %v3542 = vmax.f32 %v3286, 0.0
    %v3543 = vmax.f32 %v3287, 0.0
    %v3544 = vmax.f32 %v3288, 0.0
    %v3545 = vmax.f32 %v3289, 0.0
    %v3546 = vmax.f32 %v3290, 0.0
    %v3547 = vmax.f32 %v3291, 0.0
    %v3548 = vmax.f32 %v3292, 0.0
    %v3549 = vmax.f32 %v3293, 0.0
    %v3550 = vmax.f32 %v3294, 0.0
    %v3551 = vmax.f32 %v3295, 0.0
    %v3552 = vmax.f32 %v3296, 0.0
    %v3553 = vmax.f32 %v3297, 0.0
    %v3554 = vmax.f32 %v3298, 0.0
    %v3555 = vmax.f32 %v3299, 0.0
    %v3556 = vmax.f32 %v3300, 0.0
    %v3557 = vmax.f32 %v3301, 0.0
    %v3558 = vmax.f32 %v3302, 0.0
    %v3559 = vmax.f32 %v3303, 0.0
    %v3560 = vmax.f32 %v3304, 0.0
    %v3561 = vmax.f32 %v3305, 0.0
    %v3562 = vmax.f32 %v3306, 0.0
    %v3563 = vmax.f32 %v3307, 0.0
    %v3564 = vmax.f32 %v3308, 0.0
    %v3565 = vmax.f32 %v3309, 0.0
    %v3566 = vmax.f32 %v3310, 0.0
    %v3567 = vmax.f32 %v3311, 0.0
    %v3568 = vmax.f32 %v3312, 0.0
    %v3569 = vmax.f32 %v3313, 0.0
    %v3570 = vmax.f32 %v3314, 0.0
    %v3571 = vmax.f32 %v3315, 0.0
    %v3572 = vmax.f32 %v3316, 0.0
    %v3573 = vmax.f32 %v3317, 0.0
    %v3574 = vmax.f32 %v3318, 0.0
    %v3575 = vmax.f32 %v3319, 0.0
    %v3576 = vmax.f32 %v3320, 0.0
    %v3577 = vmax.f32 %v3321, 0.0
    %v3578 = vmax.f32 %v3322, 0.0
    %v3579 = vmax.f32 %v3323, 0.0
    %v3580 = vmax.f32 %v3324, 0.0
    %v3581 = vmax.f32 %v3325, 0.0
    %v3582 = vmax.f32 %v3326, 0.0
    %v3583 = vmax.f32 %v3327, 0.0
    %v3584 = vmax.f32 %v3328, 0.0
    %v3585 = vmax.f32 %v3329, 0.0
    %v3586 = vmax.f32 %v3330, 0.0
    %v3587 = vmax.f32 %v3331, 0.0
    %v3588 = vmax.f32 %v3332, 0.0
    %v3589 = vmax.f32 %v3333, 0.0
    %v3590 = vmax.f32 %v3334, 0.0
    %v3591 = vmax.f32 %v3335, 0.0
    %v3592 = vmax.f32 %v3336, 0.0
    %v3593 = vmax.f32 %v3337, 0.0
    %v3594 = vmax.f32 %v3338, 0.0
    %v3595 = vmax.f32 %v3339, 0.0
    %v3596 = vmax.f32 %v3340, 0.0
    %v3597 = vmax.f32 %v3341, 0.0
    %v3598 = vmax.f32 %v3342, 0.0
    %v3599 = vmax.f32 %v3343, 0.0
    %v3600 = vmax.f32 %v3344, 0.0
    %v3601 = vmax.f32 %v3345, 0.0
    %v3602 = vmax.f32 %v3346, 0.0
    %v3603 = vmax.f32 %v3347, 0.0
    %v3604 = vmax.f32 %v3348, 0.0
    %v3605 = vmax.f32 %v3349, 0.0
    %v3606 = vmax.f32 %v3350, 0.0
    %v3607 = vmax.f32 %v3351, 0.0
    %v3608 = vmax.f32 %v3352, 0.0
    %v3609 = vmax.f32 %v3353, 0.0
    %v3610 = vmax.f32 %v3354, 0.0
    %v3611 = vmax.f32 %v3355, 0.0
    %v3612 = vmax.f32 %v3356, 0.0
    %v3613 = vmax.f32 %v3357, 0.0
    %v3614 = vmax.f32 %v3358, 0.0
    %v3615 = vmax.f32 %v3359, 0.0
    %v3616 = vmax.f32 %v3360, 0.0
    %v3617 = vmax.f32 %v3361, 0.0
    %v3618 = vmax.f32 %v3362, 0.0
    %v3619 = vmax.f32 %v3363, 0.0
    %v3620 = vmax.f32 %v3364, 0.0
    %v3621 = vmax.f32 %v3365, 0.0
    %v3622 = vmax.f32 %v3366, 0.0
    %v3623 = vmax.f32 %v3367, 0.0
    %v3624 = vmax.f32 %v3368, 0.0
    %v3625 = vmax.f32 %v3369, 0.0
    %v3626 = vmax.f32 %v3370, 0.0
    %v3627 = vmax.f32 %v3371, 0.0
    %v3628 = vmax.f32 %v3372, 0.0
    %v3629 = vmax.f32 %v3373, 0.0
    %v3630 = vmax.f32 %v3374, 0.0
    %v3631 = vmax.f32 %v3375, 0.0
    %v3632 = vmax.f32 %v3376, 0.0
    %v3633 = vmax.f32 %v3377, 0.0
    %v3634 = vmax.f32 %v3378, 0.0
    %v3635 = vmax.f32 %v3379, 0.0
    %v3636 = vmax.f32 %v3380, 0.0
    %v3637 = vmax.f32 %v3381, 0.0
    %v3638 = vmax.f32 %v3382, 0.0
    %v3639 = vmax.f32 %v3383, 0.0
    %v3640 = vmax.f32 %v3384, 0.0
    %v3641 = vmax.f32 %v3385, 0.0
    %v3642 = vmax.f32 %v3386, 0.0
    %v3643 = vmax.f32 %v3387, 0.0
    %v3644 = vmax.f32 %v3388, 0.0
    %v3645 = vmax.f32 %v3389, 0.0
    %v3646 = vmax.f32 %v3390, 0.0
    %v3647 = vmax.f32 %v3391, 0.0
    %v3648 = vmax.f32 %v3392, 0.0
    %v3649 = vmax.f32 %v3393, 0.0
    %v3650 = vmax.f32 %v3394, 0.0
    %v3651 = vmax.f32 %v3395, 0.0
    %v3652 = vmax.f32 %v3396, 0.0
    %v3653 = vmax.f32 %v3397, 0.0
    %v3654 = vmax.f32 %v3398, 0.0
    %v3655 = vmax.f32 %v3399, 0.0
    %v3656 = vmax.f32 %v3400, 0.0
    %v3657 = vmax.f32 %v3401, 0.0
    %v3658 = vmax.f32 %v3402, 0.0
    %v3659 = vmax.f32 %v3403, 0.0
    %v3660 = vmax.f32 %v3404, 0.0
    %v3661 = vmax.f32 %v3405, 0.0
    %v3662 = vmax.f32 %v3406, 0.0
    %v3663 = vmax.f32 %v3407, 0.0
    %v3664 = vmax.f32 %v3408, 0.0
    %v3665 = vmax.f32 %v3409, 0.0
    %v3666 = vmax.f32 %v3410, 0.0
    %v3667 = vmax.f32 %v3411, 0.0
    %v3668 = vmax.f32 %v3412, 0.0
    %v3669 = vmax.f32 %v3413, 0.0
    %v3670 = vmax.f32 %v3414, 0.0
    %v3671 = vmax.f32 %v3415, 0.0
    %v3672 = vmax.f32 %v3416, 0.0
    %v3673 = vmax.f32 %v3417, 0.0
    %v3674 = vmax.f32 %v3418, 0.0
    %v3675 = vmax.f32 %v3419, 0.0
    %v3676 = vmax.f32 %v3420, 0.0
    %v3677 = vmax.f32 %v3421, 0.0
    %v3678 = vmax.f32 %v3422, 0.0
    %v3679 = vmax.f32 %v3423, 0.0
    %v3680 = vmax.f32 %v3424, 0.0
    %v3681 = vmax.f32 %v3425, 0.0
    %v3682 = vmax.f32 %v3426, 0.0
    %v3683 = vmax.f32 %v3427, 0.0
    %v3684 = vmax.f32 %v3428, 0.0
    %v3685 = vmax.f32 %v3429, 0.0
    %v3686 = vmax.f32 %v3430, 0.0
    %v3687 = vmax.f32 %v3431, 0.0
    %v3688 = vmax.f32 %v3432, 0.0
    %v3689 = vmax.f32 %v3433, 0.0
    %v3690 = vmax.f32 %v3434, 0.0
    %v3691 = vmax.f32 %v3435, 0.0
    %v3692 = vmax.f32 %v3436, 0.0
    %v3693 = vmax.f32 %v3437, 0.0
    %v3694 = vmax.f32 %v3438, 0.0
    %v3695 = vmax.f32 %v3439, 0.0
    %v3696 = vmax.f32 %v3440, 0.0
    %v3697 = vmax.f32 %v3441, 0.0
    %v3698 = vmax.f32 %v3442, 0.0
    %v3699 = vmax.f32 %v3443, 0.0
    %v3700 = vmax.f32 %v3444, 0.0
    %v3701 = vmax.f32 %v3445, 0.0
    %v3702 = vmax.f32 %v3446, 0.0
    %v3703 = vmax.f32 %v3447, 0.0
    %v3704 = vmax.f32 %v3448, 0.0
    %v3705 = vmax.f32 %v3449, 0.0
    %v3706 = vmax.f32 %v3450, 0.0
    %v3707 = vmax.f32 %v3451, 0.0
    %v3708 = vmax.f32 %v3452, 0.0
    %v3709 = vmax.f32 %v3453, 0.0
    %v3710 = vmax.f32 %v3454, 0.0
    %v3711 = vmax.f32 %v3455, 0.0
    %v3712 = vmax.f32 %v3456, 0.0
    %v3713 = vmax.f32 %v3457, 0.0
    %v3714 = vmax.f32 %v3458, 0.0
    %v3715 = vmax.f32 %v3459, 0.0
    %v3716 = vmax.f32 %v3460, 0.0
    %v3717 = vmax.f32 %v3461, 0.0
    %v3718 = vmax.f32 %v3462, 0.0
    %v3719 = vmax.f32 %v3463, 0.0
    %v3720 = vmax.f32 %v3464, 0.0
    %v3721 = vmax.f32 %v3465, 0.0
    %v3722 = vmax.f32 %v3466, 0.0
    %v3723 = vmax.f32 %v3467, 0.0
    %v3724 = vmax.f32 %v3468, 0.0
    %v3725 = vmax.f32 %v3469, 0.0
    %v3726 = vmax.f32 %v3470, 0.0
    %v3727 = vmax.f32 %v3471, 0.0
    %v3728 = vmax.f32 %v3472, 0.0
    %v3729 = vmax.f32 %v3473, 0.0
    %v3730 = vmax.f32 %v3474, 0.0
    %v3731 = vmax.f32 %v3475, 0.0
    %v3732 = vmax.f32 %v3476, 0.0
    %v3733 = vmax.f32 %v3477, 0.0
    %v3734 = vmax.f32 %v3478, 0.0
    %v3735 = vmax.f32 %v3479, 0.0
    %v3736 = vmax.f32 %v3480, 0.0
    %v3737 = vmax.f32 %v3481, 0.0
    %v3738 = vmax.f32 %v3482, 0.0
    %v3739 = vmax.f32 %v3483, 0.0
    %v3740 = vmax.f32 %v3484, 0.0
    %v3741 = vmax.f32 %v3485, 0.0
    %v3742 = vmax.f32 %v3486, 0.0
    %v3743 = vmax.f32 %v3487, 0.0
    %v3744 = vmax.f32 %v3488, 0.0
    %v3745 = vmax.f32 %v3489, 0.0
    %v3746 = vmax.f32 %v3490, 0.0
    %v3747 = vmax.f32 %v3491, 0.0
    %v3748 = vmax.f32 %v3492, 0.0
    %v3749 = vmax.f32 %v3493, 0.0
    %v3750 = vmax.f32 %v3494, 0.0
    %v3751 = vmax.f32 %v3495, 0.0
    %v3752 = vmax.f32 %v3496, 0.0
    %v3753 = vmax.f32 %v3497, 0.0
    %v3754 = vmax.f32 %v3498, 0.0
    %v3755 = vmax.f32 %v3499, 0.0
    %v3756 = vadd.f32 %v3500, %v3564
    %v3757 = vadd.f32 %v3501, %v3565
    %v3758 = vadd.f32 %v3502, %v3566
    %v3759 = vadd.f32 %v3503, %v3567
    %v3760 = vadd.f32 %v3504, %v3568
    %v3761 = vadd.f32 %v3505, %v3569
    %v3762 = vadd.f32 %v3506, %v3570
    %v3763 = vadd.f32 %v3507, %v3571
    %v3764 = vadd.f32 %v3508, %v3572
    %v3765 = vadd.f32 %v3509, %v3573
    %v3766 = vadd.f32 %v3510, %v3574
    %v3767 = vadd.f32 %v3511, %v3575
    %v3768 = vadd.f32 %v3512, %v3576
    %v3769 = vadd.f32 %v3513, %v3577
    %v3770 = vadd.f32 %v3514, %v3578
    %v3771 = vadd.f32 %v3515, %v3579
    %v3772 = vadd.f32 %v3516, %v3580
    %v3773 = vadd.f32 %v3517, %v3581
    %v3774 = vadd.f32 %v3518, %v3582
    %v3775 = vadd.f32 %v3519, %v3583
    %v3776 = vadd.f32 %v3520, %v3584
    %v3777 = vadd.f32 %v3521, %v3585
    %v3778 = vadd.f32 %v3522, %v3586
    %v3779 = vadd.f32 %v3523, %v3587
    %v3780 = vadd.f32 %v3524, %v3588
    %v3781 = vadd.f32 %v3525, %v3589
    %v3782 = vadd.f32 %v3526, %v3590
    %v3783 = vadd.f32 %v3527, %v3591
    %v3784 = vadd.f32 %v3528, %v3592
    %v3785 = vadd.f32 %v3529, %v3593
    %v3786 = vadd.f32 %v3530, %v3594
    %v3787 = vadd.f32 %v3531, %v3595
    %v3788 = vadd.f32 %v3532, %v3596
    %v3789 = vadd.f32 %v3533, %v3597
    %v3790 = vadd.f32 %v3534, %v3598
    %v3791 = vadd.f32 %v3535, %v3599
    %v3792 = vadd.f32 %v3536, %v3600
    %v3793 = vadd.f32 %v3537, %v3601
    %v3794 = vadd.f32 %v3538, %v3602
    %v3795 = vadd.f32 %v3539, %v3603
    %v3796 = vadd.f32 %v3540, %v3604
    %v3797 = vadd.f32 %v3541, %v3605
    %v3798 = vadd.f32 %v3542, %v3606
    %v3799 = vadd.f32 %v3543, %v3607
    %v3800 = vadd.f32 %v3544, %v3608
    %v3801 = vadd.f32 %v3545, %v3609
    %v3802 = vadd.f32 %v3546, %v3610
    %v3803 = vadd.f32 %v3547, %v3611
    %v3804 = vadd.f32 %v3548, %v3612
    %v3805 = vadd.f32 %v3549, %v3613
    %v3806 = vadd.f32 %v3550, %v3614
    %v3807 = vadd.f32 %v3551, %v3615
    %v3808 = vadd.f32 %v3552, %v3616
    %v3809 = vadd.f32 %v3553, %v3617
    %v3810 = vadd.f32 %v3554, %v3618
    %v3811 = vadd.f32 %v3555, %v3619
    %v3812 = vadd.f32 %v3556, %v3620
    %v3813 = vadd.f32 %v3557, %v3621
    %v3814 = vadd.f32 %v3558, %v3622
    %v3815 = vadd.f32 %v3559, %v3623
    %v3816 = vadd.f32 %v3560, %v3624
    %v3817 = vadd.f32 %v3561, %v3625
    %v3818 = vadd.f32 %v3562, %v3626
    %v3819 = vadd.f32 %v3563, %v3627
    %v3820 = vadd.f32 %v3756, %v3628
    %v3821 = vadd.f32 %v3757, %v3629
    %v3822 = vadd.f32 %v3758, %v3630
    %v3823 = vadd.f32 %v3759, %v3631
    %v3824 = vadd.f32 %v3760, %v3632
    %v3825 = vadd.f32 %v3761, %v3633
    %v3826 = vadd.f32 %v3762, %v3634
    %v3827 = vadd.f32 %v3763, %v3635
    %v3828 = vadd.f32 %v3764, %v3636
    %v3829 = vadd.f32 %v3765, %v3637
    %v3830 = vadd.f32 %v3766, %v3638
    %v3831 = vadd.f32 %v3767, %v3639
    %v3832 = vadd.f32 %v3768, %v3640
    %v3833 = vadd.f32 %v3769, %v3641
    %v3834 = vadd.f32 %v3770, %v3642
    %v3835 = vadd.f32 %v3771, %v3643
    %v3836 = vadd.f32 %v3772, %v3644
    %v3837 = vadd.f32 %v3773, %v3645
    %v3838 = vadd.f32 %v3774, %v3646
    %v3839 = vadd.f32 %v3775, %v3647
    %v3840 = vadd.f32 %v3776, %v3648
    %v3841 = vadd.f32 %v3777, %v3649
    %v3842 = vadd.f32 %v3778, %v3650
    %v3843 = vadd.f32 %v3779, %v3651
    %v3844 = vadd.f32 %v3780, %v3652
    %v3845 = vadd.f32 %v3781, %v3653
    %v3846 = vadd.f32 %v3782, %v3654
    %v3847 = vadd.f32 %v3783, %v3655
    %v3848 = vadd.f32 %v3784, %v3656
    %v3849 = vadd.f32 %v3785, %v3657
    %v3850 = vadd.f32 %v3786, %v3658
    %v3851 = vadd.f32 %v3787, %v3659
    %v3852 = vadd.f32 %v3788, %v3660
    %v3853 = vadd.f32 %v3789, %v3661
    %v3854 = vadd.f32 %v3790, %v3662
    %v3855 = vadd.f32 %v3791, %v3663
    %v3856 = vadd.f32 %v3792, %v3664
    %v3857 = vadd.f32 %v3793, %v3665
    %v3858 = vadd.f32 %v3794, %v3666
    %v3859 = vadd.f32 %v3795, %v3667
    %v3860 = vadd.f32 %v3796, %v3668
    %v3861 = vadd.f32 %v3797, %v3669
    %v3862 = vadd.f32 %v3798, %v3670
    %v3863 = vadd.f32 %v3799, %v3671
    %v3864 = vadd.f32 %v3800, %v3672
    %v3865 = vadd.f32 %v3801, %v3673
    %v3866 = vadd.f32 %v3802, %v3674
    %v3867 = vadd.f32 %v3803, %v3675
    %v3868 = vadd.f32 %v3804, %v3676
    %v3869 = vadd.f32 %v3805, %v3677
    %v3870 = vadd.f32 %v3806, %v3678
    %v3871 = vadd.f32 %v3807, %v3679
    %v3872 = vadd.f32 %v3808, %v3680
    %v3873 = vadd.f32 %v3809, %v3681
    %v3874 = vadd.f32 %v3810, %v3682
    %v3875 = vadd.f32 %v3811, %v3683
    %v3876 = vadd.f32 %v3812, %v3684
    %v3877 = vadd.f32 %v3813, %v3685
    %v3878 = vadd.f32 %v3814, %v3686
    %v3879 = vadd.f32 %v3815, %v3687
    %v3880 = vadd.f32 %v3816, %v3688
    %v3881 = vadd.f32 %v3817, %v3689
    %v3882 = vadd.f32 %v3818, %v3690
    %v3883 = vadd.f32 %v3819, %v3691
    %v3884 = vadd.f32 %v3820, %v3692
    %v3885 = vadd.f32 %v3821, %v3693
    %v3886 = vadd.f32 %v3822, %v3694
    %v3887 = vadd.f32 %v3823, %v3695
    %v3888 = vadd.f32 %v3824, %v3696
    %v3889 = vadd.f32 %v3825, %v3697
    %v3890 = vadd.f32 %v3826, %v3698
    %v3891 = vadd.f32 %v3827, %v3699
    %v3892 = vadd.f32 %v3828, %v3700
    %v3893 = vadd.f32 %v3829, %v3701
    %v3894 = vadd.f32 %v3830, %v3702
    %v3895 = vadd.f32 %v3831, %v3703
    %v3896 = vadd.f32 %v3832, %v3704
    %v3897 = vadd.f32 %v3833, %v3705
    %v3898 = vadd.f32 %v3834, %v3706
    %v3899 = vadd.f32 %v3835, %v3707
    %v3900 = vadd.f32 %v3836, %v3708
    %v3901 = vadd.f32 %v3837, %v3709
    %v3902 = vadd.f32 %v3838, %v3710
    %v3903 = vadd.f32 %v3839, %v3711
    %v3904 = vadd.f32 %v3840, %v3712
    %v3905 = vadd.f32 %v3841, %v3713
    %v3906 = vadd.f32 %v3842, %v3714
    %v3907 = vadd.f32 %v3843, %v3715
    %v3908 = vadd.f32 %v3844, %v3716
    %v3909 = vadd.f32 %v3845, %v3717
    %v3910 = vadd.f32 %v3846, %v3718
    %v3911 = vadd.f32 %v3847, %v3719
    %v3912 = vadd.f32 %v3848, %v3720
    %v3913 = vadd.f32 %v3849, %v3721
    %v3914 = vadd.f32 %v3850, %v3722
    %v3915 = vadd.f32 %v3851, %v3723
    %v3916 = vadd.f32 %v3852, %v3724
    %v3917 = vadd.f32 %v3853, %v3725
    %v3918 = vadd.f32 %v3854, %v3726
    %v3919 = vadd.f32 %v3855, %v3727
    %v3920 = vadd.f32 %v3856, %v3728
    %v3921 = vadd.f32 %v3857, %v3729
    %v3922 = vadd.f32 %v3858, %v3730
    %v3923 = vadd.f32 %v3859, %v3731
    %v3924 = vadd.f32 %v3860, %v3732
    %v3925 = vadd.f32 %v3861, %v3733
    %v3926 = vadd.f32 %v3862, %v3734
    %v3927 = vadd.f32 %v3863, %v3735
    %v3928 = vadd.f32 %v3864, %v3736
    %v3929 = vadd.f32 %v3865, %v3737
    %v3930 = vadd.f32 %v3866, %v3738
    %v3931 = vadd.f32 %v3867, %v3739
    %v3932 = vadd.f32 %v3868, %v3740
    %v3933 = vadd.f32 %v3869, %v3741
    %v3934 = vadd.f32 %v3870, %v3742
    %v3935 = vadd.f32 %v3871, %v3743
    %v3936 = vadd.f32 %v3872, %v3744
    %v3937 = vadd.f32 %v3873, %v3745
    %v3938 = vadd.f32 %v3874, %v3746
    %v3939 = vadd.f32 %v3875, %v3747
    %v3940 = vadd.f32 %v3876, %v3748
    %v3941 = vadd.f32 %v3877, %v3749
    %v3942 = vadd.f32 %v3878, %v3750
    %v3943 = vadd.f32 %v3879, %v3751
    %v3944 = vadd.f32 %v3880, %v3752
    %v3945 = vadd.f32 %v3881, %v3753
    %v3946 = vadd.f32 %v3882, %v3754
    %v3947 = vadd.f32 %v3883, %v3755
    %3948 = vst [vmem:[#allocation7] sm:$0xff] %v3884
    %3949 = vst [vmem:[#allocation7 + $0x8] sm:$0xff] %v3885
    %3950 = vst [vmem:[#allocation7 + $0x10] sm:$0xff] %v3886
    %3951 = vst [vmem:[#allocation7 + $0x18] sm:$0xff] %v3887
    %3952 = vst [vmem:[#allocation7 + $0x20] sm:$0xff] %v3888
    %3953 = vst [vmem:[#allocation7 + $0x28] sm:$0xff] %v3889
    %3954 = vst [vmem:[#allocation7 + $0x30] sm:$0xff] %v3890
    %3955 = vst [vmem:[#allocation7 + $0x38] sm:$0xff] %v3891
    %3956 = vst [vmem:[#allocation7 + $0x40] sm:$0xff] %v3892
    %3957 = vst [vmem:[#allocation7 + $0x48] sm:$0xff] %v3893
    %3958 = vst [vmem:[#allocation7 + $0x50] sm:$0xff] %v3894
    %3959 = vst [vmem:[#allocation7 + $0x58] sm:$0xff] %v3895
    %3960 = vst [vmem:[#allocation7 + $0x60] sm:$0xff] %v3896
    %3961 = vst [vmem:[#allocation7 + $0x68] sm:$0xff] %v3897
    %3962 = vst [vmem:[#allocation7 + $0x70] sm:$0xff] %v3898
    %3963 = vst [vmem:[#allocation7 + $0x78] sm:$0xff] %v3899
    %3964 = vst [vmem:[#allocation7 + $0x80] sm:$0xff] %v3900
    %3965 = vst [vmem:[#allocation7 + $0x88] sm:$0xff] %v3901
    %3966 = vst [vmem:[#allocation7 + $0x90] sm:$0xff] %v3902
    %3967 = vst [vmem:[#allocation7 + $0x98] sm:$0xff] %v3903
    %3968 = vst [vmem:[#allocation7 + $0xa0] sm:$0xff] %v3904
    %3969 = vst [vmem:[#allocation7 + $0xa8] sm:$0xff] %v3905
    %3970 = vst [vmem:[#allocation7 + $0xb0] sm:$0xff] %v3906
    %3971 = vst [vmem:[#allocation7 + $0xb8] sm:$0xff] %v3907
    %3972 = vst [vmem:[#allocation7 + $0xc0] sm:$0xff] %v3908
    %3973 = vst [vmem:[#allocation7 + $0xc8] sm:$0xff] %v3909
    %3974 = vst [vmem:[#allocation7 + $0xd0] sm:$0xff] %v3910
    %3975 = vst [vmem:[#allocation7 + $0xd8] sm:$0xff] %v3911
    %3976 = vst [vmem:[#allocation7 + $0xe0] sm:$0xff] %v3912
    %3977 = vst [vmem:[#allocation7 + $0xe8] sm:$0xff] %v3913
    %3978 = vst [vmem:[#allocation7 + $0xf0] sm:$0xff] %v3914
    %3979 = vst [vmem:[#allocation7 + $0xf8] sm:$0xff] %v3915
    %3980 = vst [vmem:[#allocation7 + $0x100] sm:$0xff] %v3916
    %3981 = vst [vmem:[#allocation7 + $0x108] sm:$0xff] %v3917
    %3982 = vst [vmem:[#allocation7 + $0x110] sm:$0xff] %v3918
    %3983 = vst [vmem:[#allocation7 + $0x118] sm:$0xff] %v3919
    %3984 = vst [vmem:[#allocation7 + $0x120] sm:$0xff] %v3920
    %3985 = vst [vmem:[#allocation7 + $0x128] sm:$0xff] %v3921
    %3986 = vst [vmem:[#allocation7 + $0x130] sm:$0xff] %v3922
    %3987 = vst [vmem:[#allocation7 + $0x138] sm:$0xff] %v3923
    %3988 = vst [vmem:[#allocation7 + $0x140] sm:$0xff] %v3924
    %3989 = vst [vmem:[#allocation7 + $0x148] sm:$0xff] %v3925
    %3990 = vst [vmem:[#allocation7 + $0x150] sm:$0xff] %v3926
    %3991 = vst [vmem:[#allocation7 + $0x158] sm:$0xff] %v3927
    %3992 = vst [vmem:[#allocation7 + $0x160] sm:$0xff] %v3928
    %3993 = vst [vmem:[#allocation7 + $0x168] sm:$0xff] %v3929
    %3994 = vst [vmem:[#allocation7 + $0x170] sm:$0xff] %v3930
    %3995 = vst [vmem:[#allocation7 + $0x178] sm:$0xff] %v3931
    %3996 = vst [vmem:[#allocation7 + $0x180] sm:$0xff] %v3932
    %3997 = vst [vmem:[#allocation7 + $0x188] sm:$0xff] %v3933
    %3998 = vst [vmem:[#allocation7 + $0x190] sm:$0xff] %v3934
    %3999 = vst [vmem:[#allocation7 + $0x198] sm:$0xff] %v3935
    %4000 = vst [vmem:[#allocation7 + $0x1a0] sm:$0xff] %v3936
    %4001 = vst [vmem:[#allocation7 + $0x1a8] sm:$0xff] %v3937
    %4002 = vst [vmem:[#allocation7 + $0x1b0] sm:$0xff] %v3938
    %4003 = vst [vmem:[#allocation7 + $0x1b8] sm:$0xff] %v3939
    %4004 = vst [vmem:[#allocation7 + $0x1c0] sm:$0xff] %v3940
    %4005 = vst [vmem:[#allocation7 + $0x1c8] sm:$0xff] %v3941
    %4006 = vst [vmem:[#allocation7 + $0x1d0] sm:$0xff] %v3942
    %4007 = vst [vmem:[#allocation7 + $0x1d8] sm:$0xff] %v3943
    %4008 = vst [vmem:[#allocation7 + $0x1e0] sm:$0xff] %v3944
    %4009 = vst [vmem:[#allocation7 + $0x1e8] sm:$0xff] %v3945
    %4010 = vst [vmem:[#allocation7 + $0x1f0] sm:$0xff] %v3946
    %4011 = vst [vmem:[#allocation7 + $0x1f8] sm:$0xff] %v3947
    // Predicated region
    $region22: #{tpu_custom_call.1} parent=1 // pred_check
      _
    $region23: #{tpu_custom_call.1} parent=1 // pred_check_branch
      %4013 = sbr.rel (0) target = $region25
    $region24: #{tpu_custom_call.1} parent=1 // pred_region
      %s4015 = ssub.s32 8192, 8192
      %4016 = vsyncadd [#allocation4], %s4015
      %s4017 = sshll.u32 [#allocation7], 4
      %s4018 = int_to_ptr.vmem [resolvable:$true] %s4017
      %4023 = dma.vmem_to_hbm [thread:$0]  %s4018, 8192, %s3, [#allocation4], 128, 128, 8
    $region25: #{tpu_custom_call.1} parent=1 // pred_fallthru
      _
    // Predicated region
    $region26: #{tpu_custom_call.1} parent=1 // pred_check
      _
    $region27: #{tpu_custom_call.1} parent=1 // pred_check_branch
      %4025 = sbr.rel (0) target = $region29
    $region28: #{tpu_custom_call.1} parent=1 // pred_region
      %4026 = dma.done [#allocation4], 8192
    $region29: #{tpu_custom_call.1} parent=1 // pred_fallthru
      _
    %4027 = vsyncpa [#allocation3], 1
    %4028 = vsyncpa [#allocation6], 1
    %4029 = vsyncpa [#allocation4], 1

</llo_original>
